<compile_context>
chip_gen: v7x
topology: tpu7x:2x2x1
jax: 0.10.0
libtpu: 0.0.40
codegen_flags: <defaults>
</compile_context>

<pallas_src>
import functools

import jax
import jax.numpy as jnp
import numpy as np
from jax import lax
from jax.experimental import pallas as pl
from jax.experimental.pallas import tpu as pltpu


def _aspp_kernel(xflat_ref, w1t_ref, w3t_ref, wpt_ref, wpm_ref, wpp_ref,
                 bias_ref, out_ref, im2col_ref, cat_ref, *,
                 H, W, Wp, Cin, Cout, rates, pmax):
    """One batch element of the ASPP forward pass (eval mode), channel-major.

    xflat_ref : (1, Cin, Hpad*Wp)     zero-padded input, channel-major, flat
    w1t_ref   : (Cout, Cin)           1x1 branch weight^T (BN scale folded in)
    w3t_ref   : (R, Cout, 9*Cin)      3x3 dilated branch weights^T (folded)
    wpt_ref   : (Cout, Cin)           pooling-branch 1x1 weight^T (folded)
    wpm_ref   : (Cout, (R+1)*Cout)    projection weight^T, image branches
    wpp_ref   : (Cout, Cout)          projection weight^T, pooling branch
    bias_ref  : (R+3, Cout, 1)        folded BN biases (f32)
    out_ref   : (1, Cout, H*Wp)       output (NCHW, padded-width pixel axis)
    im2col_ref: (9*Cin, H*Wp)         scratch: per-rate channel-major im2col
    cat_ref   : ((R+1)*Cout, H*Wp)    scratch: concatenated branch outputs
    """
    nR = len(rates)
    HWp = H * Wp
    cdtype = cat_ref.dtype

    def tap(oy, ox):
        # Static contiguous lane-slice of the flat padded image: pixel column
        # q = y*Wp + x of this slice holds padded pixel (y+oy, x+ox).
        off = oy * Wp + ox
        return xflat_ref[0, :, off:off + HWp]           # (Cin, HWp)

    def bias_relu(y, i):                                # y: (Cout, npix) f32
        return jnp.maximum(y + bias_ref[i], 0.0)

    # Centre (un-shifted) window: 1x1 branch, centre taps and global pool.
    x_cm = tap(pmax, pmax)                              # (Cin, HWp)

    # --- branch 0: 1x1 conv (+folded BN) + ReLU ---------------------------
    y0 = jnp.dot(w1t_ref[...], x_cm, preferred_element_type=jnp.float32)
    cat_ref[0:Cout, :] = bias_relu(y0, 0).astype(cdtype)

    # --- dilated 3x3 branches: one K=9*Cin matmul per rate ----------------
    for ri, r in enumerate(rates):
        for ky in range(3):
            for kx in range(3):
                t = ky * 3 + kx
                w = x_cm if (ky == 1 and kx == 1) else tap(
                    pmax + (ky - 1) * r, pmax + (kx - 1) * r)
                im2col_ref[t * Cin:(t + 1) * Cin, :] = w
        conv = jnp.dot(w3t_ref[ri], im2col_ref[...],
                       preferred_element_type=jnp.float32)          # (Cout, HWp)
        cat_ref[(ri + 1) * Cout:(ri + 2) * Cout, :] = (
            bias_relu(conv, ri + 1).astype(cdtype))

    # --- fused projection over the materialized concat (K=(R+1)*Cout) -----
    proj = jnp.dot(wpm_ref[...], cat_ref[...],
                   preferred_element_type=jnp.float32)              # (Cout, HWp)

    # --- pooling branch ----------------------------------------------------
    # Garbage columns of the centre window lie in the zero padding, so the
    # full-row sum divided by H*W is the exact mean over valid pixels.
    pooled = (jnp.sum(x_cm.astype(jnp.float32), axis=1, keepdims=True)
              * (1.0 / (H * W)))                                    # (Cin, 1)
    pb = jnp.dot(wpt_ref[...], pooled.astype(cdtype),
                 preferred_element_type=jnp.float32)                # (Cout, 1)
    pb = bias_relu(pb, nR + 1).astype(cdtype)
    proj += jnp.dot(wpp_ref[...], pb, preferred_element_type=jnp.float32)

    # --- projection BN (folded) + ReLU; Dropout(0.5) is identity in eval ---
    out = bias_relu(proj, nR + 2)
    out_ref[...] = out.reshape(1, Cout, HWp).astype(out_ref.dtype)


def fold_bn(params, rates):
    """Fold eval-mode BatchNorm scales into the conv weights (f32)."""
    w1, w3, wp, wproj, scales, biases = params
    nR = len(rates)
    w1f = w1 * scales[0]
    w3f = w3 * scales[1:nR + 1][:, None, None, :]
    wpf = wp * scales[nR + 1]
    wprojf = wproj * scales[nR + 2]
    return w1f, w3f, wpf, wprojf, biases


def aspp_pallas(x_nchw, params, *, rates, compute_dtype=jnp.bfloat16):
    """ASPP forward (eval). x: (N, Cin, H, W) f32 -> (N, Cout, H, W) f32.

    compute_dtype is the MXU input dtype (bf16 doubles throughput on v6e/v7x);
    accumulation is always f32.
    """
    rates = tuple(rates)
    nR = len(rates)
    w1f, w3f, wpf, wprojf, biases = fold_bn(params, rates)
    Cin, Cout = w1f.shape
    pmax = max(rates)

    # Kernel-form (channel-major / transposed) weights.
    w1t = w1f.T.astype(compute_dtype)                            # (Cout, Cin)
    w3t = jnp.transpose(w3f.reshape(nR, 9 * Cin, Cout),
                        (0, 2, 1)).astype(compute_dtype)         # (R, Cout, 9Cin)
    wpt = wpf.T.astype(compute_dtype)                            # (Cout, Cin)
    wprojt = wprojf.T.astype(compute_dtype)                      # (Cout, (R+2)Cout)
    wpm = wprojt[:, :(nR + 1) * Cout]                            # image branches
    wpp = wprojt[:, (nR + 1) * Cout:]                            # pooling branch
    bias3 = biases.astype(jnp.float32)[:, :, None]               # (R+3, Cout, 1)

    # Zero-pad NCHW spatially (one extra bottom row keeps every shifted flat
    # window in bounds), flatten the spatial axes (contiguous, free reshape),
    # cast to the compute dtype.  No transpose is needed anywhere.
    N, _, H, W = x_nchw.shape
    Wp = W + 2 * pmax
    Hp = H + 2 * pmax + 1
    xpad = jnp.pad(x_nchw, ((0, 0), (0, 0), (pmax, pmax + 1), (pmax, pmax)))
    xflat = xpad.reshape(N, Cin, Hp * Wp).astype(compute_dtype)
    HWp = H * Wp

    kernel = functools.partial(_aspp_kernel, H=H, W=W, Wp=Wp, Cin=Cin,
                               Cout=Cout, rates=rates, pmax=pmax)

    def const(shape):   # whole (small) weight resident; same block every step
        return pl.BlockSpec(shape, lambda n: (0,) * len(shape))

    out_flat = pl.pallas_call(
        kernel,
        out_shape=jax.ShapeDtypeStruct((N, Cout, HWp), jnp.float32),
        grid=(N,),
        in_specs=[
            pl.BlockSpec((1, Cin, Hp * Wp), lambda n: (n, 0, 0)),
            const(w1t.shape),
            const(w3t.shape),
            const(wpt.shape),
            const(wpm.shape),
            const(wpp.shape),
            const(bias3.shape),
        ],
        out_specs=pl.BlockSpec((1, Cout, HWp), lambda n: (n, 0, 0)),
        scratch_shapes=[
            pltpu.VMEM((9 * Cin, HWp), compute_dtype),            # im2col
            pltpu.VMEM(((nR + 1) * Cout, HWp), compute_dtype),    # concat
        ],
        compiler_params=pltpu.CompilerParams(
            dimension_semantics=("parallel",),
            vmem_limit_bytes=64 * 1024 * 1024,
        ),
    )(xflat, w1t, w3t, wpt, wpm, wpp, bias3)

    # Output is channel-major (NCHW) with a padded width; drop the garbage
    # columns with a cheap strided slice.
    return out_flat.reshape(N, Cout, H, Wp)[:, :, :, :W]


def aspp_reference(x_nchw, w1, w3, wp, wproj, biases, *, rates, scales=None,
                   compute_dtype=jnp.float32):
    """Pure-XLA reference.

    With `scales` given (raw params, f32) this is a direct transcription of
    the PyTorch module in eval mode.  With scales=None and folded weights it
    mirrors the kernel's quantization points (inputs/weights in compute_dtype,
    f32 accumulation), giving a tight check for the bf16 fast path.
    """
    rates = tuple(rates)
    nR = len(rates)
    Cin = x_nchw.shape[1]
    Cout = w1.shape[-1]

    x = jnp.transpose(x_nchw, (0, 2, 3, 1)).astype(compute_dtype)   # NHWC
    N, H, W, _ = x.shape

    def post(y, i):                      # (folded) BN + ReLU, in f32
        if scales is not None:
            y = y * scales[i]
        return jnp.maximum(y + biases[i], 0.0)

    branches = [post(jnp.einsum('nhwc,co->nhwo', x, w1.astype(compute_dtype),
                                preferred_element_type=jnp.float32), 0)]
    w3r = w3.reshape(nR, 3, 3, Cin, Cout)                           # HWIO
    for ri, r in enumerate(rates):
        y = lax.conv_general_dilated(
            x, w3r[ri].astype(compute_dtype), window_strides=(1, 1),
            padding=((r, r), (r, r)), rhs_dilation=(r, r),
            dimension_numbers=('NHWC', 'HWIO', 'NHWC'),
            preferred_element_type=jnp.float32)
        branches.append(post(y, ri + 1))
    pooled = jnp.mean(x.astype(jnp.float32), axis=(1, 2)).astype(compute_dtype)
    pb = post(jnp.dot(pooled, wp.astype(compute_dtype),
                      preferred_element_type=jnp.float32), nR + 1)
    branches.append(jnp.broadcast_to(pb[:, None, None, :], (N, H, W, Cout)))
    cat = jnp.concatenate(branches, axis=-1).astype(compute_dtype)
    out = post(jnp.einsum('nhwc,co->nhwo', cat, wproj.astype(compute_dtype),
                          preferred_element_type=jnp.float32), nR + 2)
    return jnp.transpose(out, (0, 3, 1, 2)).astype(jnp.float32)


def make_params(key, Cin, Cout, rates):
    """Deterministic synthetic parameters (conv weights + eval-mode BN)."""
    nR = len(rates)
    n_bn = nR + 3                     # per-branch BNs (nR+2) + projection BN
    ks = jax.random.split(key, 8)
    w1 = jax.random.normal(ks[0], (Cin, Cout), jnp.float32) * 0.3
    w3 = jax.random.normal(ks[1], (nR, 9, Cin, Cout), jnp.float32) * 0.2
    wp = jax.random.normal(ks[2], (Cin, Cout), jnp.float32) * 0.3
    wproj = jax.random.normal(ks[3], ((nR + 2) * Cout, Cout), jnp.float32) * 0.1
    gamma = 0.5 + jax.random.uniform(ks[4], (n_bn, Cout), jnp.float32)
    beta = jax.random.normal(ks[5], (n_bn, Cout), jnp.float32) * 0.1
    mean = jax.random.normal(ks[6], (n_bn, Cout), jnp.float32) * 0.1
    var = 0.5 + jax.random.uniform(ks[7], (n_bn, Cout), jnp.float32)
    eps = 1e-5                        # nn.BatchNorm2d default
    scales = gamma / jnp.sqrt(var + eps)
    biases = beta - mean * scales
    return (w1, w3, wp, wproj, scales, biases)


if __name__ == "__main__":
    # ASPP(in_channels=4, atrous_rates=(1, 2, 3), out_channels=32),
    # input (2, 4, 16, 16).
    N, Cin, H, W = 2, 4, 16, 16
    Cout = 32
    rates = (1, 2, 3)

    key = jax.random.PRNGKey(0)
    kx, kp = jax.random.split(key)
    x = jax.random.normal(kx, (N, Cin, H, W), jnp.float32)
    params = make_params(kp, Cin, Cout, rates)
    w1, w3, wp, wproj, scales, biases = params

    # 1) float32 compute path vs. a direct transcription of the module.
    out_f32 = jax.block_until_ready(
        aspp_pallas(x, params, rates=rates, compute_dtype=jnp.float32))
    ref_module = aspp_reference(x, w1, w3, wp, wproj, biases, rates=rates,
                                scales=scales, compute_dtype=jnp.float32)
    assert out_f32.shape == (N, Cout, H, W), out_f32.shape
    np.testing.assert_allclose(np.asarray(out_f32), np.asarray(ref_module),
                               rtol=1e-3, atol=1e-3)

    # 2) bfloat16 compute path (v6e/v7x MXU-friendly) vs. a reference using
    #    the same quantization points (folded bf16 weights, f32 accumulation).
    cdt = jnp.bfloat16
    out_bf16 = jax.block_until_ready(
        aspp_pallas(x, params, rates=rates, compute_dtype=cdt))
    w1f, w3f, wpf, wprojf, fb = fold_bn(params, rates)
    ref_matched = aspp_reference(
        x, w1f.astype(cdt), w3f.astype(cdt), wpf.astype(cdt),
        wprojf.astype(cdt), fb, rates=rates, scales=None, compute_dtype=cdt)
    np.testing.assert_allclose(np.asarray(out_bf16), np.asarray(ref_matched),
                               rtol=1e-2, atol=1e-2)

    print("KERNEL_OK")
</pallas_src>

<mosaic_0001>
module attributes {stable_mosaic.version = 11 : i64} {
  func.func @_aspp_kernel(%arg0: i32, %arg1: memref<1x4x506xf32, #tpu.memory_space<vmem>>, %arg2: memref<32x4xf32, #tpu.memory_space<vmem>>, %arg3: memref<3x32x36xf32, #tpu.memory_space<vmem>>, %arg4: memref<32x4xf32, #tpu.memory_space<vmem>>, %arg5: memref<32x128xf32, #tpu.memory_space<vmem>>, %arg6: memref<32x32xf32, #tpu.memory_space<vmem>>, %arg7: memref<6x32x1xf32, #tpu.memory_space<vmem>>, %arg8: memref<1x32x352xf32, #tpu.memory_space<vmem>>, %arg9: memref<36x352xf32, #tpu.memory_space<vmem>>, %arg10: memref<128x352xf32, #tpu.memory_space<vmem>>) attributes {dimension_semantics = [#tpu.dimension_semantics<parallel>], iteration_bounds = array<i64: 2>, scalar_prefetch = 0 : i64, scratch_operands = 2 : i64, tpu.core_type = #tpu.core_type<tc>, window_params = [{transform_indices = @transform_0, window_bounds = array<i64: 1, 4, 506>}, {pipeline_mode = #tpu.pipeline_mode<synchronous>, transform_indices = @transform_1, window_bounds = array<i64: 32, 4>}, {pipeline_mode = #tpu.pipeline_mode<synchronous>, transform_indices = @transform_2, window_bounds = array<i64: 3, 32, 36>}, {pipeline_mode = #tpu.pipeline_mode<synchronous>, transform_indices = @transform_3, window_bounds = array<i64: 32, 4>}, {pipeline_mode = #tpu.pipeline_mode<synchronous>, transform_indices = @transform_4, window_bounds = array<i64: 32, 128>}, {pipeline_mode = #tpu.pipeline_mode<synchronous>, transform_indices = @transform_5, window_bounds = array<i64: 32, 32>}, {pipeline_mode = #tpu.pipeline_mode<synchronous>, transform_indices = @transform_6, window_bounds = array<i64: 6, 32, 1>}, {transform_indices = @transform_7, window_bounds = array<i64: 1, 32, 352>}]} {
    %c0 = arith.constant 0 : index
    %c0_0 = arith.constant 0 : index
    %c69 = arith.constant 69 : index
    %0 = vector.load %arg1[%c0, %c0_0, %c69] : memref<1x4x506xf32, #tpu.memory_space<vmem>>, vector<1x4x352xf32>
    %1 = vector.shape_cast %0 : vector<1x4x352xf32> to vector<4x352xf32>
    %c0_1 = arith.constant 0 : index
    %c0_2 = arith.constant 0 : index
    %2 = vector.load %arg2[%c0_1, %c0_2] : memref<32x4xf32, #tpu.memory_space<vmem>>, vector<32x4xf32>
    %cst = arith.constant dense<0.000000e+00> : vector<32x352xf32>
    %3 = tpu.matmul %2, %1, %cst {dimension_numbers = #tpu.dot_dimension_numbers<[1], [0], [0], [1], [0, 0, 1, 1], [], []>} : vector<32x4xf32>, vector<4x352xf32>, vector<32x352xf32> -> vector<32x352xf32>
    %c0_3 = arith.constant 0 : index
    %c0_4 = arith.constant 0 : index
    %c0_5 = arith.constant 0 : index
    %4 = vector.load %arg7[%c0_3, %c0_4, %c0_5] : memref<6x32x1xf32, #tpu.memory_space<vmem>>, vector<1x32x1xf32>
    %5 = vector.shape_cast %4 : vector<1x32x1xf32> to vector<32x1xf32>
    %6 = vector.broadcast %5 : vector<32x1xf32> to vector<32x352xf32>
    %7 = arith.addf %3, %6 : vector<32x352xf32>
    %cst_6 = arith.constant 0.000000e+00 : f32
    %8 = vector.broadcast %cst_6 : f32 to vector<32x352xf32>
    %9 = arith.maximumf %7, %8 : vector<32x352xf32>
    %c0_7 = arith.constant 0 : index
    %c0_8 = arith.constant 0 : index
    %10 = vector.load %arg10[%c0_7, %c0_8] : memref<128x352xf32, #tpu.memory_space<vmem>>, vector<32x352xf32>
    tpu.vector_store %arg10[%c0_7, %c0_8], %9 {strides = array<i32>} : memref<128x352xf32, #tpu.memory_space<vmem>>, vector<32x352xf32>,
    %c0_9 = arith.constant 0 : index
    %c0_10 = arith.constant 0 : index
    %c46 = arith.constant 46 : index
    %11 = vector.load %arg1[%c0_9, %c0_10, %c46] : memref<1x4x506xf32, #tpu.memory_space<vmem>>, vector<1x4x352xf32>
    %12 = vector.shape_cast %11 : vector<1x4x352xf32> to vector<4x352xf32>
    %c0_11 = arith.constant 0 : index
    %c0_12 = arith.constant 0 : index
    %13 = vector.load %arg9[%c0_11, %c0_12] : memref<36x352xf32, #tpu.memory_space<vmem>>, vector<4x352xf32>
    tpu.vector_store %arg9[%c0_11, %c0_12], %12 {strides = array<i32>} : memref<36x352xf32, #tpu.memory_space<vmem>>, vector<4x352xf32>,
    %c0_13 = arith.constant 0 : index
    %c0_14 = arith.constant 0 : index
    %c47 = arith.constant 47 : index
    %14 = vector.load %arg1[%c0_13, %c0_14, %c47] : memref<1x4x506xf32, #tpu.memory_space<vmem>>, vector<1x4x352xf32>
    %15 = vector.shape_cast %14 : vector<1x4x352xf32> to vector<4x352xf32>
    %c4 = arith.constant 4 : index
    %c0_15 = arith.constant 0 : index
    %16 = vector.load %arg9[%c4, %c0_15] : memref<36x352xf32, #tpu.memory_space<vmem>>, vector<4x352xf32>
    tpu.vector_store %arg9[%c4, %c0_15], %15 {strides = array<i32>} : memref<36x352xf32, #tpu.memory_space<vmem>>, vector<4x352xf32>,
    %c0_16 = arith.constant 0 : index
    %c0_17 = arith.constant 0 : index
    %c48 = arith.constant 48 : index
    %17 = vector.load %arg1[%c0_16, %c0_17, %c48] : memref<1x4x506xf32, #tpu.memory_space<vmem>>, vector<1x4x352xf32>
    %18 = vector.shape_cast %17 : vector<1x4x352xf32> to vector<4x352xf32>
    %c8 = arith.constant 8 : index
    %c0_18 = arith.constant 0 : index
    %19 = vector.load %arg9[%c8, %c0_18] : memref<36x352xf32, #tpu.memory_space<vmem>>, vector<4x352xf32>
    tpu.vector_store %arg9[%c8, %c0_18], %18 {strides = array<i32>} : memref<36x352xf32, #tpu.memory_space<vmem>>, vector<4x352xf32>,
    %c0_19 = arith.constant 0 : index
    %c0_20 = arith.constant 0 : index
    %c68 = arith.constant 68 : index
    %20 = vector.load %arg1[%c0_19, %c0_20, %c68] : memref<1x4x506xf32, #tpu.memory_space<vmem>>, vector<1x4x352xf32>
    %21 = vector.shape_cast %20 : vector<1x4x352xf32> to vector<4x352xf32>
    %c12 = arith.constant 12 : index
    %c0_21 = arith.constant 0 : index
    %22 = vector.load %arg9[%c12, %c0_21] : memref<36x352xf32, #tpu.memory_space<vmem>>, vector<4x352xf32>
    tpu.vector_store %arg9[%c12, %c0_21], %21 {strides = array<i32>} : memref<36x352xf32, #tpu.memory_space<vmem>>, vector<4x352xf32>,
    %c16 = arith.constant 16 : index
    %c0_22 = arith.constant 0 : index
    %23 = vector.load %arg9[%c16, %c0_22] : memref<36x352xf32, #tpu.memory_space<vmem>>, vector<4x352xf32>
    tpu.vector_store %arg9[%c16, %c0_22], %1 {strides = array<i32>} : memref<36x352xf32, #tpu.memory_space<vmem>>, vector<4x352xf32>,
    %c0_23 = arith.constant 0 : index
    %c0_24 = arith.constant 0 : index
    %c70 = arith.constant 70 : index
    %24 = vector.load %arg1[%c0_23, %c0_24, %c70] : memref<1x4x506xf32, #tpu.memory_space<vmem>>, vector<1x4x352xf32>
    %25 = vector.shape_cast %24 : vector<1x4x352xf32> to vector<4x352xf32>
    %c20 = arith.constant 20 : index
    %c0_25 = arith.constant 0 : index
    %26 = vector.load %arg9[%c20, %c0_25] : memref<36x352xf32, #tpu.memory_space<vmem>>, vector<4x352xf32>
    tpu.vector_store %arg9[%c20, %c0_25], %25 {strides = array<i32>} : memref<36x352xf32, #tpu.memory_space<vmem>>, vector<4x352xf32>,
    %c0_26 = arith.constant 0 : index
    %c0_27 = arith.constant 0 : index
    %c90 = arith.constant 90 : index
    %27 = vector.load %arg1[%c0_26, %c0_27, %c90] : memref<1x4x506xf32, #tpu.memory_space<vmem>>, vector<1x4x352xf32>
    %28 = vector.shape_cast %27 : vector<1x4x352xf32> to vector<4x352xf32>
    %c24 = arith.constant 24 : index
    %c0_28 = arith.constant 0 : index
    %29 = vector.load %arg9[%c24, %c0_28] : memref<36x352xf32, #tpu.memory_space<vmem>>, vector<4x352xf32>
    tpu.vector_store %arg9[%c24, %c0_28], %28 {strides = array<i32>} : memref<36x352xf32, #tpu.memory_space<vmem>>, vector<4x352xf32>,
    %c0_29 = arith.constant 0 : index
    %c0_30 = arith.constant 0 : index
    %c91 = arith.constant 91 : index
    %30 = vector.load %arg1[%c0_29, %c0_30, %c91] : memref<1x4x506xf32, #tpu.memory_space<vmem>>, vector<1x4x352xf32>
    %31 = vector.shape_cast %30 : vector<1x4x352xf32> to vector<4x352xf32>
    %c28 = arith.constant 28 : index
    %c0_31 = arith.constant 0 : index
    %32 = vector.load %arg9[%c28, %c0_31] : memref<36x352xf32, #tpu.memory_space<vmem>>, vector<4x352xf32>
    tpu.vector_store %arg9[%c28, %c0_31], %31 {strides = array<i32>} : memref<36x352xf32, #tpu.memory_space<vmem>>, vector<4x352xf32>,
    %c0_32 = arith.constant 0 : index
    %c0_33 = arith.constant 0 : index
    %c92 = arith.constant 92 : index
    %33 = vector.load %arg1[%c0_32, %c0_33, %c92] : memref<1x4x506xf32, #tpu.memory_space<vmem>>, vector<1x4x352xf32>
    %34 = vector.shape_cast %33 : vector<1x4x352xf32> to vector<4x352xf32>
    %c32 = arith.constant 32 : index
    %c0_34 = arith.constant 0 : index
    %35 = vector.load %arg9[%c32, %c0_34] : memref<36x352xf32, #tpu.memory_space<vmem>>, vector<4x352xf32>
    tpu.vector_store %arg9[%c32, %c0_34], %34 {strides = array<i32>} : memref<36x352xf32, #tpu.memory_space<vmem>>, vector<4x352xf32>,
    %c0_35 = arith.constant 0 : index
    %c0_36 = arith.constant 0 : index
    %c0_37 = arith.constant 0 : index
    %36 = vector.load %arg3[%c0_35, %c0_36, %c0_37] : memref<3x32x36xf32, #tpu.memory_space<vmem>>, vector<1x32x36xf32>
    %37 = vector.shape_cast %36 : vector<1x32x36xf32> to vector<32x36xf32>
    %c0_38 = arith.constant 0 : index
    %c0_39 = arith.constant 0 : index
    %38 = vector.load %arg9[%c0_38, %c0_39] : memref<36x352xf32, #tpu.memory_space<vmem>>, vector<36x352xf32>
    %cst_40 = arith.constant dense<0.000000e+00> : vector<32x352xf32>
    %39 = tpu.matmul %37, %38, %cst_40 {dimension_numbers = #tpu.dot_dimension_numbers<[1], [0], [0], [1], [0, 0, 1, 1], [], []>} : vector<32x36xf32>, vector<36x352xf32>, vector<32x352xf32> -> vector<32x352xf32>
    %c1 = arith.constant 1 : index
    %c0_41 = arith.constant 0 : index
    %c0_42 = arith.constant 0 : index
    %40 = vector.load %arg7[%c1, %c0_41, %c0_42] : memref<6x32x1xf32, #tpu.memory_space<vmem>>, vector<1x32x1xf32>
    %41 = vector.shape_cast %40 : vector<1x32x1xf32> to vector<32x1xf32>
    %42 = vector.broadcast %41 : vector<32x1xf32> to vector<32x352xf32>
    %43 = arith.addf %39, %42 : vector<32x352xf32>
    %cst_43 = arith.constant 0.000000e+00 : f32
    %44 = vector.broadcast %cst_43 : f32 to vector<32x352xf32>
    %45 = arith.maximumf %43, %44 : vector<32x352xf32>
    %c32_44 = arith.constant 32 : index
    %c0_45 = arith.constant 0 : index
    %46 = vector.load %arg10[%c32_44, %c0_45] : memref<128x352xf32, #tpu.memory_space<vmem>>, vector<32x352xf32>
    tpu.vector_store %arg10[%c32_44, %c0_45], %45 {strides = array<i32>} : memref<128x352xf32, #tpu.memory_space<vmem>>, vector<32x352xf32>,
    %c0_46 = arith.constant 0 : index
    %c0_47 = arith.constant 0 : index
    %c23 = arith.constant 23 : index
    %47 = vector.load %arg1[%c0_46, %c0_47, %c23] : memref<1x4x506xf32, #tpu.memory_space<vmem>>, vector<1x4x352xf32>
    %48 = vector.shape_cast %47 : vector<1x4x352xf32> to vector<4x352xf32>
    %c0_48 = arith.constant 0 : index
    %c0_49 = arith.constant 0 : index
    %49 = vector.load %arg9[%c0_48, %c0_49] : memref<36x352xf32, #tpu.memory_space<vmem>>, vector<4x352xf32>
    tpu.vector_store %arg9[%c0_48, %c0_49], %48 {strides = array<i32>} : memref<36x352xf32, #tpu.memory_space<vmem>>, vector<4x352xf32>,
    %c0_50 = arith.constant 0 : index
    %c0_51 = arith.constant 0 : index
    %c25 = arith.constant 25 : index
    %50 = vector.load %arg1[%c0_50, %c0_51, %c25] : memref<1x4x506xf32, #tpu.memory_space<vmem>>, vector<1x4x352xf32>
    %51 = vector.shape_cast %50 : vector<1x4x352xf32> to vector<4x352xf32>
    %c4_52 = arith.constant 4 : index
    %c0_53 = arith.constant 0 : index
    %52 = vector.load %arg9[%c4_52, %c0_53] : memref<36x352xf32, #tpu.memory_space<vmem>>, vector<4x352xf32>
    tpu.vector_store %arg9[%c4_52, %c0_53], %51 {strides = array<i32>} : memref<36x352xf32, #tpu.memory_space<vmem>>, vector<4x352xf32>,
    %c0_54 = arith.constant 0 : index
    %c0_55 = arith.constant 0 : index
    %c27 = arith.constant 27 : index
    %53 = vector.load %arg1[%c0_54, %c0_55, %c27] : memref<1x4x506xf32, #tpu.memory_space<vmem>>, vector<1x4x352xf32>
    %54 = vector.shape_cast %53 : vector<1x4x352xf32> to vector<4x352xf32>
    %c8_56 = arith.constant 8 : index
    %c0_57 = arith.constant 0 : index
    %55 = vector.load %arg9[%c8_56, %c0_57] : memref<36x352xf32, #tpu.memory_space<vmem>>, vector<4x352xf32>
    tpu.vector_store %arg9[%c8_56, %c0_57], %54 {strides = array<i32>} : memref<36x352xf32, #tpu.memory_space<vmem>>, vector<4x352xf32>,
    %c0_58 = arith.constant 0 : index
    %c0_59 = arith.constant 0 : index
    %c67 = arith.constant 67 : index
    %56 = vector.load %arg1[%c0_58, %c0_59, %c67] : memref<1x4x506xf32, #tpu.memory_space<vmem>>, vector<1x4x352xf32>
    %57 = vector.shape_cast %56 : vector<1x4x352xf32> to vector<4x352xf32>
    %c12_60 = arith.constant 12 : index
    %c0_61 = arith.constant 0 : index
    %58 = vector.load %arg9[%c12_60, %c0_61] : memref<36x352xf32, #tpu.memory_space<vmem>>, vector<4x352xf32>
    tpu.vector_store %arg9[%c12_60, %c0_61], %57 {strides = array<i32>} : memref<36x352xf32, #tpu.memory_space<vmem>>, vector<4x352xf32>,
    %c16_62 = arith.constant 16 : index
    %c0_63 = arith.constant 0 : index
    %59 = vector.load %arg9[%c16_62, %c0_63] : memref<36x352xf32, #tpu.memory_space<vmem>>, vector<4x352xf32>
    tpu.vector_store %arg9[%c16_62, %c0_63], %1 {strides = array<i32>} : memref<36x352xf32, #tpu.memory_space<vmem>>, vector<4x352xf32>,
    %c0_64 = arith.constant 0 : index
    %c0_65 = arith.constant 0 : index
    %c71 = arith.constant 71 : index
    %60 = vector.load %arg1[%c0_64, %c0_65, %c71] : memref<1x4x506xf32, #tpu.memory_space<vmem>>, vector<1x4x352xf32>
    %61 = vector.shape_cast %60 : vector<1x4x352xf32> to vector<4x352xf32>
    %c20_66 = arith.constant 20 : index
    %c0_67 = arith.constant 0 : index
    %62 = vector.load %arg9[%c20_66, %c0_67] : memref<36x352xf32, #tpu.memory_space<vmem>>, vector<4x352xf32>
    tpu.vector_store %arg9[%c20_66, %c0_67], %61 {strides = array<i32>} : memref<36x352xf32, #tpu.memory_space<vmem>>, vector<4x352xf32>,
    %c0_68 = arith.constant 0 : index
    %c0_69 = arith.constant 0 : index
    %c111 = arith.constant 111 : index
    %63 = vector.load %arg1[%c0_68, %c0_69, %c111] : memref<1x4x506xf32, #tpu.memory_space<vmem>>, vector<1x4x352xf32>
    %64 = vector.shape_cast %63 : vector<1x4x352xf32> to vector<4x352xf32>
    %c24_70 = arith.constant 24 : index
    %c0_71 = arith.constant 0 : index
    %65 = vector.load %arg9[%c24_70, %c0_71] : memref<36x352xf32, #tpu.memory_space<vmem>>, vector<4x352xf32>
    tpu.vector_store %arg9[%c24_70, %c0_71], %64 {strides = array<i32>} : memref<36x352xf32, #tpu.memory_space<vmem>>, vector<4x352xf32>,
    %c0_72 = arith.constant 0 : index
    %c0_73 = arith.constant 0 : index
    %c113 = arith.constant 113 : index
    %66 = vector.load %arg1[%c0_72, %c0_73, %c113] : memref<1x4x506xf32, #tpu.memory_space<vmem>>, vector<1x4x352xf32>
    %67 = vector.shape_cast %66 : vector<1x4x352xf32> to vector<4x352xf32>
    %c28_74 = arith.constant 28 : index
    %c0_75 = arith.constant 0 : index
    %68 = vector.load %arg9[%c28_74, %c0_75] : memref<36x352xf32, #tpu.memory_space<vmem>>, vector<4x352xf32>
    tpu.vector_store %arg9[%c28_74, %c0_75], %67 {strides = array<i32>} : memref<36x352xf32, #tpu.memory_space<vmem>>, vector<4x352xf32>,
    %c0_76 = arith.constant 0 : index
    %c0_77 = arith.constant 0 : index
    %c115 = arith.constant 115 : index
    %69 = vector.load %arg1[%c0_76, %c0_77, %c115] : memref<1x4x506xf32, #tpu.memory_space<vmem>>, vector<1x4x352xf32>
    %70 = vector.shape_cast %69 : vector<1x4x352xf32> to vector<4x352xf32>
    %c32_78 = arith.constant 32 : index
    %c0_79 = arith.constant 0 : index
    %71 = vector.load %arg9[%c32_78, %c0_79] : memref<36x352xf32, #tpu.memory_space<vmem>>, vector<4x352xf32>
    tpu.vector_store %arg9[%c32_78, %c0_79], %70 {strides = array<i32>} : memref<36x352xf32, #tpu.memory_space<vmem>>, vector<4x352xf32>,
    %c1_80 = arith.constant 1 : index
    %c0_81 = arith.constant 0 : index
    %c0_82 = arith.constant 0 : index
    %72 = vector.load %arg3[%c1_80, %c0_81, %c0_82] : memref<3x32x36xf32, #tpu.memory_space<vmem>>, vector<1x32x36xf32>
    %73 = vector.shape_cast %72 : vector<1x32x36xf32> to vector<32x36xf32>
    %c0_83 = arith.constant 0 : index
    %c0_84 = arith.constant 0 : index
    %74 = vector.load %arg9[%c0_83, %c0_84] : memref<36x352xf32, #tpu.memory_space<vmem>>, vector<36x352xf32>
    %cst_85 = arith.constant dense<0.000000e+00> : vector<32x352xf32>
    %75 = tpu.matmul %73, %74, %cst_85 {dimension_numbers = #tpu.dot_dimension_numbers<[1], [0], [0], [1], [0, 0, 1, 1], [], []>} : vector<32x36xf32>, vector<36x352xf32>, vector<32x352xf32> -> vector<32x352xf32>
    %c2 = arith.constant 2 : index
    %c0_86 = arith.constant 0 : index
    %c0_87 = arith.constant 0 : index
    %76 = vector.load %arg7[%c2, %c0_86, %c0_87] : memref<6x32x1xf32, #tpu.memory_space<vmem>>, vector<1x32x1xf32>
    %77 = vector.shape_cast %76 : vector<1x32x1xf32> to vector<32x1xf32>
    %78 = vector.broadcast %77 : vector<32x1xf32> to vector<32x352xf32>
    %79 = arith.addf %75, %78 : vector<32x352xf32>
    %cst_88 = arith.constant 0.000000e+00 : f32
    %80 = vector.broadcast %cst_88 : f32 to vector<32x352xf32>
    %81 = arith.maximumf %79, %80 : vector<32x352xf32>
    %c64 = arith.constant 64 : index
    %c0_89 = arith.constant 0 : index
    %82 = vector.load %arg10[%c64, %c0_89] : memref<128x352xf32, #tpu.memory_space<vmem>>, vector<32x352xf32>
    tpu.vector_store %arg10[%c64, %c0_89], %81 {strides = array<i32>} : memref<128x352xf32, #tpu.memory_space<vmem>>, vector<32x352xf32>,
    %c0_90 = arith.constant 0 : index
    %c0_91 = arith.constant 0 : index
    %c0_92 = arith.constant 0 : index
    %83 = vector.load %arg1[%c0_90, %c0_91, %c0_92] : memref<1x4x506xf32, #tpu.memory_space<vmem>>, vector<1x4x352xf32>
    %84 = vector.shape_cast %83 : vector<1x4x352xf32> to vector<4x352xf32>
    %c0_93 = arith.constant 0 : index
    %c0_94 = arith.constant 0 : index
    %85 = vector.load %arg9[%c0_93, %c0_94] : memref<36x352xf32, #tpu.memory_space<vmem>>, vector<4x352xf32>
    tpu.vector_store %arg9[%c0_93, %c0_94], %84 {strides = array<i32>} : memref<36x352xf32, #tpu.memory_space<vmem>>, vector<4x352xf32>,
    %c0_95 = arith.constant 0 : index
    %c0_96 = arith.constant 0 : index
    %c3 = arith.constant 3 : index
    %86 = vector.load %arg1[%c0_95, %c0_96, %c3] : memref<1x4x506xf32, #tpu.memory_space<vmem>>, vector<1x4x352xf32>
    %87 = vector.shape_cast %86 : vector<1x4x352xf32> to vector<4x352xf32>
    %c4_97 = arith.constant 4 : index
    %c0_98 = arith.constant 0 : index
    %88 = vector.load %arg9[%c4_97, %c0_98] : memref<36x352xf32, #tpu.memory_space<vmem>>, vector<4x352xf32>
    tpu.vector_store %arg9[%c4_97, %c0_98], %87 {strides = array<i32>} : memref<36x352xf32, #tpu.memory_space<vmem>>, vector<4x352xf32>,
    %c0_99 = arith.constant 0 : index
    %c0_100 = arith.constant 0 : index
    %c6 = arith.constant 6 : index
    %89 = vector.load %arg1[%c0_99, %c0_100, %c6] : memref<1x4x506xf32, #tpu.memory_space<vmem>>, vector<1x4x352xf32>
    %90 = vector.shape_cast %89 : vector<1x4x352xf32> to vector<4x352xf32>
    %c8_101 = arith.constant 8 : index
    %c0_102 = arith.constant 0 : index
    %91 = vector.load %arg9[%c8_101, %c0_102] : memref<36x352xf32, #tpu.memory_space<vmem>>, vector<4x352xf32>
    tpu.vector_store %arg9[%c8_101, %c0_102], %90 {strides = array<i32>} : memref<36x352xf32, #tpu.memory_space<vmem>>, vector<4x352xf32>,
    %c0_103 = arith.constant 0 : index
    %c0_104 = arith.constant 0 : index
    %c66 = arith.constant 66 : index
    %92 = vector.load %arg1[%c0_103, %c0_104, %c66] : memref<1x4x506xf32, #tpu.memory_space<vmem>>, vector<1x4x352xf32>
    %93 = vector.shape_cast %92 : vector<1x4x352xf32> to vector<4x352xf32>
    %c12_105 = arith.constant 12 : index
    %c0_106 = arith.constant 0 : index
    %94 = vector.load %arg9[%c12_105, %c0_106] : memref<36x352xf32, #tpu.memory_space<vmem>>, vector<4x352xf32>
    tpu.vector_store %arg9[%c12_105, %c0_106], %93 {strides = array<i32>} : memref<36x352xf32, #tpu.memory_space<vmem>>, vector<4x352xf32>,
    %c16_107 = arith.constant 16 : index
    %c0_108 = arith.constant 0 : index
    %95 = vector.load %arg9[%c16_107, %c0_108] : memref<36x352xf32, #tpu.memory_space<vmem>>, vector<4x352xf32>
    tpu.vector_store %arg9[%c16_107, %c0_108], %1 {strides = array<i32>} : memref<36x352xf32, #tpu.memory_space<vmem>>, vector<4x352xf32>,
    %c0_109 = arith.constant 0 : index
    %c0_110 = arith.constant 0 : index
    %c72 = arith.constant 72 : index
    %96 = vector.load %arg1[%c0_109, %c0_110, %c72] : memref<1x4x506xf32, #tpu.memory_space<vmem>>, vector<1x4x352xf32>
    %97 = vector.shape_cast %96 : vector<1x4x352xf32> to vector<4x352xf32>
    %c20_111 = arith.constant 20 : index
    %c0_112 = arith.constant 0 : index
    %98 = vector.load %arg9[%c20_111, %c0_112] : memref<36x352xf32, #tpu.memory_space<vmem>>, vector<4x352xf32>
    tpu.vector_store %arg9[%c20_111, %c0_112], %97 {strides = array<i32>} : memref<36x352xf32, #tpu.memory_space<vmem>>, vector<4x352xf32>,
    %c0_113 = arith.constant 0 : index
    %c0_114 = arith.constant 0 : index
    %c132 = arith.constant 132 : index
    %99 = vector.load %arg1[%c0_113, %c0_114, %c132] : memref<1x4x506xf32, #tpu.memory_space<vmem>>, vector<1x4x352xf32>
    %100 = vector.shape_cast %99 : vector<1x4x352xf32> to vector<4x352xf32>
    %c24_115 = arith.constant 24 : index
    %c0_116 = arith.constant 0 : index
    %101 = vector.load %arg9[%c24_115, %c0_116] : memref<36x352xf32, #tpu.memory_space<vmem>>, vector<4x352xf32>
    tpu.vector_store %arg9[%c24_115, %c0_116], %100 {strides = array<i32>} : memref<36x352xf32, #tpu.memory_space<vmem>>, vector<4x352xf32>,
    %c0_117 = arith.constant 0 : index
    %c0_118 = arith.constant 0 : index
    %c135 = arith.constant 135 : index
    %102 = vector.load %arg1[%c0_117, %c0_118, %c135] : memref<1x4x506xf32, #tpu.memory_space<vmem>>, vector<1x4x352xf32>
    %103 = vector.shape_cast %102 : vector<1x4x352xf32> to vector<4x352xf32>
    %c28_119 = arith.constant 28 : index
    %c0_120 = arith.constant 0 : index
    %104 = vector.load %arg9[%c28_119, %c0_120] : memref<36x352xf32, #tpu.memory_space<vmem>>, vector<4x352xf32>
    tpu.vector_store %arg9[%c28_119, %c0_120], %103 {strides = array<i32>} : memref<36x352xf32, #tpu.memory_space<vmem>>, vector<4x352xf32>,
    %c0_121 = arith.constant 0 : index
    %c0_122 = arith.constant 0 : index
    %c138 = arith.constant 138 : index
    %105 = vector.load %arg1[%c0_121, %c0_122, %c138] : memref<1x4x506xf32, #tpu.memory_space<vmem>>, vector<1x4x352xf32>
    %106 = vector.shape_cast %105 : vector<1x4x352xf32> to vector<4x352xf32>
    %c32_123 = arith.constant 32 : index
    %c0_124 = arith.constant 0 : index
    %107 = vector.load %arg9[%c32_123, %c0_124] : memref<36x352xf32, #tpu.memory_space<vmem>>, vector<4x352xf32>
    tpu.vector_store %arg9[%c32_123, %c0_124], %106 {strides = array<i32>} : memref<36x352xf32, #tpu.memory_space<vmem>>, vector<4x352xf32>,
    %c2_125 = arith.constant 2 : index
    %c0_126 = arith.constant 0 : index
    %c0_127 = arith.constant 0 : index
    %108 = vector.load %arg3[%c2_125, %c0_126, %c0_127] : memref<3x32x36xf32, #tpu.memory_space<vmem>>, vector<1x32x36xf32>
    %109 = vector.shape_cast %108 : vector<1x32x36xf32> to vector<32x36xf32>
    %c0_128 = arith.constant 0 : index
    %c0_129 = arith.constant 0 : index
    %110 = vector.load %arg9[%c0_128, %c0_129] : memref<36x352xf32, #tpu.memory_space<vmem>>, vector<36x352xf32>
    %cst_130 = arith.constant dense<0.000000e+00> : vector<32x352xf32>
    %111 = tpu.matmul %109, %110, %cst_130 {dimension_numbers = #tpu.dot_dimension_numbers<[1], [0], [0], [1], [0, 0, 1, 1], [], []>} : vector<32x36xf32>, vector<36x352xf32>, vector<32x352xf32> -> vector<32x352xf32>
    %c3_131 = arith.constant 3 : index
    %c0_132 = arith.constant 0 : index
    %c0_133 = arith.constant 0 : index
    %112 = vector.load %arg7[%c3_131, %c0_132, %c0_133] : memref<6x32x1xf32, #tpu.memory_space<vmem>>, vector<1x32x1xf32>
    %113 = vector.shape_cast %112 : vector<1x32x1xf32> to vector<32x1xf32>
    %114 = vector.broadcast %113 : vector<32x1xf32> to vector<32x352xf32>
    %115 = arith.addf %111, %114 : vector<32x352xf32>
    %cst_134 = arith.constant 0.000000e+00 : f32
    %116 = vector.broadcast %cst_134 : f32 to vector<32x352xf32>
    %117 = arith.maximumf %115, %116 : vector<32x352xf32>
    %c96 = arith.constant 96 : index
    %c0_135 = arith.constant 0 : index
    %118 = vector.load %arg10[%c96, %c0_135] : memref<128x352xf32, #tpu.memory_space<vmem>>, vector<32x352xf32>
    tpu.vector_store %arg10[%c96, %c0_135], %117 {strides = array<i32>} : memref<128x352xf32, #tpu.memory_space<vmem>>, vector<32x352xf32>,
    %c0_136 = arith.constant 0 : index
    %c0_137 = arith.constant 0 : index
    %119 = vector.load %arg5[%c0_136, %c0_137] : memref<32x128xf32, #tpu.memory_space<vmem>>, vector<32x128xf32>
    %c0_138 = arith.constant 0 : index
    %c0_139 = arith.constant 0 : index
    %120 = vector.load %arg10[%c0_138, %c0_139] : memref<128x352xf32, #tpu.memory_space<vmem>>, vector<128x352xf32>
    %cst_140 = arith.constant dense<0.000000e+00> : vector<32x352xf32>
    %121 = tpu.matmul %119, %120, %cst_140 {dimension_numbers = #tpu.dot_dimension_numbers<[1], [0], [0], [1], [0, 0, 1, 1], [], []>} : vector<32x128xf32>, vector<128x352xf32>, vector<32x352xf32> -> vector<32x352xf32>
    %cst_141 = arith.constant dense<0.000000e+00> : vector<4xf32>
    %122 = vector.multi_reduction <add>, %1, %cst_141 [1] : vector<4x352xf32> to vector<4xf32>
    %123 = vector.shape_cast %122 : vector<4xf32> to vector<4x1xf32>
    %cst_142 = arith.constant 3.906250e-03 : f32
    %124 = vector.broadcast %cst_142 : f32 to vector<4x1xf32>
    %125 = arith.mulf %123, %124 : vector<4x1xf32>
    %c0_143 = arith.constant 0 : index
    %c0_144 = arith.constant 0 : index
    %126 = vector.load %arg4[%c0_143, %c0_144] : memref<32x4xf32, #tpu.memory_space<vmem>>, vector<32x4xf32>
    %cst_145 = arith.constant dense<0.000000e+00> : vector<32x1xf32>
    %127 = tpu.matmul %126, %125, %cst_145 {dimension_numbers = #tpu.dot_dimension_numbers<[1], [0], [0], [1], [0, 0, 1, 1], [], []>} : vector<32x4xf32>, vector<4x1xf32>, vector<32x1xf32> -> vector<32x1xf32>
    %c4_146 = arith.constant 4 : index
    %c0_147 = arith.constant 0 : index
    %c0_148 = arith.constant 0 : index
    %128 = vector.load %arg7[%c4_146, %c0_147, %c0_148] : memref<6x32x1xf32, #tpu.memory_space<vmem>>, vector<1x32x1xf32>
    %129 = vector.shape_cast %128 : vector<1x32x1xf32> to vector<32x1xf32>
    %130 = arith.addf %127, %129 : vector<32x1xf32>
    %cst_149 = arith.constant 0.000000e+00 : f32
    %131 = vector.broadcast %cst_149 : f32 to vector<32x1xf32>
    %132 = arith.maximumf %130, %131 : vector<32x1xf32>
    %c0_150 = arith.constant 0 : index
    %c0_151 = arith.constant 0 : index
    %133 = vector.load %arg6[%c0_150, %c0_151] : memref<32x32xf32, #tpu.memory_space<vmem>>, vector<32x32xf32>
    %cst_152 = arith.constant dense<0.000000e+00> : vector<32x1xf32>
    %134 = tpu.matmul %133, %132, %cst_152 {dimension_numbers = #tpu.dot_dimension_numbers<[1], [0], [0], [1], [0, 0, 1, 1], [], []>} : vector<32x32xf32>, vector<32x1xf32>, vector<32x1xf32> -> vector<32x1xf32>
    %135 = vector.broadcast %134 : vector<32x1xf32> to vector<32x352xf32>
    %136 = arith.addf %121, %135 : vector<32x352xf32>
    %c5 = arith.constant 5 : index
    %c0_153 = arith.constant 0 : index
    %c0_154 = arith.constant 0 : index
    %137 = vector.load %arg7[%c5, %c0_153, %c0_154] : memref<6x32x1xf32, #tpu.memory_space<vmem>>, vector<1x32x1xf32>
    %138 = vector.shape_cast %137 : vector<1x32x1xf32> to vector<32x1xf32>
    %139 = vector.broadcast %138 : vector<32x1xf32> to vector<32x352xf32>
    %140 = arith.addf %136, %139 : vector<32x352xf32>
    %cst_155 = arith.constant 0.000000e+00 : f32
    %141 = vector.broadcast %cst_155 : f32 to vector<32x352xf32>
    %142 = arith.maximumf %140, %141 : vector<32x352xf32>
    %143 = vector.shape_cast %142 : vector<32x352xf32> to vector<1x32x352xf32>
    %c0_156 = arith.constant 0 : index
    %c0_157 = arith.constant 0 : index
    %c0_158 = arith.constant 0 : index
    %144 = vector.load %arg8[%c0_156, %c0_157, %c0_158] : memref<1x32x352xf32, #tpu.memory_space<vmem>>, vector<1x32x352xf32>
    tpu.vector_store %arg8[%c0_156, %c0_157, %c0_158], %143 {strides = array<i32>} : memref<1x32x352xf32, #tpu.memory_space<vmem>>, vector<1x32x352xf32>,
    return
  }
  func.func @transform_0(%arg0: i32) -> (i32, i32, i32) {
    %c0_i32 = arith.constant 0 : i32
    %c0_i32_0 = arith.constant 0 : i32
    %c0_i32_1 = arith.constant 0 : i32
    return %arg0, %c0_i32, %c0_i32_0 : i32, i32, i32
  }
  func.func @transform_1(%arg0: i32) -> (i32, i32) {
    %c0_i32 = arith.constant 0 : i32
    %c0_i32_0 = arith.constant 0 : i32
    %c0_i32_1 = arith.constant 0 : i32
    return %c0_i32, %c0_i32_0 : i32, i32
  }
  func.func @transform_2(%arg0: i32) -> (i32, i32, i32) {
    %c0_i32 = arith.constant 0 : i32
    %c0_i32_0 = arith.constant 0 : i32
    %c0_i32_1 = arith.constant 0 : i32
    %c0_i32_2 = arith.constant 0 : i32
    return %c0_i32, %c0_i32_0, %c0_i32_1 : i32, i32, i32
  }
  func.func @transform_3(%arg0: i32) -> (i32, i32) {
    %c0_i32 = arith.constant 0 : i32
    %c0_i32_0 = arith.constant 0 : i32
    %c0_i32_1 = arith.constant 0 : i32
    return %c0_i32, %c0_i32_0 : i32, i32
  }
  func.func @transform_4(%arg0: i32) -> (i32, i32) {
    %c0_i32 = arith.constant 0 : i32
    %c0_i32_0 = arith.constant 0 : i32
    %c0_i32_1 = arith.constant 0 : i32
    return %c0_i32, %c0_i32_0 : i32, i32
  }
  func.func @transform_5(%arg0: i32) -> (i32, i32) {
    %c0_i32 = arith.constant 0 : i32
    %c0_i32_0 = arith.constant 0 : i32
    %c0_i32_1 = arith.constant 0 : i32
    return %c0_i32, %c0_i32_0 : i32, i32
  }
  func.func @transform_6(%arg0: i32) -> (i32, i32, i32) {
    %c0_i32 = arith.constant 0 : i32
    %c0_i32_0 = arith.constant 0 : i32
    %c0_i32_1 = arith.constant 0 : i32
    %c0_i32_2 = arith.constant 0 : i32
    return %c0_i32, %c0_i32_0, %c0_i32_1 : i32, i32, i32
  }
  func.func @transform_7(%arg0: i32) -> (i32, i32, i32) {
    %c0_i32 = arith.constant 0 : i32
    %c0_i32_0 = arith.constant 0 : i32
    %c0_i32_1 = arith.constant 0 : i32
    return %arg0, %c0_i32, %c0_i32_0 : i32, i32, i32
  }
}

</mosaic_0001>

<llo_original>
// kernel: tpu_custom_call.1
$region0: #{tpu_custom_call.1}
  #allocation0 [shape = 'u32[]', space=smem, size = 0x4, offset = 0x4, fixed_abs, tag = 'smem constant byte address 0x4 - core index']
  #allocation1 [shape = 'u32[144,128]{1,0:T(1,128)}', space=vmem, size = 0x12000, scoped, tag = 'internal scratch']
  #allocation2 [shape = 'f32[36,352]{1,0:T(8,128)}', space=vmem, size = 0xf000, scoped, tag = 'scratch operand']
  #allocation3 [shape = 'f32[128,352]{1,0:T(8,128)}', space=vmem, size = 0x30000, scoped, tag = 'scratch operand']
  %s0 = inlined_call_operand.hbm [shape: f32[2,4,506], index: 0, kind: input, shape index: {}]
  %s1 = inlined_call_operand.hbm [shape: f32[32,4], index: 1, kind: input, shape index: {}]
  %s2 = inlined_call_operand.hbm [shape: f32[3,32,36], index: 2, kind: input, shape index: {}]
  %s3 = inlined_call_operand.hbm [shape: f32[32,4], index: 3, kind: input, shape index: {}]
  %s4 = inlined_call_operand.hbm [shape: f32[32,128], index: 4, kind: input, shape index: {}]
  %s5 = inlined_call_operand.hbm [shape: f32[32,32], index: 5, kind: input, shape index: {}]
  %s6 = inlined_call_operand.hbm [shape: f32[6,32,1], index: 6, kind: input, shape index: {}]
  %s7 = inlined_call_operand.hbm [shape: f32[2,32,352], index: 7, kind: output, shape index: {}]
  %s8 = sld [smem:[#allocation0]]
  $region89: #{tpu_custom_call.1} parent=0
    _
  %s10 = ssub.s32 1, %s8
  %s11 = scalar_select 0, %s10, %s8
  $region1: #{tpu_custom_call.1} parent=0
    #allocation4 [shape = 'u8[16384]{0}', space=vmem, size = 0x4000, scoped, tag = 'input window, operand 0']
    #allocation5 [shape = 's32[2]{0}', space=sflag, size = 0x8, scoped, tag = 'scoped memory for tpu_custom_call.1']
    #allocation6 [shape = 's32[2]{0}', space=sflag, size = 0x8, scoped, tag = 'scoped memory for tpu_custom_call.1']
    #allocation7 [shape = 'u8[16384]{0}', space=vmem, size = 0x4000, scoped, tag = 'input window, operand 1, single buffered']
    #allocation8 [shape = 's32[1]{0}', space=sflag, size = 0x4, scoped, tag = 'scoped memory for tpu_custom_call.1']
    #allocation9 [shape = 'u8[49152]{0}', space=vmem, size = 0xc000, scoped, tag = 'input window, operand 2, single buffered']
    #allocation10 [shape = 'u8[16384]{0}', space=vmem, size = 0x4000, scoped, tag = 'input window, operand 3, single buffered']
    #allocation11 [shape = 's32[1]{0}', space=sflag, size = 0x4, scoped, tag = 'scoped memory for tpu_custom_call.1']
    #allocation12 [shape = 'u8[16384]{0}', space=vmem, size = 0x4000, scoped, tag = 'input window, operand 4, single buffered']
    #allocation13 [shape = 'u8[16384]{0}', space=vmem, size = 0x4000, scoped, tag = 'input window, operand 5, single buffered']
    #allocation14 [shape = 's32[1]{0}', space=sflag, size = 0x4, scoped, tag = 'scoped memory for tpu_custom_call.1']
    #allocation15 [shape = 'u8[98304]{0}', space=vmem, size = 0x18000, scoped, tag = 'input window, operand 6, single buffered']
    #allocation16 [shape = 'u8[98304]{0}', space=vmem, size = 0x18000, scoped, tag = 'output window, operand 0']
    %12 = vsyncpa [#allocation5], 0
    %s13 = scalar_lea.sflag [#allocation5], 1
    %14 = vsyncpa %s13, 0
    %15 = vsyncpa [#allocation8], 0
    %16 = vsyncpa [#allocation11], 0
    %17 = vsyncpa [#allocation14], 0
    %18 = vsyncpa [#allocation6], 0
    %s19 = scalar_lea.sflag [#allocation6], 1
    %20 = vsyncpa %s19, 0
    loop: start=0, step=1, limit=4
    $region2: #{tpu_custom_call.1} parent=1 // loop_pre_header
      _
    $region3: #{tpu_custom_call.1} parent=1 // loop_header
      %s22 = sphi 0, %s26
      %p23 = scmp.ge.s32.totalorder %s22, 4
      %s32 = sphi 0, %s34
      %s35 = sphi 0, %s32
      %s36 = sphi 0, %s35
      %s52 = sphi 0, %s36
      %s56 = sphi 0, %s56
      %s58 = sphi 0, %s56
      %s59 = sphi 0, %s58
      %s73 = sphi 0, %s59
      %s77 = sphi 0, %s77
      %s79 = sphi 0, %s77
      %s80 = sphi 0, %s79
      %s94 = sphi 0, %s80
      %s98 = sphi 0, %s98
      %s100 = sphi 0, %s98
      %s101 = sphi 0, %s100
      %s115 = sphi 0, %s101
      %s119 = sphi 0, %s119
      %s121 = sphi 0, %s119
      %s122 = sphi 0, %s121
      %s136 = sphi 0, %s122
      %s140 = sphi 0, %s140
      %s142 = sphi 0, %s140
      %s143 = sphi 0, %s142
      %s157 = sphi 0, %s143
      %s161 = sphi 0, %s161
      %s163 = sphi 0, %s161
      %s164 = sphi 0, %s163
      %s178 = sphi 0, %s164
      %s184 = sphi 0, %s186
      %s187 = sphi 0, %s184
      %s188 = sphi 0, %s187
      %s204 = sphi 0, %s188
    $region4: #{tpu_custom_call.1} parent=1 // loop_header_branch
      %25 = sbr.rel (%p23) target = $region8
    $region5: #{tpu_custom_call.1} parent=1 // loop_body
      %s27 = ssub.s32 %s22, 1
      %s28 = ssub.s32 %s22, 2
      %s29 = sadd.s32 %s22, 1
      %s30 = ssub.s32 %s22, %s29
      %p31 = scmp.eq.s32.totalorder %s30, 0
      %s33 = sadd.s32 %s32, 1
      %s34 = scalar_select %p31, %s32, %s33
      %p37 = pneg %p31
      %p38 = scmp.eq.s32.totalorder %s22, 1
      %p39 = por %p37, %p38
      %p40 = scmp.ne.s32.totalorder %s32, %s35
      %p41 = scmp.eq.s32.totalorder %s22, 0
      %p42 = por %p40, %p41
      %p43 = scmp.ne.s32.totalorder %s32, %s35
      %p44 = scmp.eq.s32.totalorder %s27, 1
      %p45 = por %p43, %p44
      %p46 = scmp.ne.s32.totalorder %s35, %s36
      %p47 = scmp.eq.s32.totalorder %s27, 0
      %p48 = por %p46, %p47
      %p49 = scmp.ne.s32.totalorder %s35, %s36
      %p50 = scmp.eq.s32.totalorder %s28, 1
      %p51 = por %p49, %p50
      %p53 = scmp.ne.s32.totalorder %s36, %s52
      %p54 = scmp.eq.s32.totalorder %s28, 0
      %p55 = por %p53, %p54
      %s57 = sadd.s32 %s56, 1
      %p60 = scmp.eq.s32.totalorder %s22, 1
      %p61 = scmp.ne.s32.totalorder %s56, %s58
      %p62 = scmp.eq.s32.totalorder %s22, 0
      %p63 = por %p61, %p62
      %p64 = scmp.ne.s32.totalorder %s56, %s58
      %p65 = scmp.eq.s32.totalorder %s27, 1
      %p66 = por %p64, %p65
      %p67 = scmp.ne.s32.totalorder %s58, %s59
      %p68 = scmp.eq.s32.totalorder %s27, 0
      %p69 = por %p67, %p68
      %p70 = scmp.ne.s32.totalorder %s58, %s59
      %p71 = scmp.eq.s32.totalorder %s28, 1
      %p72 = por %p70, %p71
      %p74 = scmp.ne.s32.totalorder %s59, %s73
      %p75 = scmp.eq.s32.totalorder %s28, 0
      %p76 = por %p74, %p75
      %s78 = sadd.s32 %s77, 1
      %p81 = scmp.eq.s32.totalorder %s22, 1
      %p82 = scmp.ne.s32.totalorder %s77, %s79
      %p83 = scmp.eq.s32.totalorder %s22, 0
      %p84 = por %p82, %p83
      %p85 = scmp.ne.s32.totalorder %s77, %s79
      %p86 = scmp.eq.s32.totalorder %s27, 1
      %p87 = por %p85, %p86
      %p88 = scmp.ne.s32.totalorder %s79, %s80
      %p89 = scmp.eq.s32.totalorder %s27, 0
      %p90 = por %p88, %p89
      %p91 = scmp.ne.s32.totalorder %s79, %s80
      %p92 = scmp.eq.s32.totalorder %s28, 1
      %p93 = por %p91, %p92
      %p95 = scmp.ne.s32.totalorder %s80, %s94
      %p96 = scmp.eq.s32.totalorder %s28, 0
      %p97 = por %p95, %p96
      %s99 = sadd.s32 %s98, 1
      %p102 = scmp.eq.s32.totalorder %s22, 1
      %p103 = scmp.ne.s32.totalorder %s98, %s100
      %p104 = scmp.eq.s32.totalorder %s22, 0
      %p105 = por %p103, %p104
      %p106 = scmp.ne.s32.totalorder %s98, %s100
      %p107 = scmp.eq.s32.totalorder %s27, 1
      %p108 = por %p106, %p107
      %p109 = scmp.ne.s32.totalorder %s100, %s101
      %p110 = scmp.eq.s32.totalorder %s27, 0
      %p111 = por %p109, %p110
      %p112 = scmp.ne.s32.totalorder %s100, %s101
      %p113 = scmp.eq.s32.totalorder %s28, 1
      %p114 = por %p112, %p113
      %p116 = scmp.ne.s32.totalorder %s101, %s115
      %p117 = scmp.eq.s32.totalorder %s28, 0
      %p118 = por %p116, %p117
      %s120 = sadd.s32 %s119, 1
      %p123 = scmp.eq.s32.totalorder %s22, 1
      %p124 = scmp.ne.s32.totalorder %s119, %s121
      %p125 = scmp.eq.s32.totalorder %s22, 0
      %p126 = por %p124, %p125
      %p127 = scmp.ne.s32.totalorder %s119, %s121
      %p128 = scmp.eq.s32.totalorder %s27, 1
      %p129 = por %p127, %p128
      %p130 = scmp.ne.s32.totalorder %s121, %s122
      %p131 = scmp.eq.s32.totalorder %s27, 0
      %p132 = por %p130, %p131
      %p133 = scmp.ne.s32.totalorder %s121, %s122
      %p134 = scmp.eq.s32.totalorder %s28, 1
      %p135 = por %p133, %p134
      %p137 = scmp.ne.s32.totalorder %s122, %s136
      %p138 = scmp.eq.s32.totalorder %s28, 0
      %p139 = por %p137, %p138
      %s141 = sadd.s32 %s140, 1
      %p144 = scmp.eq.s32.totalorder %s22, 1
      %p145 = scmp.ne.s32.totalorder %s140, %s142
      %p146 = scmp.eq.s32.totalorder %s22, 0
      %p147 = por %p145, %p146
      %p148 = scmp.ne.s32.totalorder %s140, %s142
      %p149 = scmp.eq.s32.totalorder %s27, 1
      %p150 = por %p148, %p149
      %p151 = scmp.ne.s32.totalorder %s142, %s143
      %p152 = scmp.eq.s32.totalorder %s27, 0
      %p153 = por %p151, %p152
      %p154 = scmp.ne.s32.totalorder %s142, %s143
      %p155 = scmp.eq.s32.totalorder %s28, 1
      %p156 = por %p154, %p155
      %p158 = scmp.ne.s32.totalorder %s143, %s157
      %p159 = scmp.eq.s32.totalorder %s28, 0
      %p160 = por %p158, %p159
      %s162 = sadd.s32 %s161, 1
      %p165 = scmp.eq.s32.totalorder %s22, 1
      %p166 = scmp.ne.s32.totalorder %s161, %s163
      %p167 = scmp.eq.s32.totalorder %s22, 0
      %p168 = por %p166, %p167
      %p169 = scmp.ne.s32.totalorder %s161, %s163
      %p170 = scmp.eq.s32.totalorder %s27, 1
      %p171 = por %p169, %p170
      %p172 = scmp.ne.s32.totalorder %s163, %s164
      %p173 = scmp.eq.s32.totalorder %s27, 0
      %p174 = por %p172, %p173
      %p175 = scmp.ne.s32.totalorder %s163, %s164
      %p176 = scmp.eq.s32.totalorder %s28, 1
      %p177 = por %p175, %p176
      %p179 = scmp.ne.s32.totalorder %s164, %s178
      %p180 = scmp.eq.s32.totalorder %s28, 0
      %p181 = por %p179, %p180
      %s182 = ssub.s32 %s22, %s29
      %p183 = scmp.eq.s32.totalorder %s182, 0
      %s185 = sadd.s32 %s184, 1
      %s186 = scalar_select %p183, %s184, %s185
      %p189 = pneg %p183
      %p190 = scmp.eq.s32.totalorder %s22, 1
      %p191 = por %p189, %p190
      %p192 = scmp.ne.s32.totalorder %s184, %s187
      %p193 = scmp.eq.s32.totalorder %s22, 0
      %p194 = por %p192, %p193
      %p195 = scmp.ne.s32.totalorder %s184, %s187
      %p196 = scmp.eq.s32.totalorder %s27, 1
      %p197 = por %p195, %p196
      %p198 = scmp.ne.s32.totalorder %s187, %s188
      %p199 = scmp.eq.s32.totalorder %s27, 0
      %p200 = por %p198, %p199
      %p201 = scmp.ne.s32.totalorder %s187, %s188
      %p202 = scmp.eq.s32.totalorder %s28, 1
      %p203 = por %p201, %p202
      %p205 = scmp.ne.s32.totalorder %s188, %s204
      %p206 = scmp.eq.s32.totalorder %s28, 0
      %p207 = por %p205, %p206
      %p208 = scmp.le.s32.totalorder 1, %s22
      %p209 = scmp.lt.s32.totalorder %s22, 3
      %p210 = pnand %p208, %p209
      %p211 = pneg %p210
      // Predicated region
      $region9: #{tpu_custom_call.1} parent=5 // pred_check
        _
      $region10: #{tpu_custom_call.1} parent=5 // pred_check_branch
        %213 = sbr.rel (%p210) target = $region12
      $region11: #{tpu_custom_call.1} parent=5 // pred_region
        %s214 = ssub.s32 %s22, 1
        // Predicated region
        $region13: #{tpu_custom_call.1} parent=11 // pred_check
          %p215 = pneg %p69
        $region14: #{tpu_custom_call.1} parent=11 // pred_check_branch
          %217 = sbr.rel (%p215) target = $region16
        $region15: #{tpu_custom_call.1} parent=11 // pred_region
          %s219 = ssub.s32 512, 512
          %220 = vsyncadd [#allocation8], %s219
          %s221 = sshll.u32 [#allocation7], 4
          %s222 = int_to_ptr.vmem [resolvable:$true] %s221
          %227 = dma.hbm_to_vmem [thread:$0]  %s1, 512, %s222, [#allocation8], 128, 128, 8
        $region16: #{tpu_custom_call.1} parent=11 // pred_fallthru
          _
        // Predicated region
        $region17: #{tpu_custom_call.1} parent=11 // pred_check
          %p228 = pneg %p90
        $region18: #{tpu_custom_call.1} parent=11 // pred_check_branch
          %230 = sbr.rel (%p228) target = $region20
        $region19: #{tpu_custom_call.1} parent=11 // pred_region
          %s232 = ssub.s32 1536, 1536
          %233 = vsyncadd [#allocation8], %s232
          %s234 = sshll.u32 [#allocation9], 4
          %s235 = int_to_ptr.vmem [resolvable:$true] %s234
          %240 = dma.hbm_to_vmem [thread:$0]  %s2, 1536, %s235, [#allocation8], 128, 128, 8
        $region20: #{tpu_custom_call.1} parent=11 // pred_fallthru
          _
        // Predicated region
        $region21: #{tpu_custom_call.1} parent=11 // pred_check
          %p241 = pneg %p111
        $region22: #{tpu_custom_call.1} parent=11 // pred_check_branch
          %243 = sbr.rel (%p241) target = $region24
        $region23: #{tpu_custom_call.1} parent=11 // pred_region
          %s245 = ssub.s32 512, 512
          %246 = vsyncadd [#allocation11], %s245
          %s247 = sshll.u32 [#allocation10], 4
          %s248 = int_to_ptr.vmem [resolvable:$true] %s247
          %253 = dma.hbm_to_vmem [thread:$0]  %s3, 512, %s248, [#allocation11], 128, 128, 8
        $region24: #{tpu_custom_call.1} parent=11 // pred_fallthru
          _
        // Predicated region
        $region25: #{tpu_custom_call.1} parent=11 // pred_check
          %p254 = pneg %p132
        $region26: #{tpu_custom_call.1} parent=11 // pred_check_branch
          %256 = sbr.rel (%p254) target = $region28
        $region27: #{tpu_custom_call.1} parent=11 // pred_region
          %s258 = ssub.s32 512, 512
          %259 = vsyncadd [#allocation11], %s258
          %s260 = sshll.u32 [#allocation12], 4
          %s261 = int_to_ptr.vmem [resolvable:$true] %s260
          %266 = dma.hbm_to_vmem [thread:$0]  %s4, 512, %s261, [#allocation11], 128, 128, 8
        $region28: #{tpu_custom_call.1} parent=11 // pred_fallthru
          _
        // Predicated region
        $region29: #{tpu_custom_call.1} parent=11 // pred_check
          %p267 = pneg %p153
        $region30: #{tpu_custom_call.1} parent=11 // pred_check_branch
          %269 = sbr.rel (%p267) target = $region32
        $region31: #{tpu_custom_call.1} parent=11 // pred_region
          %s271 = ssub.s32 512, 512
          %272 = vsyncadd [#allocation14], %s271
          %s273 = sshll.u32 [#allocation13], 4
          %s274 = int_to_ptr.vmem [resolvable:$true] %s273
          %279 = dma.hbm_to_vmem [thread:$0]  %s5, 512, %s274, [#allocation14], 128, 128, 8
        $region32: #{tpu_custom_call.1} parent=11 // pred_fallthru
          _
        // Predicated region
        $region33: #{tpu_custom_call.1} parent=11 // pred_check
          %p280 = pneg %p174
        $region34: #{tpu_custom_call.1} parent=11 // pred_check_branch
          %282 = sbr.rel (%p280) target = $region36
        $region35: #{tpu_custom_call.1} parent=11 // pred_region
          %s284 = ssub.s32 3072, 3072
          %285 = vsyncadd [#allocation14], %s284
          %s286 = sshll.u32 [#allocation15], 4
          %s287 = int_to_ptr.vmem [resolvable:$true] %s286
          %292 = dma.hbm_to_vmem [thread:$0]  %s6, 3072, %s287, [#allocation14], 128, 128, 8
        $region36: #{tpu_custom_call.1} parent=11 // pred_fallthru
          _
      $region12: #{tpu_custom_call.1} parent=5 // pred_fallthru
        _
      %p293 = scmp.lt.s32.totalorder %s22, 2
      // Predicated region
      $region37: #{tpu_custom_call.1} parent=5 // pred_check
        %p294 = pneg %p293
      $region38: #{tpu_custom_call.1} parent=5 // pred_check_branch
        %296 = sbr.rel (%p294) target = $region40
      $region39: #{tpu_custom_call.1} parent=5 // pred_region
        // Predicated region
        $region41: #{tpu_custom_call.1} parent=39 // pred_check
          %p297 = pneg %p42
        $region42: #{tpu_custom_call.1} parent=39 // pred_check_branch
          %299 = sbr.rel (%p297) target = $region44
        $region43: #{tpu_custom_call.1} parent=39 // pred_region
          %s300 = sand.u32 %s32, 1
          %s301 = scalar_lea.sflag [#allocation5], %s300
          %s302 = sand.u32 %s32, 1
          %s303 = smul.addr %s302, 16
          %s304 = scalar_lea.vmem [#allocation4], %s303
          %s306 = ssub.s32 256, 256
          %307 = vsyncadd %s301, %s306
          %s308 = smul.addr %s22, 4
          %s309 = smul.addr %s308, 64
          %s310 = scalar_lea.hbm %s0, %s309
          %s312 = sshll.u32 %s304, 4
          %s313 = int_to_ptr.vmem [resolvable:$true] %s312
          %315 = dma.hbm_to_vmem [thread:$0]  %s310, 256, %s313, %s301
        $region44: #{tpu_custom_call.1} parent=39 // pred_fallthru
          _
      $region40: #{tpu_custom_call.1} parent=5 // pred_fallthru
        _
      %p316 = scmp.le.s32.totalorder 1, %s22
      %p317 = scmp.lt.s32.totalorder %s22, 3
      %p318 = pnand %p316, %p317
      %p319 = pneg %p318
      // Predicated region
      $region45: #{tpu_custom_call.1} parent=5 // pred_check
        _
      $region46: #{tpu_custom_call.1} parent=5 // pred_check_branch
        %321 = sbr.rel (%p318) target = $region48
      $region47: #{tpu_custom_call.1} parent=5 // pred_region
        %s322 = ssub.s32 %s22, 1
        %s323 = sand.u32 %s35, 1
        %s324 = scalar_lea.sflag [#allocation5], %s323
        %s325 = sand.u32 %s35, 1
        %s326 = smul.addr %s325, 16
        %s327 = scalar_lea.vmem [#allocation4], %s326
        // Predicated region
        $region49: #{tpu_custom_call.1} parent=47 // pred_check
          %p328 = pneg %p48
        $region50: #{tpu_custom_call.1} parent=47 // pred_check_branch
          %330 = sbr.rel (%p328) target = $region52
        $region51: #{tpu_custom_call.1} parent=47 // pred_region
          %331 = dma.done %s324, 256
        $region52: #{tpu_custom_call.1} parent=47 // pred_fallthru
          _
        // Predicated region
        $region53: #{tpu_custom_call.1} parent=47 // pred_check
          %p332 = pneg %p69
        $region54: #{tpu_custom_call.1} parent=47 // pred_check_branch
          %334 = sbr.rel (%p332) target = $region56
        $region55: #{tpu_custom_call.1} parent=47 // pred_region
          %335 = dma.done [#allocation8], 512
        $region56: #{tpu_custom_call.1} parent=47 // pred_fallthru
          _
        // Predicated region
        $region57: #{tpu_custom_call.1} parent=47 // pred_check
          %p336 = pneg %p90
        $region58: #{tpu_custom_call.1} parent=47 // pred_check_branch
          %338 = sbr.rel (%p336) target = $region60
        $region59: #{tpu_custom_call.1} parent=47 // pred_region
          %339 = dma.done [#allocation8], 1536
        $region60: #{tpu_custom_call.1} parent=47 // pred_fallthru
          _
        // Predicated region
        $region61: #{tpu_custom_call.1} parent=47 // pred_check
          %p340 = pneg %p111
        $region62: #{tpu_custom_call.1} parent=47 // pred_check_branch
          %342 = sbr.rel (%p340) target = $region64
        $region63: #{tpu_custom_call.1} parent=47 // pred_region
          %343 = dma.done [#allocation11], 512
        $region64: #{tpu_custom_call.1} parent=47 // pred_fallthru
          _
        // Predicated region
        $region65: #{tpu_custom_call.1} parent=47 // pred_check
          %p344 = pneg %p132
        $region66: #{tpu_custom_call.1} parent=47 // pred_check_branch
          %346 = sbr.rel (%p344) target = $region68
        $region67: #{tpu_custom_call.1} parent=47 // pred_region
          %347 = dma.done [#allocation11], 512
        $region68: #{tpu_custom_call.1} parent=47 // pred_fallthru
          _
        // Predicated region
        $region69: #{tpu_custom_call.1} parent=47 // pred_check
          %p348 = pneg %p153
        $region70: #{tpu_custom_call.1} parent=47 // pred_check_branch
          %350 = sbr.rel (%p348) target = $region72
        $region71: #{tpu_custom_call.1} parent=47 // pred_region
          %351 = dma.done [#allocation14], 512
        $region72: #{tpu_custom_call.1} parent=47 // pred_fallthru
          _
        // Predicated region
        $region73: #{tpu_custom_call.1} parent=47 // pred_check
          %p352 = pneg %p174
        $region74: #{tpu_custom_call.1} parent=47 // pred_check_branch
          %354 = sbr.rel (%p352) target = $region76
        $region75: #{tpu_custom_call.1} parent=47 // pred_region
          %355 = dma.done [#allocation14], 3072
        $region76: #{tpu_custom_call.1} parent=47 // pred_fallthru
          _
        %s356 = sand.u32 %s35, 1
        %s357 = scalar_lea.sflag [#allocation5], %s356
        %s358 = sand.u32 %s35, 1
        %s359 = smul.addr %s358, 16
        %s360 = scalar_lea.vmem [#allocation4], %s359
        %p361 = pneg %p48
        %p362 = pneg %p45
        %p363 = pneg %p69
        %p364 = pneg %p66
        %p365 = pneg %p90
        %p366 = pneg %p87
        %p367 = pneg %p111
        %p368 = pneg %p108
        %p369 = pneg %p132
        %p370 = pneg %p129
        %p371 = pneg %p153
        %p372 = pneg %p150
        %p373 = pneg %p174
        %p374 = pneg %p171
        %p375 = pneg %p200
        %p376 = pneg %p197
        %s377 = sand.u32 %s187, 1
        %s378 = scalar_lea.sflag [#allocation6], %s377
        %s379 = sand.u32 %s187, 1
        %s380 = smul.addr %s379, 96
        %s381 = scalar_lea.vmem [#allocation16], %s380
        %v382 = vld [vmem:[%s327] sm:$0xff]
        %v383 = vld [vmem:[%s327 + $0x8] sm:$0xff]
        %v384 = vld [vmem:[#allocation7] sm:$0xff]
        %v385 = vld [vmem:[#allocation7 + $0x8] sm:$0xff]
        %v386 = vld [vmem:[#allocation7 + $0x10] sm:$0xff]
        %v387 = vld [vmem:[#allocation7 + $0x18] sm:$0xff]
        %v388 = vld [vmem:[#allocation15] sm:$0xff]
        %v389 = vld [vmem:[#allocation15 + $0x8] sm:$0xff]
        %v390 = vld [vmem:[#allocation15 + $0x10] sm:$0xff]
        %v391 = vld [vmem:[#allocation15 + $0x18] sm:$0xff]
        %393 = vset.pattern.permute.xlu0 0
        %394 = vperm.xlu0 %393, %v388
        %v395 = vpop.permute.xlu0 %394
        %398 = vset.pattern.permute.xlu0 0
        %399 = vperm.xlu0 %398, %v389
        %v400 = vpop.permute.xlu0 %399
        %403 = vset.pattern.permute.xlu0 0
        %404 = vperm.xlu0 %403, %v390
        %v405 = vpop.permute.xlu0 %404
        %408 = vset.pattern.permute.xlu0 0
        %409 = vperm.xlu0 %408, %v391
        %v410 = vpop.permute.xlu0 %409
        %v414 = vcombine.high %v382, %v382
        %v415 = vcombine.high %v383, %v383
        %416 = vrot.lane.b32.xlu0 %v382, 59
        %v417 = vpop.permute.xlu0 %416
        %418 = vrot.lane.b32.xlu0 %v414, 59
        %v419 = vpop.permute.xlu0 %418
        %420 = vrot.lane.b32.xlu0 %v383, 59
        %v421 = vpop.permute.xlu0 %420
        %422 = vrot.lane.b32.xlu0 %v415, 59
        %v423 = vpop.permute.xlu0 %422
        %vm424 = vcmask 482304
        %v425 = vsel %vm424, %v417, %v419
        %v426 = vsel %vm424, %v419, %v421
        %v427 = vsel %vm424, %v421, %v423
        %vm428 = vcmask 31744
        %v430 = vsel %vm428, %v384, 0
        %v433 = vsel %vm428, %v385, 0
        %v436 = vsel %vm428, %v386, 0
        %v439 = vsel %vm428, %v387, 0
        %vm441 = vcmask 1043456
        %v442 = vsel %vm441, %v425, 0
        %v444 = vsel %vm441, %v426, 0
        %v446 = vsel %vm441, %v427, 0
        %448 = vmatprep.subr.mxu0 %v444
        %449 = vmatpush1.msra.mxu0 %v442
        %450 = vmatprep.subr.mxu0 0.0
        %451 = vmatpush1.msra.mxu0 0.0
        %452 = vmatprep.subr.mxu0 0.0
        %453 = vmatpush1.msra.mxu0 0.0
        %454 = vmatprep.subr.mxu0 0.0
        %455 = vmatpush1.msra.mxu0 0.0
        %456 = vmatprep.subr.mxu0 0.0
        %457 = vmatpush1.msra.mxu0 0.0
        %458 = vmatprep.subr.mxu0 0.0
        %459 = vmatpush1.msra.mxu0 0.0
        %460 = vmatprep.subr.mxu0 0.0
        %461 = vmatpush1.msra.mxu0 0.0
        %462 = vmatprep.subr.mxu0 0.0
        %463 = vmatpush1.msra.mxu0 0.0
        %464 = vmatprep.subr.mxu0 0.0
        %465 = vmatpush1.msra.mxu0 0.0
        %466 = vmatprep.subr.mxu0 0.0
        %467 = vmatpush1.msra.mxu0 0.0
        %468 = vmatprep.subr.mxu0 0.0
        %469 = vmatpush1.msra.mxu0 0.0
        %470 = vmatprep.subr.mxu0 0.0
        %471 = vmatpush1.msra.mxu0 0.0
        %472 = vmatprep.subr.mxu0 0.0
        %473 = vmatpush1.msra.mxu0 0.0
        %474 = vmatprep.subr.mxu0 0.0
        %475 = vmatpush1.msra.mxu0 0.0
        %476 = vmatprep.subr.mxu0 0.0
        %477 = vmatpush1.msra.mxu0 0.0
        %478 = vmatprep.subr.mxu0 0.0
        %479 = vmatpush1.msra.mxu0 0.0
        %480 = vmatprep.subr.mxu0 0.0
        %481 = vmatpush1.msra.mxu0 0.0
        %482 = vmatprep.subr.mxu0 0.0
        %483 = vmatpush1.msra.mxu0 0.0
        %484 = vmatprep.subr.mxu0 0.0
        %485 = vmatpush1.msra.mxu0 0.0
        %486 = vmatprep.subr.mxu0 0.0
        %487 = vmatpush1.msra.mxu0 0.0
        %488 = vmatprep.subr.mxu0 0.0
        %489 = vmatpush1.msra.mxu0 0.0
        %490 = vmatprep.subr.mxu0 0.0
        %491 = vmatpush1.msra.mxu0 0.0
        %492 = vmatprep.subr.mxu0 0.0
        %493 = vmatpush1.msra.mxu0 0.0
        %494 = vmatprep.subr.mxu0 0.0
        %495 = vmatpush1.msra.mxu0 0.0
        %496 = vmatprep.subr.mxu0 0.0
        %497 = vmatpush1.msra.mxu0 0.0
        %498 = vmatprep.subr.mxu0 0.0
        %499 = vmatpush1.msra.mxu0 0.0
        %500 = vmatprep.subr.mxu0 0.0
        %501 = vmatpush1.msra.mxu0 0.0
        %502 = vmatprep.subr.mxu0 0.0
        %503 = vmatpush1.msra.mxu0 0.0
        %504 = vmatprep.subr.mxu0 0.0
        %505 = vmatpush1.msra.mxu0 0.0
        %506 = vmatprep.subr.mxu0 0.0
        %507 = vmatpush1.msra.mxu0 0.0
        %508 = vmatprep.subr.mxu0 0.0
        %509 = vmatpush1.msra.mxu0 0.0
        %510 = vmatprep.subr.mxu0 0.0
        %511 = vmatpush1.msra.mxu0 0.0
        %512 = vmatprep.mubr.f32.mxu0 0.0
        %513 = vmatmul.mubr.f32.gmra.mrb[0].mxu0 %v430
        %v514 = vpop.f32.mrb[0].mxu0
        %v515 = vadd.f32 %v395, %v514
        %v516 = vpop.f32.mrb[0].mxu0
        %v517 = vadd.f32 %v395, %v516
        %518 = vmatprep.mubr.f32.mxu0 0.0
        %519 = vmatmul.mubr.f32.gmra.mrb[0].mxu0 %v433
        %v520 = vpop.f32.mrb[0].mxu0
        %v521 = vadd.f32 %v400, %v520
        %v522 = vpop.f32.mrb[0].mxu0
        %v523 = vadd.f32 %v400, %v522
        %524 = vmatprep.mubr.f32.mxu0 0.0
        %525 = vmatmul.mubr.f32.gmra.mrb[0].mxu0 %v436
        %v526 = vpop.f32.mrb[0].mxu0
        %v527 = vadd.f32 %v405, %v526
        %v528 = vpop.f32.mrb[0].mxu0
        %v529 = vadd.f32 %v405, %v528
        %530 = vmatprep.mubr.f32.mxu0 0.0
        %531 = vmatmul.mubr.f32.gmra.mrb[0].mxu0 %v439
        %v532 = vpop.f32.mrb[0].mxu0
        %v533 = vadd.f32 %v410, %v532
        %v534 = vpop.f32.mrb[0].mxu0
        %v535 = vadd.f32 %v410, %v534
        %536 = vdwg.mxu0
        %537 = vmatprep.subr.mxu0 0.0
        %538 = vmatpush1.msra.mxu0 %v446
        %539 = vmatprep.subr.mxu0 0.0
        %540 = vmatpush1.msra.mxu0 0.0
        %541 = vmatprep.subr.mxu0 0.0
        %542 = vmatpush1.msra.mxu0 0.0
        %543 = vmatprep.subr.mxu0 0.0
        %544 = vmatpush1.msra.mxu0 0.0
        %545 = vmatprep.subr.mxu0 0.0
        %546 = vmatpush1.msra.mxu0 0.0
        %547 = vmatprep.subr.mxu0 0.0
        %548 = vmatpush1.msra.mxu0 0.0
        %549 = vmatprep.subr.mxu0 0.0
        %550 = vmatpush1.msra.mxu0 0.0
        %551 = vmatprep.subr.mxu0 0.0
        %552 = vmatpush1.msra.mxu0 0.0
        %553 = vmatprep.subr.mxu0 0.0
        %554 = vmatpush1.msra.mxu0 0.0
        %555 = vmatprep.subr.mxu0 0.0
        %556 = vmatpush1.msra.mxu0 0.0
        %557 = vmatprep.subr.mxu0 0.0
        %558 = vmatpush1.msra.mxu0 0.0
        %559 = vmatprep.subr.mxu0 0.0
        %560 = vmatpush1.msra.mxu0 0.0
        %561 = vmatprep.subr.mxu0 0.0
        %562 = vmatpush1.msra.mxu0 0.0
        %563 = vmatprep.subr.mxu0 0.0
        %564 = vmatpush1.msra.mxu0 0.0
        %565 = vmatprep.subr.mxu0 0.0
        %566 = vmatpush1.msra.mxu0 0.0
        %567 = vmatprep.subr.mxu0 0.0
        %568 = vmatpush1.msra.mxu0 0.0
        %569 = vmatprep.subr.mxu0 0.0
        %570 = vmatpush1.msra.mxu0 0.0
        %571 = vmatprep.subr.mxu0 0.0
        %572 = vmatpush1.msra.mxu0 0.0
        %573 = vmatprep.subr.mxu0 0.0
        %574 = vmatpush1.msra.mxu0 0.0
        %575 = vmatprep.subr.mxu0 0.0
        %576 = vmatpush1.msra.mxu0 0.0
        %577 = vmatprep.subr.mxu0 0.0
        %578 = vmatpush1.msra.mxu0 0.0
        %579 = vmatprep.subr.mxu0 0.0
        %580 = vmatpush1.msra.mxu0 0.0
        %581 = vmatprep.subr.mxu0 0.0
        %582 = vmatpush1.msra.mxu0 0.0
        %583 = vmatprep.subr.mxu0 0.0
        %584 = vmatpush1.msra.mxu0 0.0
        %585 = vmatprep.subr.mxu0 0.0
        %586 = vmatpush1.msra.mxu0 0.0
        %587 = vmatprep.subr.mxu0 0.0
        %588 = vmatpush1.msra.mxu0 0.0
        %589 = vmatprep.subr.mxu0 0.0
        %590 = vmatpush1.msra.mxu0 0.0
        %591 = vmatprep.subr.mxu0 0.0
        %592 = vmatpush1.msra.mxu0 0.0
        %593 = vmatprep.subr.mxu0 0.0
        %594 = vmatpush1.msra.mxu0 0.0
        %595 = vmatprep.subr.mxu0 0.0
        %596 = vmatpush1.msra.mxu0 0.0
        %597 = vmatprep.subr.mxu0 0.0
        %598 = vmatpush1.msra.mxu0 0.0
        %599 = vmatprep.subr.mxu0 0.0
        %600 = vmatpush1.msra.mxu0 0.0
        %601 = vmatprep.mubr.f32.mxu0 0.0
        %602 = vmatmul.mubr.f32.gmra.mrb[0].mxu0 %v430
        %v603 = vpop.f32.mrb[0].mxu0
        %v604 = vadd.f32 %v395, %v603
        %v605 = vpop.f32.mrb[0].mxu0
        %606 = vmatprep.mubr.f32.mxu0 0.0
        %607 = vmatmul.mubr.f32.gmra.mrb[0].mxu0 %v433
        %v608 = vpop.f32.mrb[0].mxu0
        %v609 = vadd.f32 %v400, %v608
        %v610 = vpop.f32.mrb[0].mxu0
        %611 = vmatprep.mubr.f32.mxu0 0.0
        %612 = vmatmul.mubr.f32.gmra.mrb[0].mxu0 %v436
        %v613 = vpop.f32.mrb[0].mxu0
        %v614 = vadd.f32 %v405, %v613
        %v615 = vpop.f32.mrb[0].mxu0
        %616 = vmatprep.mubr.f32.mxu0 0.0
        %617 = vmatmul.mubr.f32.gmra.mrb[0].mxu0 %v439
        %v618 = vpop.f32.mrb[0].mxu0
        %v619 = vadd.f32 %v410, %v618
        %v620 = vpop.f32.mrb[0].mxu0
        %621 = vdwg.mxu0
        %v622 = vmax.f32 %v515, 0.0
        %v623 = vmax.f32 %v517, 0.0
        %v624 = vmax.f32 %v604, 0.0
        %v625 = vmax.f32 %v521, 0.0
        %v626 = vmax.f32 %v523, 0.0
        %v627 = vmax.f32 %v609, 0.0
        %v628 = vmax.f32 %v527, 0.0
        %v629 = vmax.f32 %v529, 0.0
        %v630 = vmax.f32 %v614, 0.0
        %v631 = vmax.f32 %v533, 0.0
        %v632 = vmax.f32 %v535, 0.0
        %v633 = vmax.f32 %v619, 0.0
        %634 = vst [vmem:[#allocation3] sm:$0xff] %v622
        %635 = vst [vmem:[#allocation3 + $0x8] sm:$0xff] %v623
        %vm636 = vcmask 785408
        %637 = vst.msk [vmem:[#allocation3 + $0x10] sm:$0xff] %vm636, %v624
        %638 = vst [vmem:[#allocation3 + $0x18] sm:$0xff] %v625
        %639 = vst [vmem:[#allocation3 + $0x20] sm:$0xff] %v626
        %640 = vst.msk [vmem:[#allocation3 + $0x28] sm:$0xff] %vm636, %v627
        %641 = vst [vmem:[#allocation3 + $0x30] sm:$0xff] %v628
        %642 = vst [vmem:[#allocation3 + $0x38] sm:$0xff] %v629
        %643 = vst.msk [vmem:[#allocation3 + $0x40] sm:$0xff] %vm636, %v630
        %644 = vst [vmem:[#allocation3 + $0x48] sm:$0xff] %v631
        %645 = vst [vmem:[#allocation3 + $0x50] sm:$0xff] %v632
        %646 = vst.msk [vmem:[#allocation3 + $0x58] sm:$0xff] %vm636, %v633
        %v647 = vld [vmem:[%s327] sm:$0xff]
        %v648 = vld [vmem:[%s327 + $0x8] sm:$0xff]
        %v651 = vcombine.high %v647, %v647
        %v652 = vcombine.high %v648, %v648
        %653 = vrot.lane.b32.xlu0 %v647, 82
        %v654 = vpop.permute.xlu0 %653
        %655 = vrot.lane.b32.xlu0 %v651, 82
        %v656 = vpop.permute.xlu0 %655
        %657 = vrot.lane.b32.xlu0 %v648, 82
        %v658 = vpop.permute.xlu0 %657
        %659 = vrot.lane.b32.xlu0 %v652, 82
        %v660 = vpop.permute.xlu0 %659
        %vm661 = vcmask 670720
        %v662 = vsel %vm661, %v654, %v656
        %v663 = vsel %vm661, %v656, %v658
        %v664 = vsel %vm661, %v658, %v660
        %668 = vst [vmem:[#allocation2] sm:$0xf] %v662
        %669 = vst [vmem:[#allocation2 + $0x8] sm:$0xf] %v663
        %vm670 = vcmask 781312
        %671 = vst.msk [vmem:[#allocation2 + $0x10] sm:$0xf] %vm670, %v664
        %v672 = vld [vmem:[%s327] sm:$0xff]
        %v673 = vld [vmem:[%s327 + $0x8] sm:$0xff]
        %v676 = vcombine.low %v672, %v672
        %v677 = vcombine.low %v673, %v673
        %678 = vrot.lane.b32.xlu0 %v676, 81
        %v679 = vpop.permute.xlu0 %678
        %680 = vrot.lane.b32.xlu0 %v672, 81
        %v681 = vpop.permute.xlu0 %680
        %682 = vrot.lane.b32.xlu0 %v677, 81
        %v683 = vpop.permute.xlu0 %682
        %684 = vrot.lane.b32.xlu0 %v673, 81
        %v685 = vpop.permute.xlu0 %684
        %vm686 = vcmask 662528
        %v687 = vsel %vm686, %v679, %v681
        %v688 = vsel %vm686, %v681, %v683
        %v689 = vsel %vm686, %v683, %v685
        %693 = vst [vmem:[#allocation2] sm:$0xf0] %v687
        %694 = vst [vmem:[#allocation2 + $0x8] sm:$0xf0] %v688
        %vm695 = vcmask 785412
        %696 = vst.msk [vmem:[#allocation2 + $0x10] sm:$0xf0] %vm695, %v689
        %v697 = vld [vmem:[%s327] sm:$0xff]
        %v698 = vld [vmem:[%s327 + $0x8] sm:$0xff]
        %v701 = vcombine.high %v697, %v697
        %v702 = vcombine.high %v698, %v698
        %703 = vrot.lane.b32.xlu0 %v697, 80
        %v704 = vpop.permute.xlu0 %703
        %705 = vrot.lane.b32.xlu0 %v701, 80
        %v706 = vpop.permute.xlu0 %705
        %707 = vrot.lane.b32.xlu0 %v698, 80
        %v708 = vpop.permute.xlu0 %707
        %709 = vrot.lane.b32.xlu0 %v702, 80
        %v710 = vpop.permute.xlu0 %709
        %vm711 = vcmask 654336
        %v712 = vsel %vm711, %v704, %v706
        %v713 = vsel %vm711, %v706, %v708
        %v714 = vsel %vm711, %v708, %v710
        %718 = vst [vmem:[#allocation2 + $0x18] sm:$0xf] %v712
        %719 = vst [vmem:[#allocation2 + $0x20] sm:$0xf] %v713
        %720 = vst.msk [vmem:[#allocation2 + $0x28] sm:$0xf] %vm670, %v714
        %v721 = vld [vmem:[%s327] sm:$0xff]
        %v722 = vld [vmem:[%s327 + $0x8] sm:$0xff]
        %v725 = vcombine.low %v721, %v721
        %v726 = vcombine.low %v722, %v722
        %727 = vrot.lane.b32.xlu0 %v725, 60
        %v728 = vpop.permute.xlu0 %727
        %729 = vrot.lane.b32.xlu0 %v721, 60
        %v730 = vpop.permute.xlu0 %729
        %731 = vrot.lane.b32.xlu0 %v726, 60
        %v732 = vpop.permute.xlu0 %731
        %733 = vrot.lane.b32.xlu0 %v722, 60
        %v734 = vpop.permute.xlu0 %733
        %vm735 = vcmask 490496
        %v736 = vsel %vm735, %v728, %v730
        %v737 = vsel %vm735, %v730, %v732
        %v738 = vsel %vm735, %v732, %v734
        %742 = vst [vmem:[#allocation2 + $0x18] sm:$0xf0] %v736
        %743 = vst [vmem:[#allocation2 + $0x20] sm:$0xf0] %v737
        %744 = vst.msk [vmem:[#allocation2 + $0x28] sm:$0xf0] %vm695, %v738
        %748 = vst [vmem:[#allocation2 + $0x30] sm:$0xf] %v425
        %749 = vst [vmem:[#allocation2 + $0x38] sm:$0xf] %v426
        %750 = vst.msk [vmem:[#allocation2 + $0x40] sm:$0xf] %vm670, %v427
        %v751 = vld [vmem:[%s327] sm:$0xff]
        %v752 = vld [vmem:[%s327 + $0x8] sm:$0xff]
        %v755 = vcombine.low %v751, %v751
        %v756 = vcombine.low %v752, %v752
        %757 = vrot.lane.b32.xlu0 %v755, 58
        %v758 = vpop.permute.xlu0 %757
        %759 = vrot.lane.b32.xlu0 %v751, 58
        %v760 = vpop.permute.xlu0 %759
        %761 = vrot.lane.b32.xlu0 %v756, 58
        %v762 = vpop.permute.xlu0 %761
        %763 = vrot.lane.b32.xlu0 %v752, 58
        %v764 = vpop.permute.xlu0 %763
        %vm765 = vcmask 474112
        %v766 = vsel %vm765, %v758, %v760
        %v767 = vsel %vm765, %v760, %v762
        %v768 = vsel %vm765, %v762, %v764
        %772 = vst [vmem:[#allocation2 + $0x30] sm:$0xf0] %v766
        %773 = vst [vmem:[#allocation2 + $0x38] sm:$0xf0] %v767
        %774 = vst.msk [vmem:[#allocation2 + $0x40] sm:$0xf0] %vm695, %v768
        %v775 = vld [vmem:[%s327] sm:$0xff]
        %v776 = vld [vmem:[%s327 + $0x8] sm:$0xff]
        %v779 = vcombine.high %v775, %v775
        %v780 = vcombine.high %v776, %v776
        %781 = vrot.lane.b32.xlu0 %v775, 38
        %v782 = vpop.permute.xlu0 %781
        %783 = vrot.lane.b32.xlu0 %v779, 38
        %v784 = vpop.permute.xlu0 %783
        %785 = vrot.lane.b32.xlu0 %v776, 38
        %v786 = vpop.permute.xlu0 %785
        %787 = vrot.lane.b32.xlu0 %v780, 38
        %v788 = vpop.permute.xlu0 %787
        %vm789 = vcmask 310272
        %v790 = vsel %vm789, %v782, %v784
        %v791 = vsel %vm789, %v784, %v786
        %v792 = vsel %vm789, %v786, %v788
        %796 = vst [vmem:[#allocation2 + $0x48] sm:$0xf] %v790
        %797 = vst [vmem:[#allocation2 + $0x50] sm:$0xf] %v791
        %798 = vst.msk [vmem:[#allocation2 + $0x58] sm:$0xf] %vm670, %v792
        %v799 = vld [vmem:[%s327] sm:$0xff]
        %v800 = vld [vmem:[%s327 + $0x8] sm:$0xff]
        %v803 = vcombine.low %v799, %v799
        %v804 = vcombine.low %v800, %v800
        %805 = vrot.lane.b32.xlu0 %v803, 37
        %v806 = vpop.permute.xlu0 %805
        %807 = vrot.lane.b32.xlu0 %v799, 37
        %v808 = vpop.permute.xlu0 %807
        %809 = vrot.lane.b32.xlu0 %v804, 37
        %v810 = vpop.permute.xlu0 %809
        %811 = vrot.lane.b32.xlu0 %v800, 37
        %v812 = vpop.permute.xlu0 %811
        %vm813 = vcmask 302080
        %v814 = vsel %vm813, %v806, %v808
        %v815 = vsel %vm813, %v808, %v810
        %v816 = vsel %vm813, %v810, %v812
        %820 = vst [vmem:[#allocation2 + $0x48] sm:$0xf0] %v814
        %821 = vst [vmem:[#allocation2 + $0x50] sm:$0xf0] %v815
        %822 = vst.msk [vmem:[#allocation2 + $0x58] sm:$0xf0] %vm695, %v816
        %v823 = vld [vmem:[%s327] sm:$0xff]
        %v824 = vld [vmem:[%s327 + $0x8] sm:$0xff]
        %v827 = vcombine.high %v823, %v823
        %v828 = vcombine.high %v824, %v824
        %829 = vrot.lane.b32.xlu0 %v823, 36
        %v830 = vpop.permute.xlu0 %829
        %831 = vrot.lane.b32.xlu0 %v827, 36
        %v832 = vpop.permute.xlu0 %831
        %833 = vrot.lane.b32.xlu0 %v824, 36
        %v834 = vpop.permute.xlu0 %833
        %835 = vrot.lane.b32.xlu0 %v828, 36
        %v836 = vpop.permute.xlu0 %835
        %vm837 = vcmask 293888
        %v838 = vsel %vm837, %v830, %v832
        %v839 = vsel %vm837, %v832, %v834
        %v840 = vsel %vm837, %v834, %v836
        %844 = vst [vmem:[#allocation2 + $0x60] sm:$0xf] %v838
        %845 = vst [vmem:[#allocation2 + $0x68] sm:$0xf] %v839
        %846 = vst.msk [vmem:[#allocation2 + $0x70] sm:$0xf] %vm670, %v840
        %v847 = vld [vmem:[#allocation9] sm:$0xff]
        %v848 = vld [vmem:[#allocation9 + $0x8] sm:$0xff]
        %v849 = vld [vmem:[#allocation9 + $0x10] sm:$0xff]
        %v850 = vld [vmem:[#allocation9 + $0x18] sm:$0xff]
        %v851 = vld [vmem:[#allocation2] sm:$0xff]
        %v852 = vld [vmem:[#allocation2 + $0x8] sm:$0xff]
        %v853 = vld [vmem:[#allocation2 + $0x10] sm:$0xff]
        %v854 = vld [vmem:[#allocation2 + $0x18] sm:$0xff]
        %v855 = vld [vmem:[#allocation2 + $0x20] sm:$0xff]
        %v856 = vld [vmem:[#allocation2 + $0x28] sm:$0xff]
        %v857 = vld [vmem:[#allocation2 + $0x30] sm:$0xff]
        %v858 = vld [vmem:[#allocation2 + $0x38] sm:$0xff]
        %v859 = vld [vmem:[#allocation2 + $0x40] sm:$0xff]
        %v860 = vld [vmem:[#allocation2 + $0x48] sm:$0xff]
        %v861 = vld [vmem:[#allocation2 + $0x50] sm:$0xff]
        %v862 = vld [vmem:[#allocation2 + $0x58] sm:$0xff]
        %v863 = vld [vmem:[#allocation2 + $0x60] sm:$0xf]
        %v864 = vld [vmem:[#allocation2 + $0x68] sm:$0xf]
        %v865 = vld [vmem:[#allocation2 + $0x70] sm:$0xf]
        %s866 = scalar_lea.vmem [#allocation15], 32
        %v867 = vld [vmem:[%s866] sm:$0xff]
        %v868 = vld [vmem:[%s866 + $0x8] sm:$0xff]
        %v869 = vld [vmem:[%s866 + $0x10] sm:$0xff]
        %v870 = vld [vmem:[%s866 + $0x18] sm:$0xff]
        %872 = vset.pattern.permute.xlu0 0
        %873 = vperm.xlu0 %872, %v867
        %v874 = vpop.permute.xlu0 %873
        %877 = vset.pattern.permute.xlu0 0
        %878 = vperm.xlu0 %877, %v868
        %v879 = vpop.permute.xlu0 %878
        %882 = vset.pattern.permute.xlu0 0
        %883 = vperm.xlu0 %882, %v869
        %v884 = vpop.permute.xlu0 %883
        %887 = vset.pattern.permute.xlu0 0
        %888 = vperm.xlu0 %887, %v870
        %v889 = vpop.permute.xlu0 %888
        %v892 = vsel %vm837, %v847, 0
        %v895 = vsel %vm837, %v848, 0
        %v898 = vsel %vm837, %v849, 0
        %v901 = vsel %vm837, %v850, 0
        %v904 = vsel %vm441, %v863, 0
        %v907 = vsel %vm441, %v864, 0
        %v910 = vsel %vm441, %v865, 0
        %912 = vmatprep.subr.mxu0 %v852
        %913 = vmatpush1.msra.mxu0 %v851
        %914 = vmatprep.subr.mxu0 %v855
        %915 = vmatpush1.msra.mxu0 %v854
        %916 = vmatprep.subr.mxu0 %v858
        %917 = vmatpush1.msra.mxu0 %v857
        %918 = vmatprep.subr.mxu0 %v861
        %919 = vmatpush1.msra.mxu0 %v860
        %920 = vmatprep.subr.mxu0 %v907
        %921 = vmatpush1.msra.mxu0 %v904
        %922 = vmatprep.subr.mxu0 0.0
        %923 = vmatpush1.msra.mxu0 0.0
        %924 = vmatprep.subr.mxu0 0.0
        %925 = vmatpush1.msra.mxu0 0.0
        %926 = vmatprep.subr.mxu0 0.0
        %927 = vmatpush1.msra.mxu0 0.0
        %928 = vmatprep.subr.mxu0 0.0
        %929 = vmatpush1.msra.mxu0 0.0
        %930 = vmatprep.subr.mxu0 0.0
        %931 = vmatpush1.msra.mxu0 0.0
        %932 = vmatprep.subr.mxu0 0.0
        %933 = vmatpush1.msra.mxu0 0.0
        %934 = vmatprep.subr.mxu0 0.0
        %935 = vmatpush1.msra.mxu0 0.0
        %936 = vmatprep.subr.mxu0 0.0
        %937 = vmatpush1.msra.mxu0 0.0
        %938 = vmatprep.subr.mxu0 0.0
        %939 = vmatpush1.msra.mxu0 0.0
        %940 = vmatprep.subr.mxu0 0.0
        %941 = vmatpush1.msra.mxu0 0.0
        %942 = vmatprep.subr.mxu0 0.0
        %943 = vmatpush1.msra.mxu0 0.0
        %944 = vmatprep.subr.mxu0 0.0
        %945 = vmatpush1.msra.mxu0 0.0
        %946 = vmatprep.subr.mxu0 0.0
        %947 = vmatpush1.msra.mxu0 0.0
        %948 = vmatprep.subr.mxu0 0.0
        %949 = vmatpush1.msra.mxu0 0.0
        %950 = vmatprep.subr.mxu0 0.0
        %951 = vmatpush1.msra.mxu0 0.0
        %952 = vmatprep.subr.mxu0 0.0
        %953 = vmatpush1.msra.mxu0 0.0
        %954 = vmatprep.subr.mxu0 0.0
        %955 = vmatpush1.msra.mxu0 0.0
        %956 = vmatprep.subr.mxu0 0.0
        %957 = vmatpush1.msra.mxu0 0.0
        %958 = vmatprep.subr.mxu0 0.0
        %959 = vmatpush1.msra.mxu0 0.0
        %960 = vmatprep.subr.mxu0 0.0
        %961 = vmatpush1.msra.mxu0 0.0
        %962 = vmatprep.subr.mxu0 0.0
        %963 = vmatpush1.msra.mxu0 0.0
        %964 = vmatprep.subr.mxu0 0.0
        %965 = vmatpush1.msra.mxu0 0.0
        %966 = vmatprep.subr.mxu0 0.0
        %967 = vmatpush1.msra.mxu0 0.0
        %968 = vmatprep.subr.mxu0 0.0
        %969 = vmatpush1.msra.mxu0 0.0
        %970 = vmatprep.subr.mxu0 0.0
        %971 = vmatpush1.msra.mxu0 0.0
        %972 = vmatprep.subr.mxu0 0.0
        %973 = vmatpush1.msra.mxu0 0.0
        %974 = vmatprep.subr.mxu0 0.0
        %975 = vmatpush1.msra.mxu0 0.0
        %976 = vmatprep.mubr.f32.mxu0 0.0
        %977 = vmatmul.mubr.f32.gmra.mrb[0].mxu0 %v892
        %v978 = vpop.f32.mrb[0].mxu0
        %v979 = vadd.f32 %v874, %v978
        %v980 = vpop.f32.mrb[0].mxu0
        %v981 = vadd.f32 %v874, %v980
        %982 = vmatprep.mubr.f32.mxu0 0.0
        %983 = vmatmul.mubr.f32.gmra.mrb[0].mxu0 %v895
        %v984 = vpop.f32.mrb[0].mxu0
        %v985 = vadd.f32 %v879, %v984
        %v986 = vpop.f32.mrb[0].mxu0
        %v987 = vadd.f32 %v879, %v986
        %988 = vmatprep.mubr.f32.mxu0 0.0
        %989 = vmatmul.mubr.f32.gmra.mrb[0].mxu0 %v898
        %v990 = vpop.f32.mrb[0].mxu0
        %v991 = vadd.f32 %v884, %v990
        %v992 = vpop.f32.mrb[0].mxu0
        %v993 = vadd.f32 %v884, %v992
        %994 = vmatprep.mubr.f32.mxu0 0.0
        %995 = vmatmul.mubr.f32.gmra.mrb[0].mxu0 %v901
        %v996 = vpop.f32.mrb[0].mxu0
        %v997 = vadd.f32 %v889, %v996
        %v998 = vpop.f32.mrb[0].mxu0
        %v999 = vadd.f32 %v889, %v998
        %1000 = vdwg.mxu0
        %1001 = vmatprep.subr.mxu0 0.0
        %1002 = vmatpush1.msra.mxu0 %v853
        %1003 = vmatprep.subr.mxu0 0.0
        %1004 = vmatpush1.msra.mxu0 %v856
        %1005 = vmatprep.subr.mxu0 0.0
        %1006 = vmatpush1.msra.mxu0 %v859
        %1007 = vmatprep.subr.mxu0 0.0
        %1008 = vmatpush1.msra.mxu0 %v862
        %1009 = vmatprep.subr.mxu0 0.0
        %1010 = vmatpush1.msra.mxu0 %v910
        %1011 = vmatprep.subr.mxu0 0.0
        %1012 = vmatpush1.msra.mxu0 0.0
        %1013 = vmatprep.subr.mxu0 0.0
        %1014 = vmatpush1.msra.mxu0 0.0
        %1015 = vmatprep.subr.mxu0 0.0
        %1016 = vmatpush1.msra.mxu0 0.0
        %1017 = vmatprep.subr.mxu0 0.0
        %1018 = vmatpush1.msra.mxu0 0.0
        %1019 = vmatprep.subr.mxu0 0.0
        %1020 = vmatpush1.msra.mxu0 0.0
        %1021 = vmatprep.subr.mxu0 0.0
        %1022 = vmatpush1.msra.mxu0 0.0
        %1023 = vmatprep.subr.mxu0 0.0
        %1024 = vmatpush1.msra.mxu0 0.0
        %1025 = vmatprep.subr.mxu0 0.0
        %1026 = vmatpush1.msra.mxu0 0.0
        %1027 = vmatprep.subr.mxu0 0.0
        %1028 = vmatpush1.msra.mxu0 0.0
        %1029 = vmatprep.subr.mxu0 0.0
        %1030 = vmatpush1.msra.mxu0 0.0
        %1031 = vmatprep.subr.mxu0 0.0
        %1032 = vmatpush1.msra.mxu0 0.0
        %1033 = vmatprep.subr.mxu0 0.0
        %1034 = vmatpush1.msra.mxu0 0.0
        %1035 = vmatprep.subr.mxu0 0.0
        %1036 = vmatpush1.msra.mxu0 0.0
        %1037 = vmatprep.subr.mxu0 0.0
        %1038 = vmatpush1.msra.mxu0 0.0
        %1039 = vmatprep.subr.mxu0 0.0
        %1040 = vmatpush1.msra.mxu0 0.0
        %1041 = vmatprep.subr.mxu0 0.0
        %1042 = vmatpush1.msra.mxu0 0.0
        %1043 = vmatprep.subr.mxu0 0.0
        %1044 = vmatpush1.msra.mxu0 0.0
        %1045 = vmatprep.subr.mxu0 0.0
        %1046 = vmatpush1.msra.mxu0 0.0
        %1047 = vmatprep.subr.mxu0 0.0
        %1048 = vmatpush1.msra.mxu0 0.0
        %1049 = vmatprep.subr.mxu0 0.0
        %1050 = vmatpush1.msra.mxu0 0.0
        %1051 = vmatprep.subr.mxu0 0.0
        %1052 = vmatpush1.msra.mxu0 0.0
        %1053 = vmatprep.subr.mxu0 0.0
        %1054 = vmatpush1.msra.mxu0 0.0
        %1055 = vmatprep.subr.mxu0 0.0
        %1056 = vmatpush1.msra.mxu0 0.0
        %1057 = vmatprep.subr.mxu0 0.0
        %1058 = vmatpush1.msra.mxu0 0.0
        %1059 = vmatprep.subr.mxu0 0.0
        %1060 = vmatpush1.msra.mxu0 0.0
        %1061 = vmatprep.subr.mxu0 0.0
        %1062 = vmatpush1.msra.mxu0 0.0
        %1063 = vmatprep.subr.mxu0 0.0
        %1064 = vmatpush1.msra.mxu0 0.0
        %1065 = vmatprep.mubr.f32.mxu0 0.0
        %1066 = vmatmul.mubr.f32.gmra.mrb[0].mxu0 %v892
        %v1067 = vpop.f32.mrb[0].mxu0
        %v1068 = vadd.f32 %v874, %v1067
        %v1069 = vpop.f32.mrb[0].mxu0
        %1070 = vmatprep.mubr.f32.mxu0 0.0
        %1071 = vmatmul.mubr.f32.gmra.mrb[0].mxu0 %v895
        %v1072 = vpop.f32.mrb[0].mxu0
        %v1073 = vadd.f32 %v879, %v1072
        %v1074 = vpop.f32.mrb[0].mxu0
        %1075 = vmatprep.mubr.f32.mxu0 0.0
        %1076 = vmatmul.mubr.f32.gmra.mrb[0].mxu0 %v898
        %v1077 = vpop.f32.mrb[0].mxu0
        %v1078 = vadd.f32 %v884, %v1077
        %v1079 = vpop.f32.mrb[0].mxu0
        %1080 = vmatprep.mubr.f32.mxu0 0.0
        %1081 = vmatmul.mubr.f32.gmra.mrb[0].mxu0 %v901
        %v1082 = vpop.f32.mrb[0].mxu0
        %v1083 = vadd.f32 %v889, %v1082
        %v1084 = vpop.f32.mrb[0].mxu0
        %1085 = vdwg.mxu0
        %v1086 = vmax.f32 %v979, 0.0
        %v1087 = vmax.f32 %v981, 0.0
        %v1088 = vmax.f32 %v1068, 0.0
        %v1089 = vmax.f32 %v985, 0.0
        %v1090 = vmax.f32 %v987, 0.0
        %v1091 = vmax.f32 %v1073, 0.0
        %v1092 = vmax.f32 %v991, 0.0
        %v1093 = vmax.f32 %v993, 0.0
        %v1094 = vmax.f32 %v1078, 0.0
        %v1095 = vmax.f32 %v997, 0.0
        %v1096 = vmax.f32 %v999, 0.0
        %v1097 = vmax.f32 %v1083, 0.0
        %1098 = vst [vmem:[#allocation3 + $0x60] sm:$0xff] %v1086
        %1099 = vst [vmem:[#allocation3 + $0x68] sm:$0xff] %v1087
        %1100 = vst.msk [vmem:[#allocation3 + $0x70] sm:$0xff] %vm636, %v1088
        %1101 = vst [vmem:[#allocation3 + $0x78] sm:$0xff] %v1089
        %1102 = vst [vmem:[#allocation3 + $0x80] sm:$0xff] %v1090
        %1103 = vst.msk [vmem:[#allocation3 + $0x88] sm:$0xff] %vm636, %v1091
        %1104 = vst [vmem:[#allocation3 + $0x90] sm:$0xff] %v1092
        %1105 = vst [vmem:[#allocation3 + $0x98] sm:$0xff] %v1093
        %1106 = vst.msk [vmem:[#allocation3 + $0xa0] sm:$0xff] %vm636, %v1094
        %1107 = vst [vmem:[#allocation3 + $0xa8] sm:$0xff] %v1095
        %1108 = vst [vmem:[#allocation3 + $0xb0] sm:$0xff] %v1096
        %1109 = vst.msk [vmem:[#allocation3 + $0xb8] sm:$0xff] %vm636, %v1097
        %v1110 = vld [vmem:[%s327] sm:$0xff]
        %v1111 = vld [vmem:[%s327 + $0x8] sm:$0xf]
        %v1114 = vcombine.high %v1110, %v1110
        %1115 = vrot.lane.b32.xlu0 %v1110, 105
        %v1116 = vpop.permute.xlu0 %1115
        %1117 = vrot.lane.b32.xlu0 %v1114, 105
        %v1118 = vpop.permute.xlu0 %1117
        %1119 = vrot.lane.b32.xlu0 %v1111, 105
        %v1120 = vpop.permute.xlu0 %1119
        %vm1121 = vcmask 859136
        %v1122 = vsel %vm1121, %v1116, %v1118
        %v1123 = vsel %vm1121, %v1118, %v1120
        %1127 = vst [vmem:[#allocation2] sm:$0xf] %v1122
        %1128 = vst [vmem:[#allocation2 + $0x8] sm:$0xf] %v1123
        %1129 = vst.msk [vmem:[#allocation2 + $0x10] sm:$0xf] %vm670, %v1120
        %v1130 = vld [vmem:[%s327] sm:$0xff]
        %v1131 = vld [vmem:[%s327 + $0x8] sm:$0xf]
        %v1134 = vcombine.low %v1130, %v1130
        %v1135 = vcombine.low %v1131, %v1131
        %1136 = vrot.lane.b32.xlu0 %v1134, 103
        %v1137 = vpop.permute.xlu0 %1136
        %1138 = vrot.lane.b32.xlu0 %v1130, 103
        %v1139 = vpop.permute.xlu0 %1138
        %1140 = vrot.lane.b32.xlu0 %v1135, 103
        %v1141 = vpop.permute.xlu0 %1140
        %vm1142 = vcmask 842752
        %v1143 = vsel %vm1142, %v1137, %v1139
        %v1144 = vsel %vm1142, %v1139, %v1141
        %1148 = vst [vmem:[#allocation2] sm:$0xf0] %v1143
        %1149 = vst [vmem:[#allocation2 + $0x8] sm:$0xf0] %v1144
        %1150 = vst.msk [vmem:[#allocation2 + $0x10] sm:$0xf0] %vm695, %v1141
        %v1151 = vld [vmem:[%s327] sm:$0xff]
        %v1152 = vld [vmem:[%s327 + $0x8] sm:$0xf]
        %v1155 = vcombine.high %v1151, %v1151
        %1156 = vrot.lane.b32.xlu0 %v1151, 101
        %v1157 = vpop.permute.xlu0 %1156
        %1158 = vrot.lane.b32.xlu0 %v1155, 101
        %v1159 = vpop.permute.xlu0 %1158
        %1160 = vrot.lane.b32.xlu0 %v1152, 101
        %v1161 = vpop.permute.xlu0 %1160
        %vm1162 = vcmask 826368
        %v1163 = vsel %vm1162, %v1157, %v1159
        %v1164 = vsel %vm1162, %v1159, %v1161
        %1168 = vst [vmem:[#allocation2 + $0x18] sm:$0xf] %v1163
        %1169 = vst [vmem:[#allocation2 + $0x20] sm:$0xf] %v1164
        %1170 = vst.msk [vmem:[#allocation2 + $0x28] sm:$0xf] %vm670, %v1161
        %v1171 = vld [vmem:[%s327] sm:$0xff]
        %v1172 = vld [vmem:[%s327 + $0x8] sm:$0xff]
        %v1175 = vcombine.low %v1171, %v1171
        %v1176 = vcombine.low %v1172, %v1172
        %1177 = vrot.lane.b32.xlu0 %v1175, 61
        %v1178 = vpop.permute.xlu0 %1177
        %1179 = vrot.lane.b32.xlu0 %v1171, 61
        %v1180 = vpop.permute.xlu0 %1179
        %1181 = vrot.lane.b32.xlu0 %v1176, 61
        %v1182 = vpop.permute.xlu0 %1181
        %1183 = vrot.lane.b32.xlu0 %v1172, 61
        %v1184 = vpop.permute.xlu0 %1183
        %vm1185 = vcmask 498688
        %v1186 = vsel %vm1185, %v1178, %v1180
        %v1187 = vsel %vm1185, %v1180, %v1182
        %v1188 = vsel %vm1185, %v1182, %v1184
        %1192 = vst [vmem:[#allocation2 + $0x18] sm:$0xf0] %v1186
        %1193 = vst [vmem:[#allocation2 + $0x20] sm:$0xf0] %v1187
        %1194 = vst.msk [vmem:[#allocation2 + $0x28] sm:$0xf0] %vm695, %v1188
        %1195 = vst [vmem:[#allocation2 + $0x30] sm:$0xf] %v425
        %1196 = vst [vmem:[#allocation2 + $0x38] sm:$0xf] %v426
        %1197 = vst.msk [vmem:[#allocation2 + $0x40] sm:$0xf] %vm670, %v427
        %v1198 = vld [vmem:[%s327] sm:$0xff]
        %v1199 = vld [vmem:[%s327 + $0x8] sm:$0xff]
        %v1202 = vcombine.low %v1198, %v1198
        %v1203 = vcombine.low %v1199, %v1199
        %1204 = vrot.lane.b32.xlu0 %v1202, 57
        %v1205 = vpop.permute.xlu0 %1204
        %1206 = vrot.lane.b32.xlu0 %v1198, 57
        %v1207 = vpop.permute.xlu0 %1206
        %1208 = vrot.lane.b32.xlu0 %v1203, 57
        %v1209 = vpop.permute.xlu0 %1208
        %1210 = vrot.lane.b32.xlu0 %v1199, 57
        %v1211 = vpop.permute.xlu0 %1210
        %vm1212 = vcmask 465920
        %v1213 = vsel %vm1212, %v1205, %v1207
        %v1214 = vsel %vm1212, %v1207, %v1209
        %v1215 = vsel %vm1212, %v1209, %v1211
        %1219 = vst [vmem:[#allocation2 + $0x30] sm:$0xf0] %v1213
        %1220 = vst [vmem:[#allocation2 + $0x38] sm:$0xf0] %v1214
        %1221 = vst.msk [vmem:[#allocation2 + $0x40] sm:$0xf0] %vm695, %v1215
        %v1222 = vld [vmem:[%s327] sm:$0xff]
        %v1223 = vld [vmem:[%s327 + $0x8] sm:$0xff]
        %v1226 = vcombine.high %v1222, %v1222
        %v1227 = vcombine.high %v1223, %v1223
        %1228 = vrot.lane.b32.xlu0 %v1222, 17
        %v1229 = vpop.permute.xlu0 %1228
        %1230 = vrot.lane.b32.xlu0 %v1226, 17
        %v1231 = vpop.permute.xlu0 %1230
        %1232 = vrot.lane.b32.xlu0 %v1223, 17
        %v1233 = vpop.permute.xlu0 %1232
        %1234 = vrot.lane.b32.xlu0 %v1227, 17
        %v1235 = vpop.permute.xlu0 %1234
        %vm1236 = vcmask 138240
        %v1237 = vsel %vm1236, %v1229, %v1231
        %v1238 = vsel %vm1236, %v1231, %v1233
        %v1239 = vsel %vm1236, %v1233, %v1235
        %1243 = vst [vmem:[#allocation2 + $0x48] sm:$0xf] %v1237
        %1244 = vst [vmem:[#allocation2 + $0x50] sm:$0xf] %v1238
        %1245 = vst.msk [vmem:[#allocation2 + $0x58] sm:$0xf] %vm670, %v1239
        %v1246 = vld [vmem:[%s327] sm:$0xff]
        %v1247 = vld [vmem:[%s327 + $0x8] sm:$0xff]
        %v1250 = vcombine.low %v1246, %v1246
        %v1251 = vcombine.low %v1247, %v1247
        %1252 = vrot.lane.b32.xlu0 %v1250, 15
        %v1253 = vpop.permute.xlu0 %1252
        %1254 = vrot.lane.b32.xlu0 %v1246, 15
        %v1255 = vpop.permute.xlu0 %1254
        %1256 = vrot.lane.b32.xlu0 %v1251, 15
        %v1257 = vpop.permute.xlu0 %1256
        %1258 = vrot.lane.b32.xlu0 %v1247, 15
        %v1259 = vpop.permute.xlu0 %1258
        %vm1260 = vcmask 121856
        %v1261 = vsel %vm1260, %v1253, %v1255
        %v1262 = vsel %vm1260, %v1255, %v1257
        %v1263 = vsel %vm1260, %v1257, %v1259
        %1267 = vst [vmem:[#allocation2 + $0x48] sm:$0xf0] %v1261
        %1268 = vst [vmem:[#allocation2 + $0x50] sm:$0xf0] %v1262
        %1269 = vst.msk [vmem:[#allocation2 + $0x58] sm:$0xf0] %vm695, %v1263
        %v1270 = vld [vmem:[%s327] sm:$0xff]
        %v1271 = vld [vmem:[%s327 + $0x8] sm:$0xff]
        %v1274 = vcombine.high %v1270, %v1270
        %v1275 = vcombine.high %v1271, %v1271
        %1276 = vrot.lane.b32.xlu0 %v1270, 13
        %v1277 = vpop.permute.xlu0 %1276
        %1278 = vrot.lane.b32.xlu0 %v1274, 13
        %v1279 = vpop.permute.xlu0 %1278
        %1280 = vrot.lane.b32.xlu0 %v1271, 13
        %v1281 = vpop.permute.xlu0 %1280
        %1282 = vrot.lane.b32.xlu0 %v1275, 13
        %v1283 = vpop.permute.xlu0 %1282
        %vm1284 = vcmask 105472
        %v1285 = vsel %vm1284, %v1277, %v1279
        %v1286 = vsel %vm1284, %v1279, %v1281
        %v1287 = vsel %vm1284, %v1281, %v1283
        %1291 = vst [vmem:[#allocation2 + $0x60] sm:$0xf] %v1285
        %1292 = vst [vmem:[#allocation2 + $0x68] sm:$0xf] %v1286
        %1293 = vst.msk [vmem:[#allocation2 + $0x70] sm:$0xf] %vm670, %v1287
        %s1294 = scalar_lea.vmem [#allocation9], 32
        %v1295 = vld [vmem:[%s1294] sm:$0xff]
        %v1296 = vld [vmem:[%s1294 + $0x8] sm:$0xff]
        %v1297 = vld [vmem:[%s1294 + $0x10] sm:$0xff]
        %v1298 = vld [vmem:[%s1294 + $0x18] sm:$0xff]
        %v1299 = vld [vmem:[#allocation2] sm:$0xff]
        %v1300 = vld [vmem:[#allocation2 + $0x8] sm:$0xff]
        %v1301 = vld [vmem:[#allocation2 + $0x10] sm:$0xff]
        %v1302 = vld [vmem:[#allocation2 + $0x18] sm:$0xff]
        %v1303 = vld [vmem:[#allocation2 + $0x20] sm:$0xff]
        %v1304 = vld [vmem:[#allocation2 + $0x28] sm:$0xff]
        %v1305 = vld [vmem:[#allocation2 + $0x30] sm:$0xff]
        %v1306 = vld [vmem:[#allocation2 + $0x38] sm:$0xff]
        %v1307 = vld [vmem:[#allocation2 + $0x40] sm:$0xff]
        %v1308 = vld [vmem:[#allocation2 + $0x48] sm:$0xff]
        %v1309 = vld [vmem:[#allocation2 + $0x50] sm:$0xff]
        %v1310 = vld [vmem:[#allocation2 + $0x58] sm:$0xff]
        %v1311 = vld [vmem:[#allocation2 + $0x60] sm:$0xf]
        %v1312 = vld [vmem:[#allocation2 + $0x68] sm:$0xf]
        %v1313 = vld [vmem:[#allocation2 + $0x70] sm:$0xf]
        %s1314 = scalar_lea.vmem [#allocation15], 64
        %v1315 = vld [vmem:[%s1314] sm:$0xff]
        %v1316 = vld [vmem:[%s1314 + $0x8] sm:$0xff]
        %v1317 = vld [vmem:[%s1314 + $0x10] sm:$0xff]
        %v1318 = vld [vmem:[%s1314 + $0x18] sm:$0xff]
        %1320 = vset.pattern.permute.xlu0 0
        %1321 = vperm.xlu0 %1320, %v1315
        %v1322 = vpop.permute.xlu0 %1321
        %1325 = vset.pattern.permute.xlu0 0
        %1326 = vperm.xlu0 %1325, %v1316
        %v1327 = vpop.permute.xlu0 %1326
        %1330 = vset.pattern.permute.xlu0 0
        %1331 = vperm.xlu0 %1330, %v1317
        %v1332 = vpop.permute.xlu0 %1331
        %1335 = vset.pattern.permute.xlu0 0
        %1336 = vperm.xlu0 %1335, %v1318
        %v1337 = vpop.permute.xlu0 %1336
        %v1340 = vsel %vm837, %v1295, 0
        %v1343 = vsel %vm837, %v1296, 0
        %v1346 = vsel %vm837, %v1297, 0
        %v1349 = vsel %vm837, %v1298, 0
        %v1352 = vsel %vm441, %v1311, 0
        %v1355 = vsel %vm441, %v1312, 0
        %v1358 = vsel %vm441, %v1313, 0
        %1360 = vmatprep.subr.mxu0 %v1300
        %1361 = vmatpush1.msra.mxu0 %v1299
        %1362 = vmatprep.subr.mxu0 %v1303
        %1363 = vmatpush1.msra.mxu0 %v1302
        %1364 = vmatprep.subr.mxu0 %v1306
        %1365 = vmatpush1.msra.mxu0 %v1305
        %1366 = vmatprep.subr.mxu0 %v1309
        %1367 = vmatpush1.msra.mxu0 %v1308
        %1368 = vmatprep.subr.mxu0 %v1355
        %1369 = vmatpush1.msra.mxu0 %v1352
        %1370 = vmatprep.subr.mxu0 0.0
        %1371 = vmatpush1.msra.mxu0 0.0
        %1372 = vmatprep.subr.mxu0 0.0
        %1373 = vmatpush1.msra.mxu0 0.0
        %1374 = vmatprep.subr.mxu0 0.0
        %1375 = vmatpush1.msra.mxu0 0.0
        %1376 = vmatprep.subr.mxu0 0.0
        %1377 = vmatpush1.msra.mxu0 0.0
        %1378 = vmatprep.subr.mxu0 0.0
        %1379 = vmatpush1.msra.mxu0 0.0
        %1380 = vmatprep.subr.mxu0 0.0
        %1381 = vmatpush1.msra.mxu0 0.0
        %1382 = vmatprep.subr.mxu0 0.0
        %1383 = vmatpush1.msra.mxu0 0.0
        %1384 = vmatprep.subr.mxu0 0.0
        %1385 = vmatpush1.msra.mxu0 0.0
        %1386 = vmatprep.subr.mxu0 0.0
        %1387 = vmatpush1.msra.mxu0 0.0
        %1388 = vmatprep.subr.mxu0 0.0
        %1389 = vmatpush1.msra.mxu0 0.0
        %1390 = vmatprep.subr.mxu0 0.0
        %1391 = vmatpush1.msra.mxu0 0.0
        %1392 = vmatprep.subr.mxu0 0.0
        %1393 = vmatpush1.msra.mxu0 0.0
        %1394 = vmatprep.subr.mxu0 0.0
        %1395 = vmatpush1.msra.mxu0 0.0
        %1396 = vmatprep.subr.mxu0 0.0
        %1397 = vmatpush1.msra.mxu0 0.0
        %1398 = vmatprep.subr.mxu0 0.0
        %1399 = vmatpush1.msra.mxu0 0.0
        %1400 = vmatprep.subr.mxu0 0.0
        %1401 = vmatpush1.msra.mxu0 0.0
        %1402 = vmatprep.subr.mxu0 0.0
        %1403 = vmatpush1.msra.mxu0 0.0
        %1404 = vmatprep.subr.mxu0 0.0
        %1405 = vmatpush1.msra.mxu0 0.0
        %1406 = vmatprep.subr.mxu0 0.0
        %1407 = vmatpush1.msra.mxu0 0.0
        %1408 = vmatprep.subr.mxu0 0.0
        %1409 = vmatpush1.msra.mxu0 0.0
        %1410 = vmatprep.subr.mxu0 0.0
        %1411 = vmatpush1.msra.mxu0 0.0
        %1412 = vmatprep.subr.mxu0 0.0
        %1413 = vmatpush1.msra.mxu0 0.0
        %1414 = vmatprep.subr.mxu0 0.0
        %1415 = vmatpush1.msra.mxu0 0.0
        %1416 = vmatprep.subr.mxu0 0.0
        %1417 = vmatpush1.msra.mxu0 0.0
        %1418 = vmatprep.subr.mxu0 0.0
        %1419 = vmatpush1.msra.mxu0 0.0
        %1420 = vmatprep.subr.mxu0 0.0
        %1421 = vmatpush1.msra.mxu0 0.0
        %1422 = vmatprep.subr.mxu0 0.0
        %1423 = vmatpush1.msra.mxu0 0.0
        %1424 = vmatprep.mubr.f32.mxu0 0.0
        %1425 = vmatmul.mubr.f32.gmra.mrb[0].mxu0 %v1340
        %v1426 = vpop.f32.mrb[0].mxu0
        %v1427 = vadd.f32 %v1322, %v1426
        %v1428 = vpop.f32.mrb[0].mxu0
        %v1429 = vadd.f32 %v1322, %v1428
        %1430 = vmatprep.mubr.f32.mxu0 0.0
        %1431 = vmatmul.mubr.f32.gmra.mrb[0].mxu0 %v1343
        %v1432 = vpop.f32.mrb[0].mxu0
        %v1433 = vadd.f32 %v1327, %v1432
        %v1434 = vpop.f32.mrb[0].mxu0
        %v1435 = vadd.f32 %v1327, %v1434
        %1436 = vmatprep.mubr.f32.mxu0 0.0
        %1437 = vmatmul.mubr.f32.gmra.mrb[0].mxu0 %v1346
        %v1438 = vpop.f32.mrb[0].mxu0
        %v1439 = vadd.f32 %v1332, %v1438
        %v1440 = vpop.f32.mrb[0].mxu0
        %v1441 = vadd.f32 %v1332, %v1440
        %1442 = vmatprep.mubr.f32.mxu0 0.0
        %1443 = vmatmul.mubr.f32.gmra.mrb[0].mxu0 %v1349
        %v1444 = vpop.f32.mrb[0].mxu0
        %v1445 = vadd.f32 %v1337, %v1444
        %v1446 = vpop.f32.mrb[0].mxu0
        %v1447 = vadd.f32 %v1337, %v1446
        %1448 = vdwg.mxu0
        %1449 = vmatprep.subr.mxu0 0.0
        %1450 = vmatpush1.msra.mxu0 %v1301
        %1451 = vmatprep.subr.mxu0 0.0
        %1452 = vmatpush1.msra.mxu0 %v1304
        %1453 = vmatprep.subr.mxu0 0.0
        %1454 = vmatpush1.msra.mxu0 %v1307
        %1455 = vmatprep.subr.mxu0 0.0
        %1456 = vmatpush1.msra.mxu0 %v1310
        %1457 = vmatprep.subr.mxu0 0.0
        %1458 = vmatpush1.msra.mxu0 %v1358
        %1459 = vmatprep.subr.mxu0 0.0
        %1460 = vmatpush1.msra.mxu0 0.0
        %1461 = vmatprep.subr.mxu0 0.0
        %1462 = vmatpush1.msra.mxu0 0.0
        %1463 = vmatprep.subr.mxu0 0.0
        %1464 = vmatpush1.msra.mxu0 0.0
        %1465 = vmatprep.subr.mxu0 0.0
        %1466 = vmatpush1.msra.mxu0 0.0
        %1467 = vmatprep.subr.mxu0 0.0
        %1468 = vmatpush1.msra.mxu0 0.0
        %1469 = vmatprep.subr.mxu0 0.0
        %1470 = vmatpush1.msra.mxu0 0.0
        %1471 = vmatprep.subr.mxu0 0.0
        %1472 = vmatpush1.msra.mxu0 0.0
        %1473 = vmatprep.subr.mxu0 0.0
        %1474 = vmatpush1.msra.mxu0 0.0
        %1475 = vmatprep.subr.mxu0 0.0
        %1476 = vmatpush1.msra.mxu0 0.0
        %1477 = vmatprep.subr.mxu0 0.0
        %1478 = vmatpush1.msra.mxu0 0.0
        %1479 = vmatprep.subr.mxu0 0.0
        %1480 = vmatpush1.msra.mxu0 0.0
        %1481 = vmatprep.subr.mxu0 0.0
        %1482 = vmatpush1.msra.mxu0 0.0
        %1483 = vmatprep.subr.mxu0 0.0
        %1484 = vmatpush1.msra.mxu0 0.0
        %1485 = vmatprep.subr.mxu0 0.0
        %1486 = vmatpush1.msra.mxu0 0.0
        %1487 = vmatprep.subr.mxu0 0.0
        %1488 = vmatpush1.msra.mxu0 0.0
        %1489 = vmatprep.subr.mxu0 0.0
        %1490 = vmatpush1.msra.mxu0 0.0
        %1491 = vmatprep.subr.mxu0 0.0
        %1492 = vmatpush1.msra.mxu0 0.0
        %1493 = vmatprep.subr.mxu0 0.0
        %1494 = vmatpush1.msra.mxu0 0.0
        %1495 = vmatprep.subr.mxu0 0.0
        %1496 = vmatpush1.msra.mxu0 0.0
        %1497 = vmatprep.subr.mxu0 0.0
        %1498 = vmatpush1.msra.mxu0 0.0
        %1499 = vmatprep.subr.mxu0 0.0
        %1500 = vmatpush1.msra.mxu0 0.0
        %1501 = vmatprep.subr.mxu0 0.0
        %1502 = vmatpush1.msra.mxu0 0.0
        %1503 = vmatprep.subr.mxu0 0.0
        %1504 = vmatpush1.msra.mxu0 0.0
        %1505 = vmatprep.subr.mxu0 0.0
        %1506 = vmatpush1.msra.mxu0 0.0
        %1507 = vmatprep.subr.mxu0 0.0
        %1508 = vmatpush1.msra.mxu0 0.0
        %1509 = vmatprep.subr.mxu0 0.0
        %1510 = vmatpush1.msra.mxu0 0.0
        %1511 = vmatprep.subr.mxu0 0.0
        %1512 = vmatpush1.msra.mxu0 0.0
        %1513 = vmatprep.mubr.f32.mxu0 0.0
        %1514 = vmatmul.mubr.f32.gmra.mrb[0].mxu0 %v1340
        %v1515 = vpop.f32.mrb[0].mxu0
        %v1516 = vadd.f32 %v1322, %v1515
        %v1517 = vpop.f32.mrb[0].mxu0
        %1518 = vmatprep.mubr.f32.mxu0 0.0
        %1519 = vmatmul.mubr.f32.gmra.mrb[0].mxu0 %v1343
        %v1520 = vpop.f32.mrb[0].mxu0
        %v1521 = vadd.f32 %v1327, %v1520
        %v1522 = vpop.f32.mrb[0].mxu0
        %1523 = vmatprep.mubr.f32.mxu0 0.0
        %1524 = vmatmul.mubr.f32.gmra.mrb[0].mxu0 %v1346
        %v1525 = vpop.f32.mrb[0].mxu0
        %v1526 = vadd.f32 %v1332, %v1525
        %v1527 = vpop.f32.mrb[0].mxu0
        %1528 = vmatprep.mubr.f32.mxu0 0.0
        %1529 = vmatmul.mubr.f32.gmra.mrb[0].mxu0 %v1349
        %v1530 = vpop.f32.mrb[0].mxu0
        %v1531 = vadd.f32 %v1337, %v1530
        %v1532 = vpop.f32.mrb[0].mxu0
        %1533 = vdwg.mxu0
        %v1534 = vmax.f32 %v1427, 0.0
        %v1535 = vmax.f32 %v1429, 0.0
        %v1536 = vmax.f32 %v1516, 0.0
        %v1537 = vmax.f32 %v1433, 0.0
        %v1538 = vmax.f32 %v1435, 0.0
        %v1539 = vmax.f32 %v1521, 0.0
        %v1540 = vmax.f32 %v1439, 0.0
        %v1541 = vmax.f32 %v1441, 0.0
        %v1542 = vmax.f32 %v1526, 0.0
        %v1543 = vmax.f32 %v1445, 0.0
        %v1544 = vmax.f32 %v1447, 0.0
        %v1545 = vmax.f32 %v1531, 0.0
        %1546 = vst [vmem:[#allocation3 + $0xc0] sm:$0xff] %v1534
        %1547 = vst [vmem:[#allocation3 + $0xc8] sm:$0xff] %v1535
        %1548 = vst.msk [vmem:[#allocation3 + $0xd0] sm:$0xff] %vm636, %v1536
        %1549 = vst [vmem:[#allocation3 + $0xd8] sm:$0xff] %v1537
        %1550 = vst [vmem:[#allocation3 + $0xe0] sm:$0xff] %v1538
        %1551 = vst.msk [vmem:[#allocation3 + $0xe8] sm:$0xff] %vm636, %v1539
        %1552 = vst [vmem:[#allocation3 + $0xf0] sm:$0xff] %v1540
        %1553 = vst [vmem:[#allocation3 + $0xf8] sm:$0xff] %v1541
        %1554 = vst.msk [vmem:[#allocation3 + $0x100] sm:$0xff] %vm636, %v1542
        %1555 = vst [vmem:[#allocation3 + $0x108] sm:$0xff] %v1543
        %1556 = vst [vmem:[#allocation3 + $0x110] sm:$0xff] %v1544
        %1557 = vst.msk [vmem:[#allocation3 + $0x118] sm:$0xff] %vm636, %v1545
        %v1558 = vld [vmem:[%s327] sm:$0xff]
        %v1559 = vld [vmem:[%s327 + $0x8] sm:$0xf]
        %v1561 = vcombine.high %v1558, %v1558
        %1563 = vst [vmem:[#allocation2] sm:$0xf] %v1558
        %1564 = vst [vmem:[#allocation2 + $0x8] sm:$0xf] %v1561
        %1565 = vst.msk [vmem:[#allocation2 + $0x10] sm:$0xf] %vm670, %v1559
        %v1566 = vld [vmem:[%s327] sm:$0xff]
        %v1567 = vld [vmem:[%s327 + $0x8] sm:$0xf]
        %v1570 = vcombine.low %v1566, %v1566
        %v1571 = vcombine.low %v1567, %v1567
        %1572 = vrot.lane.b32.xlu0 %v1570, 125
        %v1573 = vpop.permute.xlu0 %1572
        %1574 = vrot.lane.b32.xlu0 %v1566, 125
        %v1575 = vpop.permute.xlu0 %1574
        %1576 = vrot.lane.b32.xlu0 %v1571, 125
        %v1577 = vpop.permute.xlu0 %1576
        %vm1578 = vcmask 1022976
        %v1579 = vsel %vm1578, %v1573, %v1575
        %v1580 = vsel %vm1578, %v1575, %v1577
        %1584 = vst [vmem:[#allocation2] sm:$0xf0] %v1579
        %1585 = vst [vmem:[#allocation2 + $0x8] sm:$0xf0] %v1580
        %1586 = vst.msk [vmem:[#allocation2 + $0x10] sm:$0xf0] %vm695, %v1577
        %v1587 = vld [vmem:[%s327] sm:$0xff]
        %v1588 = vld [vmem:[%s327 + $0x8] sm:$0xf]
        %v1591 = vcombine.high %v1587, %v1587
        %1592 = vrot.lane.b32.xlu0 %v1587, 122
        %v1593 = vpop.permute.xlu0 %1592
        %1594 = vrot.lane.b32.xlu0 %v1591, 122
        %v1595 = vpop.permute.xlu0 %1594
        %1596 = vrot.lane.b32.xlu0 %v1588, 122
        %v1597 = vpop.permute.xlu0 %1596
        %vm1598 = vcmask 998400
        %v1599 = vsel %vm1598, %v1593, %v1595
        %v1600 = vsel %vm1598, %v1595, %v1597
        %1604 = vst [vmem:[#allocation2 + $0x18] sm:$0xf] %v1599
        %1605 = vst [vmem:[#allocation2 + $0x20] sm:$0xf] %v1600
        %1606 = vst.msk [vmem:[#allocation2 + $0x28] sm:$0xf] %vm670, %v1597
        %v1607 = vld [vmem:[%s327] sm:$0xff]
        %v1608 = vld [vmem:[%s327 + $0x8] sm:$0xff]
        %v1611 = vcombine.low %v1607, %v1607
        %v1612 = vcombine.low %v1608, %v1608
        %1613 = vrot.lane.b32.xlu0 %v1611, 62
        %v1614 = vpop.permute.xlu0 %1613
        %1615 = vrot.lane.b32.xlu0 %v1607, 62
        %v1616 = vpop.permute.xlu0 %1615
        %1617 = vrot.lane.b32.xlu0 %v1612, 62
        %v1618 = vpop.permute.xlu0 %1617
        %1619 = vrot.lane.b32.xlu0 %v1608, 62
        %v1620 = vpop.permute.xlu0 %1619
        %vm1621 = vcmask 506880
        %v1622 = vsel %vm1621, %v1614, %v1616
        %v1623 = vsel %vm1621, %v1616, %v1618
        %v1624 = vsel %vm1621, %v1618, %v1620
        %1628 = vst [vmem:[#allocation2 + $0x18] sm:$0xf0] %v1622
        %1629 = vst [vmem:[#allocation2 + $0x20] sm:$0xf0] %v1623
        %1630 = vst.msk [vmem:[#allocation2 + $0x28] sm:$0xf0] %vm695, %v1624
        %1631 = vst [vmem:[#allocation2 + $0x30] sm:$0xf] %v425
        %1632 = vst [vmem:[#allocation2 + $0x38] sm:$0xf] %v426
        %1633 = vst.msk [vmem:[#allocation2 + $0x40] sm:$0xf] %vm670, %v427
        %v1634 = vld [vmem:[%s327] sm:$0xff]
        %v1635 = vld [vmem:[%s327 + $0x8] sm:$0xff]
        %v1638 = vcombine.low %v1634, %v1634
        %v1639 = vcombine.low %v1635, %v1635
        %1640 = vrot.lane.b32.xlu0 %v1638, 56
        %v1641 = vpop.permute.xlu0 %1640
        %1642 = vrot.lane.b32.xlu0 %v1634, 56
        %v1643 = vpop.permute.xlu0 %1642
        %1644 = vrot.lane.b32.xlu0 %v1639, 56
        %v1645 = vpop.permute.xlu0 %1644
        %1646 = vrot.lane.b32.xlu0 %v1635, 56
        %v1647 = vpop.permute.xlu0 %1646
        %vm1648 = vcmask 457728
        %v1649 = vsel %vm1648, %v1641, %v1643
        %v1650 = vsel %vm1648, %v1643, %v1645
        %v1651 = vsel %vm1648, %v1645, %v1647
        %1655 = vst [vmem:[#allocation2 + $0x30] sm:$0xf0] %v1649
        %1656 = vst [vmem:[#allocation2 + $0x38] sm:$0xf0] %v1650
        %1657 = vst.msk [vmem:[#allocation2 + $0x40] sm:$0xf0] %vm695, %v1651
        %v1658 = vld [vmem:[%s327 + $0x4] sm:$0xff]
        %v1659 = vld [vmem:[%s327 + $0xc] sm:$0xf]
        %v1662 = vcombine.high %v1658, %v1658
        %1663 = vrot.lane.b32.xlu0 %v1658, 124
        %v1664 = vpop.permute.xlu0 %1663
        %1665 = vrot.lane.b32.xlu0 %v1662, 124
        %v1666 = vpop.permute.xlu0 %1665
        %1667 = vrot.lane.b32.xlu0 %v1659, 124
        %v1668 = vpop.permute.xlu0 %1667
        %vm1669 = vcmask 1014784
        %v1670 = vsel %vm1669, %v1664, %v1666
        %v1671 = vsel %vm1669, %v1666, %v1668
        %1675 = vst [vmem:[#allocation2 + $0x48] sm:$0xf] %v1670
        %1676 = vst [vmem:[#allocation2 + $0x50] sm:$0xf] %v1671
        %1677 = vst.msk [vmem:[#allocation2 + $0x58] sm:$0xf] %vm670, %v1668
        %v1678 = vld [vmem:[%s327 + $0x4] sm:$0xff]
        %v1679 = vld [vmem:[%s327 + $0xc] sm:$0xf]
        %v1682 = vcombine.low %v1678, %v1678
        %v1683 = vcombine.low %v1679, %v1679
        %1684 = vrot.lane.b32.xlu0 %v1682, 121
        %v1685 = vpop.permute.xlu0 %1684
        %1686 = vrot.lane.b32.xlu0 %v1678, 121
        %v1687 = vpop.permute.xlu0 %1686
        %1688 = vrot.lane.b32.xlu0 %v1683, 121
        %v1689 = vpop.permute.xlu0 %1688
        %vm1690 = vcmask 990208
        %v1691 = vsel %vm1690, %v1685, %v1687
        %v1692 = vsel %vm1690, %v1687, %v1689
        %1696 = vst [vmem:[#allocation2 + $0x48] sm:$0xf0] %v1691
        %1697 = vst [vmem:[#allocation2 + $0x50] sm:$0xf0] %v1692
        %1698 = vst.msk [vmem:[#allocation2 + $0x58] sm:$0xf0] %vm695, %v1689
        %v1699 = vld [vmem:[%s327 + $0x4] sm:$0xff]
        %v1700 = vld [vmem:[%s327 + $0xc] sm:$0xf]
        %v1703 = vcombine.high %v1699, %v1699
        %1704 = vrot.lane.b32.xlu0 %v1699, 118
        %v1705 = vpop.permute.xlu0 %1704
        %1706 = vrot.lane.b32.xlu0 %v1703, 118
        %v1707 = vpop.permute.xlu0 %1706
        %1708 = vrot.lane.b32.xlu0 %v1700, 118
        %v1709 = vpop.permute.xlu0 %1708
        %vm1710 = vcmask 965632
        %v1711 = vsel %vm1710, %v1705, %v1707
        %v1712 = vsel %vm1710, %v1707, %v1709
        %1716 = vst [vmem:[#allocation2 + $0x60] sm:$0xf] %v1711
        %1717 = vst [vmem:[#allocation2 + $0x68] sm:$0xf] %v1712
        %1718 = vst.msk [vmem:[#allocation2 + $0x70] sm:$0xf] %vm670, %v1709
        %s1719 = scalar_lea.vmem [#allocation9], 64
        %v1720 = vld [vmem:[%s1719] sm:$0xff]
        %v1721 = vld [vmem:[%s1719 + $0x8] sm:$0xff]
        %v1722 = vld [vmem:[%s1719 + $0x10] sm:$0xff]
        %v1723 = vld [vmem:[%s1719 + $0x18] sm:$0xff]
        %v1724 = vld [vmem:[#allocation2] sm:$0xff]
        %v1725 = vld [vmem:[#allocation2 + $0x8] sm:$0xff]
        %v1726 = vld [vmem:[#allocation2 + $0x10] sm:$0xff]
        %v1727 = vld [vmem:[#allocation2 + $0x18] sm:$0xff]
        %v1728 = vld [vmem:[#allocation2 + $0x20] sm:$0xff]
        %v1729 = vld [vmem:[#allocation2 + $0x28] sm:$0xff]
        %v1730 = vld [vmem:[#allocation2 + $0x30] sm:$0xff]
        %v1731 = vld [vmem:[#allocation2 + $0x38] sm:$0xff]
        %v1732 = vld [vmem:[#allocation2 + $0x40] sm:$0xff]
        %v1733 = vld [vmem:[#allocation2 + $0x48] sm:$0xff]
        %v1734 = vld [vmem:[#allocation2 + $0x50] sm:$0xff]
        %v1735 = vld [vmem:[#allocation2 + $0x58] sm:$0xff]
        %v1736 = vld [vmem:[#allocation2 + $0x60] sm:$0xf]
        %v1737 = vld [vmem:[#allocation2 + $0x68] sm:$0xf]
        %v1738 = vld [vmem:[#allocation2 + $0x70] sm:$0xf]
        %s1739 = scalar_lea.vmem [#allocation15], 96
        %v1740 = vld [vmem:[%s1739] sm:$0xff]
        %v1741 = vld [vmem:[%s1739 + $0x8] sm:$0xff]
        %v1742 = vld [vmem:[%s1739 + $0x10] sm:$0xff]
        %v1743 = vld [vmem:[%s1739 + $0x18] sm:$0xff]
        %1745 = vset.pattern.permute.xlu0 0
        %1746 = vperm.xlu0 %1745, %v1740
        %v1747 = vpop.permute.xlu0 %1746
        %1750 = vset.pattern.permute.xlu0 0
        %1751 = vperm.xlu0 %1750, %v1741
        %v1752 = vpop.permute.xlu0 %1751
        %1755 = vset.pattern.permute.xlu0 0
        %1756 = vperm.xlu0 %1755, %v1742
        %v1757 = vpop.permute.xlu0 %1756
        %1760 = vset.pattern.permute.xlu0 0
        %1761 = vperm.xlu0 %1760, %v1743
        %v1762 = vpop.permute.xlu0 %1761
        %v1765 = vsel %vm837, %v1720, 0
        %v1768 = vsel %vm837, %v1721, 0
        %v1771 = vsel %vm837, %v1722, 0
        %v1774 = vsel %vm837, %v1723, 0
        %v1777 = vsel %vm441, %v1736, 0
        %v1780 = vsel %vm441, %v1737, 0
        %v1783 = vsel %vm441, %v1738, 0
        %1785 = vmatprep.subr.mxu0 %v1725
        %1786 = vmatpush1.msra.mxu0 %v1724
        %1787 = vmatprep.subr.mxu0 %v1728
        %1788 = vmatpush1.msra.mxu0 %v1727
        %1789 = vmatprep.subr.mxu0 %v1731
        %1790 = vmatpush1.msra.mxu0 %v1730
        %1791 = vmatprep.subr.mxu0 %v1734
        %1792 = vmatpush1.msra.mxu0 %v1733
        %1793 = vmatprep.subr.mxu0 %v1780
        %1794 = vmatpush1.msra.mxu0 %v1777
        %1795 = vmatprep.subr.mxu0 0.0
        %1796 = vmatpush1.msra.mxu0 0.0
        %1797 = vmatprep.subr.mxu0 0.0
        %1798 = vmatpush1.msra.mxu0 0.0
        %1799 = vmatprep.subr.mxu0 0.0
        %1800 = vmatpush1.msra.mxu0 0.0
        %1801 = vmatprep.subr.mxu0 0.0
        %1802 = vmatpush1.msra.mxu0 0.0
        %1803 = vmatprep.subr.mxu0 0.0
        %1804 = vmatpush1.msra.mxu0 0.0
        %1805 = vmatprep.subr.mxu0 0.0
        %1806 = vmatpush1.msra.mxu0 0.0
        %1807 = vmatprep.subr.mxu0 0.0
        %1808 = vmatpush1.msra.mxu0 0.0
        %1809 = vmatprep.subr.mxu0 0.0
        %1810 = vmatpush1.msra.mxu0 0.0
        %1811 = vmatprep.subr.mxu0 0.0
        %1812 = vmatpush1.msra.mxu0 0.0
        %1813 = vmatprep.subr.mxu0 0.0
        %1814 = vmatpush1.msra.mxu0 0.0
        %1815 = vmatprep.subr.mxu0 0.0
        %1816 = vmatpush1.msra.mxu0 0.0
        %1817 = vmatprep.subr.mxu0 0.0
        %1818 = vmatpush1.msra.mxu0 0.0
        %1819 = vmatprep.subr.mxu0 0.0
        %1820 = vmatpush1.msra.mxu0 0.0
        %1821 = vmatprep.subr.mxu0 0.0
        %1822 = vmatpush1.msra.mxu0 0.0
        %1823 = vmatprep.subr.mxu0 0.0
        %1824 = vmatpush1.msra.mxu0 0.0
        %1825 = vmatprep.subr.mxu0 0.0
        %1826 = vmatpush1.msra.mxu0 0.0
        %1827 = vmatprep.subr.mxu0 0.0
        %1828 = vmatpush1.msra.mxu0 0.0
        %1829 = vmatprep.subr.mxu0 0.0
        %1830 = vmatpush1.msra.mxu0 0.0
        %1831 = vmatprep.subr.mxu0 0.0
        %1832 = vmatpush1.msra.mxu0 0.0
        %1833 = vmatprep.subr.mxu0 0.0
        %1834 = vmatpush1.msra.mxu0 0.0
        %1835 = vmatprep.subr.mxu0 0.0
        %1836 = vmatpush1.msra.mxu0 0.0
        %1837 = vmatprep.subr.mxu0 0.0
        %1838 = vmatpush1.msra.mxu0 0.0
        %1839 = vmatprep.subr.mxu0 0.0
        %1840 = vmatpush1.msra.mxu0 0.0
        %1841 = vmatprep.subr.mxu0 0.0
        %1842 = vmatpush1.msra.mxu0 0.0
        %1843 = vmatprep.subr.mxu0 0.0
        %1844 = vmatpush1.msra.mxu0 0.0
        %1845 = vmatprep.subr.mxu0 0.0
        %1846 = vmatpush1.msra.mxu0 0.0
        %1847 = vmatprep.subr.mxu0 0.0
        %1848 = vmatpush1.msra.mxu0 0.0
        %1849 = vmatprep.mubr.f32.mxu0 0.0
        %1850 = vmatmul.mubr.f32.gmra.mrb[0].mxu0 %v1765
        %v1851 = vpop.f32.mrb[0].mxu0
        %v1852 = vadd.f32 %v1747, %v1851
        %v1853 = vpop.f32.mrb[0].mxu0
        %v1854 = vadd.f32 %v1747, %v1853
        %1855 = vmatprep.mubr.f32.mxu0 0.0
        %1856 = vmatmul.mubr.f32.gmra.mrb[0].mxu0 %v1768
        %v1857 = vpop.f32.mrb[0].mxu0
        %v1858 = vadd.f32 %v1752, %v1857
        %v1859 = vpop.f32.mrb[0].mxu0
        %v1860 = vadd.f32 %v1752, %v1859
        %1861 = vmatprep.mubr.f32.mxu0 0.0
        %1862 = vmatmul.mubr.f32.gmra.mrb[0].mxu0 %v1771
        %v1863 = vpop.f32.mrb[0].mxu0
        %v1864 = vadd.f32 %v1757, %v1863
        %v1865 = vpop.f32.mrb[0].mxu0
        %v1866 = vadd.f32 %v1757, %v1865
        %1867 = vmatprep.mubr.f32.mxu0 0.0
        %1868 = vmatmul.mubr.f32.gmra.mrb[0].mxu0 %v1774
        %v1869 = vpop.f32.mrb[0].mxu0
        %v1870 = vadd.f32 %v1762, %v1869
        %v1871 = vpop.f32.mrb[0].mxu0
        %v1872 = vadd.f32 %v1762, %v1871
        %1873 = vdwg.mxu0
        %1874 = vmatprep.subr.mxu0 0.0
        %1875 = vmatpush1.msra.mxu0 %v1726
        %1876 = vmatprep.subr.mxu0 0.0
        %1877 = vmatpush1.msra.mxu0 %v1729
        %1878 = vmatprep.subr.mxu0 0.0
        %1879 = vmatpush1.msra.mxu0 %v1732
        %1880 = vmatprep.subr.mxu0 0.0
        %1881 = vmatpush1.msra.mxu0 %v1735
        %1882 = vmatprep.subr.mxu0 0.0
        %1883 = vmatpush1.msra.mxu0 %v1783
        %1884 = vmatprep.subr.mxu0 0.0
        %1885 = vmatpush1.msra.mxu0 0.0
        %1886 = vmatprep.subr.mxu0 0.0
        %1887 = vmatpush1.msra.mxu0 0.0
        %1888 = vmatprep.subr.mxu0 0.0
        %1889 = vmatpush1.msra.mxu0 0.0
        %1890 = vmatprep.subr.mxu0 0.0
        %1891 = vmatpush1.msra.mxu0 0.0
        %1892 = vmatprep.subr.mxu0 0.0
        %1893 = vmatpush1.msra.mxu0 0.0
        %1894 = vmatprep.subr.mxu0 0.0
        %1895 = vmatpush1.msra.mxu0 0.0
        %1896 = vmatprep.subr.mxu0 0.0
        %1897 = vmatpush1.msra.mxu0 0.0
        %1898 = vmatprep.subr.mxu0 0.0
        %1899 = vmatpush1.msra.mxu0 0.0
        %1900 = vmatprep.subr.mxu0 0.0
        %1901 = vmatpush1.msra.mxu0 0.0
        %1902 = vmatprep.subr.mxu0 0.0
        %1903 = vmatpush1.msra.mxu0 0.0
        %1904 = vmatprep.subr.mxu0 0.0
        %1905 = vmatpush1.msra.mxu0 0.0
        %1906 = vmatprep.subr.mxu0 0.0
        %1907 = vmatpush1.msra.mxu0 0.0
        %1908 = vmatprep.subr.mxu0 0.0
        %1909 = vmatpush1.msra.mxu0 0.0
        %1910 = vmatprep.subr.mxu0 0.0
        %1911 = vmatpush1.msra.mxu0 0.0
        %1912 = vmatprep.subr.mxu0 0.0
        %1913 = vmatpush1.msra.mxu0 0.0
        %1914 = vmatprep.subr.mxu0 0.0
        %1915 = vmatpush1.msra.mxu0 0.0
        %1916 = vmatprep.subr.mxu0 0.0
        %1917 = vmatpush1.msra.mxu0 0.0
        %1918 = vmatprep.subr.mxu0 0.0
        %1919 = vmatpush1.msra.mxu0 0.0
        %1920 = vmatprep.subr.mxu0 0.0
        %1921 = vmatpush1.msra.mxu0 0.0
        %1922 = vmatprep.subr.mxu0 0.0
        %1923 = vmatpush1.msra.mxu0 0.0
        %1924 = vmatprep.subr.mxu0 0.0
        %1925 = vmatpush1.msra.mxu0 0.0
        %1926 = vmatprep.subr.mxu0 0.0
        %1927 = vmatpush1.msra.mxu0 0.0
        %1928 = vmatprep.subr.mxu0 0.0
        %1929 = vmatpush1.msra.mxu0 0.0
        %1930 = vmatprep.subr.mxu0 0.0
        %1931 = vmatpush1.msra.mxu0 0.0
        %1932 = vmatprep.subr.mxu0 0.0
        %1933 = vmatpush1.msra.mxu0 0.0
        %1934 = vmatprep.subr.mxu0 0.0
        %1935 = vmatpush1.msra.mxu0 0.0
        %1936 = vmatprep.subr.mxu0 0.0
        %1937 = vmatpush1.msra.mxu0 0.0
        %1938 = vmatprep.mubr.f32.mxu0 0.0
        %1939 = vmatmul.mubr.f32.gmra.mrb[0].mxu0 %v1765
        %v1940 = vpop.f32.mrb[0].mxu0
        %v1941 = vadd.f32 %v1747, %v1940
        %v1942 = vpop.f32.mrb[0].mxu0
        %1943 = vmatprep.mubr.f32.mxu0 0.0
        %1944 = vmatmul.mubr.f32.gmra.mrb[0].mxu0 %v1768
        %v1945 = vpop.f32.mrb[0].mxu0
        %v1946 = vadd.f32 %v1752, %v1945
        %v1947 = vpop.f32.mrb[0].mxu0
        %1948 = vmatprep.mubr.f32.mxu0 0.0
        %1949 = vmatmul.mubr.f32.gmra.mrb[0].mxu0 %v1771
        %v1950 = vpop.f32.mrb[0].mxu0
        %v1951 = vadd.f32 %v1757, %v1950
        %v1952 = vpop.f32.mrb[0].mxu0
        %1953 = vmatprep.mubr.f32.mxu0 0.0
        %1954 = vmatmul.mubr.f32.gmra.mrb[0].mxu0 %v1774
        %v1955 = vpop.f32.mrb[0].mxu0
        %v1956 = vadd.f32 %v1762, %v1955
        %v1957 = vpop.f32.mrb[0].mxu0
        %1958 = vdwg.mxu0
        %v1959 = vmax.f32 %v1852, 0.0
        %v1960 = vmax.f32 %v1854, 0.0
        %v1961 = vmax.f32 %v1941, 0.0
        %v1962 = vmax.f32 %v1858, 0.0
        %v1963 = vmax.f32 %v1860, 0.0
        %v1964 = vmax.f32 %v1946, 0.0
        %v1965 = vmax.f32 %v1864, 0.0
        %v1966 = vmax.f32 %v1866, 0.0
        %v1967 = vmax.f32 %v1951, 0.0
        %v1968 = vmax.f32 %v1870, 0.0
        %v1969 = vmax.f32 %v1872, 0.0
        %v1970 = vmax.f32 %v1956, 0.0
        %1971 = vst [vmem:[#allocation3 + $0x120] sm:$0xff] %v1959
        %1972 = vst [vmem:[#allocation3 + $0x128] sm:$0xff] %v1960
        %1973 = vst.msk [vmem:[#allocation3 + $0x130] sm:$0xff] %vm636, %v1961
        %1974 = vst [vmem:[#allocation3 + $0x138] sm:$0xff] %v1962
        %1975 = vst [vmem:[#allocation3 + $0x140] sm:$0xff] %v1963
        %1976 = vst.msk [vmem:[#allocation3 + $0x148] sm:$0xff] %vm636, %v1964
        %1977 = vst [vmem:[#allocation3 + $0x150] sm:$0xff] %v1965
        %1978 = vst [vmem:[#allocation3 + $0x158] sm:$0xff] %v1966
        %1979 = vst.msk [vmem:[#allocation3 + $0x160] sm:$0xff] %vm636, %v1967
        %1980 = vst [vmem:[#allocation3 + $0x168] sm:$0xff] %v1968
        %1981 = vst [vmem:[#allocation3 + $0x170] sm:$0xff] %v1969
        %1982 = vst.msk [vmem:[#allocation3 + $0x178] sm:$0xff] %vm636, %v1970
        %v1983 = vld [vmem:[#allocation12] sm:$0xff]
        %v1984 = vld [vmem:[#allocation12 + $0x8] sm:$0xff]
        %v1985 = vld [vmem:[#allocation12 + $0x10] sm:$0xff]
        %v1986 = vld [vmem:[#allocation12 + $0x18] sm:$0xff]
        %v1987 = vld [vmem:[#allocation3] sm:$0xff]
        %v1988 = vld [vmem:[#allocation3 + $0x8] sm:$0xff]
        %v1989 = vld [vmem:[#allocation3 + $0x10] sm:$0xff]
        %v1990 = vld [vmem:[#allocation3 + $0x18] sm:$0xff]
        %v1991 = vld [vmem:[#allocation3 + $0x20] sm:$0xff]
        %v1992 = vld [vmem:[#allocation3 + $0x28] sm:$0xff]
        %v1993 = vld [vmem:[#allocation3 + $0x30] sm:$0xff]
        %v1994 = vld [vmem:[#allocation3 + $0x38] sm:$0xff]
        %v1995 = vld [vmem:[#allocation3 + $0x40] sm:$0xff]
        %v1996 = vld [vmem:[#allocation3 + $0x48] sm:$0xff]
        %v1997 = vld [vmem:[#allocation3 + $0x50] sm:$0xff]
        %v1998 = vld [vmem:[#allocation3 + $0x58] sm:$0xff]
        %v1999 = vld [vmem:[#allocation3 + $0x60] sm:$0xff]
        %v2000 = vld [vmem:[#allocation3 + $0x68] sm:$0xff]
        %v2001 = vld [vmem:[#allocation3 + $0x70] sm:$0xff]
        %v2002 = vld [vmem:[#allocation3 + $0x78] sm:$0xff]
        %v2003 = vld [vmem:[#allocation3 + $0x80] sm:$0xff]
        %v2004 = vld [vmem:[#allocation3 + $0x88] sm:$0xff]
        %v2005 = vld [vmem:[#allocation3 + $0x90] sm:$0xff]
        %v2006 = vld [vmem:[#allocation3 + $0x98] sm:$0xff]
        %v2007 = vld [vmem:[#allocation3 + $0xa0] sm:$0xff]
        %v2008 = vld [vmem:[#allocation3 + $0xa8] sm:$0xff]
        %v2009 = vld [vmem:[#allocation3 + $0xb0] sm:$0xff]
        %v2010 = vld [vmem:[#allocation3 + $0xb8] sm:$0xff]
        %v2011 = vld [vmem:[#allocation3 + $0xc0] sm:$0xff]
        %v2012 = vld [vmem:[#allocation3 + $0xc8] sm:$0xff]
        %v2013 = vld [vmem:[#allocation3 + $0xd0] sm:$0xff]
        %v2014 = vld [vmem:[#allocation3 + $0xd8] sm:$0xff]
        %v2015 = vld [vmem:[#allocation3 + $0xe0] sm:$0xff]
        %v2016 = vld [vmem:[#allocation3 + $0xe8] sm:$0xff]
        %v2017 = vld [vmem:[#allocation3 + $0xf0] sm:$0xff]
        %v2018 = vld [vmem:[#allocation3 + $0xf8] sm:$0xff]
        %v2019 = vld [vmem:[#allocation3 + $0x100] sm:$0xff]
        %v2020 = vld [vmem:[#allocation3 + $0x108] sm:$0xff]
        %v2021 = vld [vmem:[#allocation3 + $0x110] sm:$0xff]
        %v2022 = vld [vmem:[#allocation3 + $0x118] sm:$0xff]
        %v2023 = vld [vmem:[#allocation3 + $0x120] sm:$0xff]
        %v2024 = vld [vmem:[#allocation3 + $0x128] sm:$0xff]
        %v2025 = vld [vmem:[#allocation3 + $0x130] sm:$0xff]
        %v2026 = vld [vmem:[#allocation3 + $0x138] sm:$0xff]
        %v2027 = vld [vmem:[#allocation3 + $0x140] sm:$0xff]
        %v2028 = vld [vmem:[#allocation3 + $0x148] sm:$0xff]
        %v2029 = vld [vmem:[#allocation3 + $0x150] sm:$0xff]
        %v2030 = vld [vmem:[#allocation3 + $0x158] sm:$0xff]
        %v2031 = vld [vmem:[#allocation3 + $0x160] sm:$0xff]
        %v2032 = vld [vmem:[#allocation3 + $0x168] sm:$0xff]
        %v2033 = vld [vmem:[#allocation3 + $0x170] sm:$0xff]
        %v2034 = vld [vmem:[#allocation3 + $0x178] sm:$0xff]
        %v2035 = vsel %vm441, %v425, 0.0
        %v2036 = vsel %vm441, %v426, 0.0
        %v2037 = vadd.f32 %v2035, %v2036
        %v2038 = vsel %vm670, %v427, 0.0
        %v2039 = vadd.f32 %v2037, %v2038
        %2040 = vadd.xlane.f32.xlu0 %v2039
        %v2041 = vpop.xlane.xlu0 %2040
        %v2042 = vmul.f32 %v2041, 0.00390625
        %v2043 = vld [vmem:[#allocation10] sm:$0xff]
        %v2044 = vld [vmem:[#allocation10 + $0x8] sm:$0xff]
        %v2045 = vld [vmem:[#allocation10 + $0x10] sm:$0xff]
        %v2046 = vld [vmem:[#allocation10 + $0x18] sm:$0xff]
        %s2047 = scalar_lea.vmem [#allocation15], 128
        %v2048 = vld [vmem:[%s2047] sm:$0xff]
        %v2049 = vld [vmem:[%s2047 + $0x8] sm:$0xff]
        %v2050 = vld [vmem:[%s2047 + $0x10] sm:$0xff]
        %v2051 = vld [vmem:[%s2047 + $0x18] sm:$0xff]
        %v2053 = vsel %vm428, %v2043, 0
        %v2056 = vsel %vm428, %v2044, 0
        %v2059 = vsel %vm428, %v2045, 0
        %v2062 = vsel %vm428, %v2046, 0
        %v2065 = vsel %vm441, %v2042, 0
        %2067 = vmatprep.subr.mxu0 0.0
        %2068 = vmatpush1.msra.mxu0 %v2065
        %2069 = vmatprep.subr.mxu0 0.0
        %2070 = vmatpush1.msra.mxu0 0.0
        %2071 = vmatprep.subr.mxu0 0.0
        %2072 = vmatpush1.msra.mxu0 0.0
        %2073 = vmatprep.subr.mxu0 0.0
        %2074 = vmatpush1.msra.mxu0 0.0
        %2075 = vmatprep.subr.mxu0 0.0
        %2076 = vmatpush1.msra.mxu0 0.0
        %2077 = vmatprep.subr.mxu0 0.0
        %2078 = vmatpush1.msra.mxu0 0.0
        %2079 = vmatprep.subr.mxu0 0.0
        %2080 = vmatpush1.msra.mxu0 0.0
        %2081 = vmatprep.subr.mxu0 0.0
        %2082 = vmatpush1.msra.mxu0 0.0
        %2083 = vmatprep.subr.mxu0 0.0
        %2084 = vmatpush1.msra.mxu0 0.0
        %2085 = vmatprep.subr.mxu0 0.0
        %2086 = vmatpush1.msra.mxu0 0.0
        %2087 = vmatprep.subr.mxu0 0.0
        %2088 = vmatpush1.msra.mxu0 0.0
        %2089 = vmatprep.subr.mxu0 0.0
        %2090 = vmatpush1.msra.mxu0 0.0
        %2091 = vmatprep.subr.mxu0 0.0
        %2092 = vmatpush1.msra.mxu0 0.0
        %2093 = vmatprep.subr.mxu0 0.0
        %2094 = vmatpush1.msra.mxu0 0.0
        %2095 = vmatprep.subr.mxu0 0.0
        %2096 = vmatpush1.msra.mxu0 0.0
        %2097 = vmatprep.subr.mxu0 0.0
        %2098 = vmatpush1.msra.mxu0 0.0
        %2099 = vmatprep.subr.mxu0 0.0
        %2100 = vmatpush1.msra.mxu0 0.0
        %2101 = vmatprep.subr.mxu0 0.0
        %2102 = vmatpush1.msra.mxu0 0.0
        %2103 = vmatprep.subr.mxu0 0.0
        %2104 = vmatpush1.msra.mxu0 0.0
        %2105 = vmatprep.subr.mxu0 0.0
        %2106 = vmatpush1.msra.mxu0 0.0
        %2107 = vmatprep.subr.mxu0 0.0
        %2108 = vmatpush1.msra.mxu0 0.0
        %2109 = vmatprep.subr.mxu0 0.0
        %2110 = vmatpush1.msra.mxu0 0.0
        %2111 = vmatprep.subr.mxu0 0.0
        %2112 = vmatpush1.msra.mxu0 0.0
        %2113 = vmatprep.subr.mxu0 0.0
        %2114 = vmatpush1.msra.mxu0 0.0
        %2115 = vmatprep.subr.mxu0 0.0
        %2116 = vmatpush1.msra.mxu0 0.0
        %2117 = vmatprep.subr.mxu0 0.0
        %2118 = vmatpush1.msra.mxu0 0.0
        %2119 = vmatprep.subr.mxu0 0.0
        %2120 = vmatpush1.msra.mxu0 0.0
        %2121 = vmatprep.subr.mxu0 0.0
        %2122 = vmatpush1.msra.mxu0 0.0
        %2123 = vmatprep.subr.mxu0 0.0
        %2124 = vmatpush1.msra.mxu0 0.0
        %2125 = vmatprep.subr.mxu0 0.0
        %2126 = vmatpush1.msra.mxu0 0.0
        %2127 = vmatprep.subr.mxu0 0.0
        %2128 = vmatpush1.msra.mxu0 0.0
        %2129 = vmatprep.subr.mxu0 0.0
        %2130 = vmatpush1.msra.mxu0 0.0
        %2131 = vmatprep.mubr.f32.mxu0 0.0
        %2132 = vmatmul.mubr.f32.gmra.mrb[0].mxu0 %v2053
        %v2133 = vpop.f32.mrb[0].mxu0
        %v2134 = vadd.f32 %v2048, %v2133
        %v2135 = vpop.f32.mrb[0].mxu0
        %2136 = vmatprep.mubr.f32.mxu0 0.0
        %2137 = vmatmul.mubr.f32.gmra.mrb[0].mxu0 %v2056
        %v2138 = vpop.f32.mrb[0].mxu0
        %v2139 = vadd.f32 %v2049, %v2138
        %v2140 = vpop.f32.mrb[0].mxu0
        %2141 = vmatprep.mubr.f32.mxu0 0.0
        %2142 = vmatmul.mubr.f32.gmra.mrb[0].mxu0 %v2059
        %v2143 = vpop.f32.mrb[0].mxu0
        %v2144 = vadd.f32 %v2050, %v2143
        %v2145 = vpop.f32.mrb[0].mxu0
        %2146 = vmatprep.mubr.f32.mxu0 0.0
        %2147 = vmatmul.mubr.f32.gmra.mrb[0].mxu0 %v2062
        %v2148 = vpop.f32.mrb[0].mxu0
        %v2149 = vadd.f32 %v2051, %v2148
        %v2150 = vpop.f32.mrb[0].mxu0
        %2151 = vdwg.mxu0
        %v2152 = vmax.f32 %v2134, 0.0
        %v2153 = vmax.f32 %v2139, 0.0
        %v2154 = vmax.f32 %v2144, 0.0
        %v2155 = vmax.f32 %v2149, 0.0
        %v2156 = vld [vmem:[#allocation13] sm:$0xff]
        %v2157 = vld [vmem:[#allocation13 + $0x8] sm:$0xff]
        %v2158 = vld [vmem:[#allocation13 + $0x10] sm:$0xff]
        %v2159 = vld [vmem:[#allocation13 + $0x18] sm:$0xff]
        %vm2160 = vcmask 261120
        %v2162 = vsel %vm2160, %v2156, 0
        %v2165 = vsel %vm2160, %v2157, 0
        %v2168 = vsel %vm2160, %v2158, 0
        %v2171 = vsel %vm2160, %v2159, 0
        %2173 = vmatprep.subr.mxu0 0.0
        %2174 = vmatpush1.msra.mxu0 %v2152
        %2175 = vmatprep.subr.mxu0 0.0
        %2176 = vmatpush1.msra.mxu0 %v2153
        %2177 = vmatprep.subr.mxu0 0.0
        %2178 = vmatpush1.msra.mxu0 %v2154
        %2179 = vmatprep.subr.mxu0 0.0
        %2180 = vmatpush1.msra.mxu0 %v2155
        %2181 = vmatprep.subr.mxu0 0.0
        %2182 = vmatpush1.msra.mxu0 0.0
        %2183 = vmatprep.subr.mxu0 0.0
        %2184 = vmatpush1.msra.mxu0 0.0
        %2185 = vmatprep.subr.mxu0 0.0
        %2186 = vmatpush1.msra.mxu0 0.0
        %2187 = vmatprep.subr.mxu0 0.0
        %2188 = vmatpush1.msra.mxu0 0.0
        %2189 = vmatprep.subr.mxu0 0.0
        %2190 = vmatpush1.msra.mxu0 0.0
        %2191 = vmatprep.subr.mxu0 0.0
        %2192 = vmatpush1.msra.mxu0 0.0
        %2193 = vmatprep.subr.mxu0 0.0
        %2194 = vmatpush1.msra.mxu0 0.0
        %2195 = vmatprep.subr.mxu0 0.0
        %2196 = vmatpush1.msra.mxu0 0.0
        %2197 = vmatprep.subr.mxu0 0.0
        %2198 = vmatpush1.msra.mxu0 0.0
        %2199 = vmatprep.subr.mxu0 0.0
        %2200 = vmatpush1.msra.mxu0 0.0
        %2201 = vmatprep.subr.mxu0 0.0
        %2202 = vmatpush1.msra.mxu0 0.0
        %2203 = vmatprep.subr.mxu0 0.0
        %2204 = vmatpush1.msra.mxu0 0.0
        %2205 = vmatprep.subr.mxu0 0.0
        %2206 = vmatpush1.msra.mxu0 0.0
        %2207 = vmatprep.subr.mxu0 0.0
        %2208 = vmatpush1.msra.mxu0 0.0
        %2209 = vmatprep.subr.mxu0 0.0
        %2210 = vmatpush1.msra.mxu0 0.0
        %2211 = vmatprep.subr.mxu0 0.0
        %2212 = vmatpush1.msra.mxu0 0.0
        %2213 = vmatprep.subr.mxu0 0.0
        %2214 = vmatpush1.msra.mxu0 0.0
        %2215 = vmatprep.subr.mxu0 0.0
        %2216 = vmatpush1.msra.mxu0 0.0
        %2217 = vmatprep.subr.mxu0 0.0
        %2218 = vmatpush1.msra.mxu0 0.0
        %2219 = vmatprep.subr.mxu0 0.0
        %2220 = vmatpush1.msra.mxu0 0.0
        %2221 = vmatprep.subr.mxu0 0.0
        %2222 = vmatpush1.msra.mxu0 0.0
        %2223 = vmatprep.subr.mxu0 0.0
        %2224 = vmatpush1.msra.mxu0 0.0
        %2225 = vmatprep.subr.mxu0 0.0
        %2226 = vmatpush1.msra.mxu0 0.0
        %2227 = vmatprep.subr.mxu0 0.0
        %2228 = vmatpush1.msra.mxu0 0.0
        %2229 = vmatprep.subr.mxu0 0.0
        %2230 = vmatpush1.msra.mxu0 0.0
        %2231 = vmatprep.subr.mxu0 0.0
        %2232 = vmatpush1.msra.mxu0 0.0
        %2233 = vmatprep.subr.mxu0 0.0
        %2234 = vmatpush1.msra.mxu0 0.0
        %2235 = vmatprep.subr.mxu0 0.0
        %2236 = vmatpush1.msra.mxu0 0.0
        %2237 = vmatprep.mubr.f32.mxu0 0.0
        %2238 = vmatmul.mubr.f32.gmra.mrb[0].mxu0 %v2162
        %v2239 = vpop.f32.mrb[0].mxu0
        %v2240 = vadd.f32 0.0, %v2239
        %v2241 = vpop.f32.mrb[0].mxu0
        %2242 = vmatprep.mubr.f32.mxu0 0.0
        %2243 = vmatmul.mubr.f32.gmra.mrb[0].mxu0 %v2165
        %v2244 = vpop.f32.mrb[0].mxu0
        %v2245 = vadd.f32 0.0, %v2244
        %v2246 = vpop.f32.mrb[0].mxu0
        %2247 = vmatprep.mubr.f32.mxu0 0.0
        %2248 = vmatmul.mubr.f32.gmra.mrb[0].mxu0 %v2168
        %v2249 = vpop.f32.mrb[0].mxu0
        %v2250 = vadd.f32 0.0, %v2249
        %v2251 = vpop.f32.mrb[0].mxu0
        %2252 = vmatprep.mubr.f32.mxu0 0.0
        %2253 = vmatmul.mubr.f32.gmra.mrb[0].mxu0 %v2171
        %v2254 = vpop.f32.mrb[0].mxu0
        %v2255 = vadd.f32 0.0, %v2254
        %v2256 = vpop.f32.mrb[0].mxu0
        %2257 = vdwg.mxu0
        %2259 = vset.pattern.permute.xlu0 0
        %2260 = vperm.xlu0 %2259, %v2240
        %v2261 = vpop.permute.xlu0 %2260
        %2264 = vset.pattern.permute.xlu0 0
        %2265 = vperm.xlu0 %2264, %v2245
        %v2266 = vpop.permute.xlu0 %2265
        %2269 = vset.pattern.permute.xlu0 0
        %2270 = vperm.xlu0 %2269, %v2250
        %v2271 = vpop.permute.xlu0 %2270
        %2274 = vset.pattern.permute.xlu0 0
        %2275 = vperm.xlu0 %2274, %v2255
        %v2276 = vpop.permute.xlu0 %2275
        %2278 = vmatprep.subr.mxu0 %v1988
        %2279 = vmatpush1.msra.mxu0 %v1987
        %2280 = vmatprep.subr.mxu0 %v1991
        %2281 = vmatpush1.msra.mxu0 %v1990
        %2282 = vmatprep.subr.mxu0 %v1994
        %2283 = vmatpush1.msra.mxu0 %v1993
        %2284 = vmatprep.subr.mxu0 %v1997
        %2285 = vmatpush1.msra.mxu0 %v1996
        %2286 = vmatprep.subr.mxu0 %v2000
        %2287 = vmatpush1.msra.mxu0 %v1999
        %2288 = vmatprep.subr.mxu0 %v2003
        %2289 = vmatpush1.msra.mxu0 %v2002
        %2290 = vmatprep.subr.mxu0 %v2006
        %2291 = vmatpush1.msra.mxu0 %v2005
        %2292 = vmatprep.subr.mxu0 %v2009
        %2293 = vmatpush1.msra.mxu0 %v2008
        %2294 = vmatprep.subr.mxu0 %v2012
        %2295 = vmatpush1.msra.mxu0 %v2011
        %2296 = vmatprep.subr.mxu0 %v2015
        %2297 = vmatpush1.msra.mxu0 %v2014
        %2298 = vmatprep.subr.mxu0 %v2018
        %2299 = vmatpush1.msra.mxu0 %v2017
        %2300 = vmatprep.subr.mxu0 %v2021
        %2301 = vmatpush1.msra.mxu0 %v2020
        %2302 = vmatprep.subr.mxu0 %v2024
        %2303 = vmatpush1.msra.mxu0 %v2023
        %2304 = vmatprep.subr.mxu0 %v2027
        %2305 = vmatpush1.msra.mxu0 %v2026
        %2306 = vmatprep.subr.mxu0 %v2030
        %2307 = vmatpush1.msra.mxu0 %v2029
        %2308 = vmatprep.subr.mxu0 %v2033
        %2309 = vmatpush1.msra.mxu0 %v2032
        %2310 = vmatprep.subr.mxu0 0.0
        %2311 = vmatpush1.msra.mxu0 0.0
        %2312 = vmatprep.subr.mxu0 0.0
        %2313 = vmatpush1.msra.mxu0 0.0
        %2314 = vmatprep.subr.mxu0 0.0
        %2315 = vmatpush1.msra.mxu0 0.0
        %2316 = vmatprep.subr.mxu0 0.0
        %2317 = vmatpush1.msra.mxu0 0.0
        %2318 = vmatprep.subr.mxu0 0.0
        %2319 = vmatpush1.msra.mxu0 0.0
        %2320 = vmatprep.subr.mxu0 0.0
        %2321 = vmatpush1.msra.mxu0 0.0
        %2322 = vmatprep.subr.mxu0 0.0
        %2323 = vmatpush1.msra.mxu0 0.0
        %2324 = vmatprep.subr.mxu0 0.0
        %2325 = vmatpush1.msra.mxu0 0.0
        %2326 = vmatprep.subr.mxu0 0.0
        %2327 = vmatpush1.msra.mxu0 0.0
        %2328 = vmatprep.subr.mxu0 0.0
        %2329 = vmatpush1.msra.mxu0 0.0
        %2330 = vmatprep.subr.mxu0 0.0
        %2331 = vmatpush1.msra.mxu0 0.0
        %2332 = vmatprep.subr.mxu0 0.0
        %2333 = vmatpush1.msra.mxu0 0.0
        %2334 = vmatprep.subr.mxu0 0.0
        %2335 = vmatpush1.msra.mxu0 0.0
        %2336 = vmatprep.subr.mxu0 0.0
        %2337 = vmatpush1.msra.mxu0 0.0
        %2338 = vmatprep.subr.mxu0 0.0
        %2339 = vmatpush1.msra.mxu0 0.0
        %2340 = vmatprep.subr.mxu0 0.0
        %2341 = vmatpush1.msra.mxu0 0.0
        %2342 = vmatprep.mubr.f32.mxu0 0.0
        %2343 = vmatmul.mubr.f32.gmra.mrb[0].mxu0 %v1983
        %v2344 = vpop.f32.mrb[0].mxu0
        %v2345 = vadd.f32 %v2261, %v2344
        %v2346 = vpop.f32.mrb[0].mxu0
        %v2347 = vadd.f32 %v2261, %v2346
        %2348 = vmatprep.mubr.f32.mxu0 0.0
        %2349 = vmatmul.mubr.f32.gmra.mrb[0].mxu0 %v1984
        %v2350 = vpop.f32.mrb[0].mxu0
        %v2351 = vadd.f32 %v2266, %v2350
        %v2352 = vpop.f32.mrb[0].mxu0
        %v2353 = vadd.f32 %v2266, %v2352
        %2354 = vmatprep.mubr.f32.mxu0 0.0
        %2355 = vmatmul.mubr.f32.gmra.mrb[0].mxu0 %v1985
        %v2356 = vpop.f32.mrb[0].mxu0
        %v2357 = vadd.f32 %v2271, %v2356
        %v2358 = vpop.f32.mrb[0].mxu0
        %v2359 = vadd.f32 %v2271, %v2358
        %2360 = vmatprep.mubr.f32.mxu0 0.0
        %2361 = vmatmul.mubr.f32.gmra.mrb[0].mxu0 %v1986
        %v2362 = vpop.f32.mrb[0].mxu0
        %v2363 = vadd.f32 %v2276, %v2362
        %v2364 = vpop.f32.mrb[0].mxu0
        %v2365 = vadd.f32 %v2276, %v2364
        %2366 = vdwg.mxu0
        %2367 = vmatprep.subr.mxu0 0.0
        %2368 = vmatpush1.msra.mxu0 %v1989
        %2369 = vmatprep.subr.mxu0 0.0
        %2370 = vmatpush1.msra.mxu0 %v1992
        %2371 = vmatprep.subr.mxu0 0.0
        %2372 = vmatpush1.msra.mxu0 %v1995
        %2373 = vmatprep.subr.mxu0 0.0
        %2374 = vmatpush1.msra.mxu0 %v1998
        %2375 = vmatprep.subr.mxu0 0.0
        %2376 = vmatpush1.msra.mxu0 %v2001
        %2377 = vmatprep.subr.mxu0 0.0
        %2378 = vmatpush1.msra.mxu0 %v2004
        %2379 = vmatprep.subr.mxu0 0.0
        %2380 = vmatpush1.msra.mxu0 %v2007
        %2381 = vmatprep.subr.mxu0 0.0
        %2382 = vmatpush1.msra.mxu0 %v2010
        %2383 = vmatprep.subr.mxu0 0.0
        %2384 = vmatpush1.msra.mxu0 %v2013
        %2385 = vmatprep.subr.mxu0 0.0
        %2386 = vmatpush1.msra.mxu0 %v2016
        %2387 = vmatprep.subr.mxu0 0.0
        %2388 = vmatpush1.msra.mxu0 %v2019
        %2389 = vmatprep.subr.mxu0 0.0
        %2390 = vmatpush1.msra.mxu0 %v2022
        %2391 = vmatprep.subr.mxu0 0.0
        %2392 = vmatpush1.msra.mxu0 %v2025
        %2393 = vmatprep.subr.mxu0 0.0
        %2394 = vmatpush1.msra.mxu0 %v2028
        %2395 = vmatprep.subr.mxu0 0.0
        %2396 = vmatpush1.msra.mxu0 %v2031
        %2397 = vmatprep.subr.mxu0 0.0
        %2398 = vmatpush1.msra.mxu0 %v2034
        %2399 = vmatprep.subr.mxu0 0.0
        %2400 = vmatpush1.msra.mxu0 0.0
        %2401 = vmatprep.subr.mxu0 0.0
        %2402 = vmatpush1.msra.mxu0 0.0
        %2403 = vmatprep.subr.mxu0 0.0
        %2404 = vmatpush1.msra.mxu0 0.0
        %2405 = vmatprep.subr.mxu0 0.0
        %2406 = vmatpush1.msra.mxu0 0.0
        %2407 = vmatprep.subr.mxu0 0.0
        %2408 = vmatpush1.msra.mxu0 0.0
        %2409 = vmatprep.subr.mxu0 0.0
        %2410 = vmatpush1.msra.mxu0 0.0
        %2411 = vmatprep.subr.mxu0 0.0
        %2412 = vmatpush1.msra.mxu0 0.0
        %2413 = vmatprep.subr.mxu0 0.0
        %2414 = vmatpush1.msra.mxu0 0.0
        %2415 = vmatprep.subr.mxu0 0.0
        %2416 = vmatpush1.msra.mxu0 0.0
        %2417 = vmatprep.subr.mxu0 0.0
        %2418 = vmatpush1.msra.mxu0 0.0
        %2419 = vmatprep.subr.mxu0 0.0
        %2420 = vmatpush1.msra.mxu0 0.0
        %2421 = vmatprep.subr.mxu0 0.0
        %2422 = vmatpush1.msra.mxu0 0.0
        %2423 = vmatprep.subr.mxu0 0.0
        %2424 = vmatpush1.msra.mxu0 0.0
        %2425 = vmatprep.subr.mxu0 0.0
        %2426 = vmatpush1.msra.mxu0 0.0
        %2427 = vmatprep.subr.mxu0 0.0
        %2428 = vmatpush1.msra.mxu0 0.0
        %2429 = vmatprep.subr.mxu0 0.0
        %2430 = vmatpush1.msra.mxu0 0.0
        %2431 = vmatprep.mubr.f32.mxu0 0.0
        %2432 = vmatmul.mubr.f32.gmra.mrb[0].mxu0 %v1983
        %v2433 = vpop.f32.mrb[0].mxu0
        %v2434 = vadd.f32 %v2261, %v2433
        %v2435 = vpop.f32.mrb[0].mxu0
        %2436 = vmatprep.mubr.f32.mxu0 0.0
        %2437 = vmatmul.mubr.f32.gmra.mrb[0].mxu0 %v1984
        %v2438 = vpop.f32.mrb[0].mxu0
        %v2439 = vadd.f32 %v2266, %v2438
        %v2440 = vpop.f32.mrb[0].mxu0
        %2441 = vmatprep.mubr.f32.mxu0 0.0
        %2442 = vmatmul.mubr.f32.gmra.mrb[0].mxu0 %v1985
        %v2443 = vpop.f32.mrb[0].mxu0
        %v2444 = vadd.f32 %v2271, %v2443
        %v2445 = vpop.f32.mrb[0].mxu0
        %2446 = vmatprep.mubr.f32.mxu0 0.0
        %2447 = vmatmul.mubr.f32.gmra.mrb[0].mxu0 %v1986
        %v2448 = vpop.f32.mrb[0].mxu0
        %v2449 = vadd.f32 %v2276, %v2448
        %v2450 = vpop.f32.mrb[0].mxu0
        %2451 = vdwg.mxu0
        %s2452 = scalar_lea.vmem [#allocation15], 160
        %v2453 = vld [vmem:[%s2452] sm:$0xff]
        %v2454 = vld [vmem:[%s2452 + $0x8] sm:$0xff]
        %v2455 = vld [vmem:[%s2452 + $0x10] sm:$0xff]
        %v2456 = vld [vmem:[%s2452 + $0x18] sm:$0xff]
        %2458 = vset.pattern.permute.xlu0 0
        %2459 = vperm.xlu0 %2458, %v2453
        %v2460 = vpop.permute.xlu0 %2459
        %2463 = vset.pattern.permute.xlu0 0
        %2464 = vperm.xlu0 %2463, %v2454
        %v2465 = vpop.permute.xlu0 %2464
        %2468 = vset.pattern.permute.xlu0 0
        %2469 = vperm.xlu0 %2468, %v2455
        %v2470 = vpop.permute.xlu0 %2469
        %2473 = vset.pattern.permute.xlu0 0
        %2474 = vperm.xlu0 %2473, %v2456
        %v2475 = vpop.permute.xlu0 %2474
        %v2477 = vadd.f32 %v2345, %v2460
        %v2478 = vadd.f32 %v2347, %v2460
        %v2479 = vadd.f32 %v2434, %v2460
        %v2480 = vadd.f32 %v2351, %v2465
        %v2481 = vadd.f32 %v2353, %v2465
        %v2482 = vadd.f32 %v2439, %v2465
        %v2483 = vadd.f32 %v2357, %v2470
        %v2484 = vadd.f32 %v2359, %v2470
        %v2485 = vadd.f32 %v2444, %v2470
        %v2486 = vadd.f32 %v2363, %v2475
        %v2487 = vadd.f32 %v2365, %v2475
        %v2488 = vadd.f32 %v2449, %v2475
        %v2489 = vmax.f32 %v2477, 0.0
        %v2490 = vmax.f32 %v2478, 0.0
        %v2491 = vmax.f32 %v2479, 0.0
        %v2492 = vmax.f32 %v2480, 0.0
        %v2493 = vmax.f32 %v2481, 0.0
        %v2494 = vmax.f32 %v2482, 0.0
        %v2495 = vmax.f32 %v2483, 0.0
        %v2496 = vmax.f32 %v2484, 0.0
        %v2497 = vmax.f32 %v2485, 0.0
        %v2498 = vmax.f32 %v2486, 0.0
        %v2499 = vmax.f32 %v2487, 0.0
        %v2500 = vmax.f32 %v2488, 0.0
        %2501 = vst [vmem:[%s381] sm:$0xff] %v2489
        %2502 = vst [vmem:[%s381 + $0x8] sm:$0xff] %v2490
        %2503 = vst.msk [vmem:[%s381 + $0x10] sm:$0xff] %vm636, %v2491
        %2504 = vst [vmem:[%s381 + $0x18] sm:$0xff] %v2492
        %2505 = vst [vmem:[%s381 + $0x20] sm:$0xff] %v2493
        %2506 = vst.msk [vmem:[%s381 + $0x28] sm:$0xff] %vm636, %v2494
        %2507 = vst [vmem:[%s381 + $0x30] sm:$0xff] %v2495
        %2508 = vst [vmem:[%s381 + $0x38] sm:$0xff] %v2496
        %2509 = vst.msk [vmem:[%s381 + $0x40] sm:$0xff] %vm636, %v2497
        %2510 = vst [vmem:[%s381 + $0x48] sm:$0xff] %v2498
        %2511 = vst [vmem:[%s381 + $0x50] sm:$0xff] %v2499
        %2512 = vst.msk [vmem:[%s381 + $0x58] sm:$0xff] %vm636, %v2500
        %s2513 = sand.u32 %s187, 1
        %s2514 = scalar_lea.sflag [#allocation6], %s2513
        %s2515 = sand.u32 %s187, 1
        %s2516 = smul.addr %s2515, 96
        %s2517 = scalar_lea.vmem [#allocation16], %s2516
        // Predicated region
        $region77: #{tpu_custom_call.1} parent=47 // pred_check
          %p2518 = pneg %p197
        $region78: #{tpu_custom_call.1} parent=47 // pred_check_branch
          %2520 = sbr.rel (%p2518) target = $region80
        $region79: #{tpu_custom_call.1} parent=47 // pred_region
          %s2522 = ssub.s32 1536, 1536
          %2523 = vsyncadd %s2514, %s2522
          %s2524 = smul.addr %s27, 12
          %s2525 = smul.addr %s2524, 128
          %s2526 = scalar_lea.hbm %s7, %s2525
          %s2527 = sshll.u32 %s2517, 4
          %s2528 = int_to_ptr.vmem [resolvable:$true] %s2527
          %2533 = dma.vmem_to_hbm [thread:$0]  %s2528, 1536, %s2526, %s2514, 384, 384, 24
        $region80: #{tpu_custom_call.1} parent=47 // pred_fallthru
          _
      $region48: #{tpu_custom_call.1} parent=5 // pred_fallthru
        _
      %p2534 = scmp.le.s32.totalorder 2, %s22
      // Predicated region
      $region81: #{tpu_custom_call.1} parent=5 // pred_check
        %p2535 = pneg %p2534
      $region82: #{tpu_custom_call.1} parent=5 // pred_check_branch
        %2537 = sbr.rel (%p2535) target = $region84
      $region83: #{tpu_custom_call.1} parent=5 // pred_region
        %s2538 = ssub.s32 %s22, 2
        // Predicated region
        $region85: #{tpu_custom_call.1} parent=83 // pred_check
          %p2539 = pneg %p203
        $region86: #{tpu_custom_call.1} parent=83 // pred_check_branch
          %2541 = sbr.rel (%p2539) target = $region88
        $region87: #{tpu_custom_call.1} parent=83 // pred_region
          %s2542 = sand.u32 %s188, 1
          %s2543 = scalar_lea.sflag [#allocation6], %s2542
          %s2544 = sand.u32 %s188, 1
          %s2545 = smul.addr %s2544, 96
          %s2546 = scalar_lea.vmem [#allocation16], %s2545
          %2547 = dma.done %s2543, 1536
        $region88: #{tpu_custom_call.1} parent=83 // pred_fallthru
          _
      $region84: #{tpu_custom_call.1} parent=5 // pred_fallthru
        _
    $region6: #{tpu_custom_call.1} parent=1 // loop_footer
      %s26 = sadd.s32 1, %s22
    $region7: #{tpu_custom_call.1} parent=1 // loop_footer_branch
      %21 = sbr.rel target = $region3
    $region8: #{tpu_custom_call.1} parent=1 // loop_exit
      _
    %2548 = vsyncpa [#allocation5], 1
    %s2549 = scalar_lea.sflag [#allocation5], 1
    %2550 = vsyncpa %s2549, 1
    %2551 = vsyncpa [#allocation8], 1
    %2552 = vsyncpa [#allocation11], 1
    %2553 = vsyncpa [#allocation14], 1
    %2554 = vsyncpa [#allocation6], 1
    %s2555 = scalar_lea.sflag [#allocation6], 1
    %2556 = vsyncpa %s2555, 1

</llo_original>
